<compile_context>
chip_gen: v5e
topology: v5e:2x2
jax: 0.10.0
libtpu: 0.0.40
codegen_flags: <defaults>
</compile_context>

<pallas_src>
import functools
import math

import jax
import jax.numpy as jnp
from jax.experimental import pallas as pl
from jax.experimental.pallas import tpu as pltpu

EPS = 1e-5                       # nn.LayerNorm default eps
MXU_DTYPE = jnp.bfloat16         # MXU operand dtype; accumulation stays f32
CACHE_DTYPE = jnp.bfloat16       # K/V cache writeback dtype (memory-bound)


@functools.lru_cache(maxsize=None)
def _vmem_limit_bytes():
    # ~3/4 of physical VMEM: ~96 MiB on v5e/v6e (128 MiB), ~48 MiB on v7x (64 MiB).
    cap = 64 * 1024 * 1024
    try:
        cap = int(pltpu.get_tpu_info().vmem_capacity_bytes)
    except Exception:
        pass
    return min((cap * 3) // 4, 112 * 1024 * 1024)


# ----------------------------------------------------------------------------
# in-kernel helpers (pure jnp, traced inside the Pallas kernel)
# ----------------------------------------------------------------------------
def _layer_norm(x, gamma, beta):
    m = jnp.mean(x, axis=-1, keepdims=True)
    var = jnp.mean((x - m) ** 2, axis=-1, keepdims=True)
    return (x - m) * jax.lax.rsqrt(var + EPS) * gamma + beta


_NT_DIMS = (((1,), (1,)), ((), ()))   # contract last dims: q @ k^T without a transpose op


def _attention(x_q, x_kv, wq, bq, wk, bk, wv, bv, wo, bo, ctx_ref,
               *, num_heads, causal):
    """Multi-head attention for one batch element.

    x_q: [Sq, E] f32, x_kv: [Sk, E] f32.  Writes per-head context into
    ctx_ref ([Sq, E] bf16 scratch), returns (attn_out [Sq,E] f32,
    k_bf16 [Sk,E], v_bf16 [Sk,E]) where k/v are the lane-dense projections.
    """
    Sq, E = x_q.shape
    Sk = x_kv.shape[0]
    hd = E // num_heads
    scale = 1.0 / math.sqrt(hd)

    xq = x_q.astype(MXU_DTYPE)
    xkv = xq if x_kv is x_q else x_kv.astype(MXU_DTYPE)   # cast once per tensor
    q = jnp.dot(xq, wq, preferred_element_type=jnp.float32) + bq
    k = jnp.dot(xkv, wk, preferred_element_type=jnp.float32) + bk
    v = jnp.dot(xkv, wv, preferred_element_type=jnp.float32) + bv
    qb = q.astype(MXU_DTYPE)
    kb = k.astype(MXU_DTYPE)
    vb = v.astype(MXU_DTYPE)

    if causal:
        rows = jax.lax.broadcasted_iota(jnp.int32, (Sq, Sk), 0)
        cols = jax.lax.broadcasted_iota(jnp.int32, (Sq, Sk), 1)
        masked_out = cols > rows

    # Per-head 2-D NT matmuls from static lane slices; context is written
    # straight into ctx_ref columns (no stack / concatenate copies).
    for h in range(num_heads):
        sl = slice(h * hd, (h + 1) * hd)
        s = jax.lax.dot_general(qb[:, sl], kb[:, sl], _NT_DIMS,
                                preferred_element_type=jnp.float32) * scale
        if causal:
            s = jnp.where(masked_out, -jnp.inf, s)
        # reference (non-inference path) subtracts the row max before softmax
        s = s - jnp.max(s, axis=-1, keepdims=True)
        e = jnp.exp(s)
        p = e * pl.reciprocal(jnp.sum(e, axis=-1, keepdims=True), approx=True)
        ctx_ref[:, sl] = jnp.dot(p.astype(MXU_DTYPE), vb[:, sl],
                                 preferred_element_type=jnp.float32
                                 ).astype(ctx_ref.dtype)

    # ONE full-E output projection (K = E keeps the MXU contraction deep).
    attn_out = jnp.dot(ctx_ref[...], wo, preferred_element_type=jnp.float32) + bo
    return attn_out, kb, vb


# ----------------------------------------------------------------------------
# fused decoder-layer kernel (one grid step = one batch element)
# ----------------------------------------------------------------------------
def decoder_layer_kernel(x_ref, enc_ref,
                         wq_s, wk_s, wv_s, wo_s,
                         wq_c, wk_c, wv_c, wo_c,
                         w1, w2, vec_ref, bf1_ref,
                         out_ref, ks_ref, vs_ref, kc_ref, vc_ref,
                         ctx_ref, *, num_heads):
    x = x_ref[...].astype(jnp.float32)       # [S, E]
    enc = enc_ref[...].astype(jnp.float32)   # [T, E]

    # Unpack the (16, E) packed small params (static sublane slices).
    vecs = vec_ref[...]
    (bq_s, bk_s, bv_s, bo_s, g1, be1,
     bq_c, bk_c, bv_c, bo_c, g2, be2,
     bf2, g3, be3) = [vecs[i:i + 1, :] for i in range(15)]

    # --- causal self-attention, then residual: x + LN(attn_out) ---
    sa_out, k_s, v_s = _attention(
        x, x, wq_s[...], bq_s, wk_s[...], bk_s, wv_s[...], bv_s,
        wo_s[...], bo_s, ctx_ref, num_heads=num_heads, causal=True)
    ks_ref[...] = k_s.astype(ks_ref.dtype)   # lane-dense [S, E] bf16 K/V cache
    vs_ref[...] = v_s.astype(vs_ref.dtype)
    h1 = x + _layer_norm(sa_out, g1, be1)

    # --- cross-attention over encoder output, then residual + LN ---
    ca_out, k_c, v_c = _attention(
        h1, enc, wq_c[...], bq_c, wk_c[...], bk_c, wv_c[...], bv_c,
        wo_c[...], bo_c, ctx_ref, num_heads=num_heads, causal=False)
    kc_ref[...] = k_c.astype(kc_ref.dtype)
    vc_ref[...] = v_c.astype(vc_ref.dtype)
    h2 = h1 + _layer_norm(ca_out, g2, be2)

    # --- FFN: Linear -> ReLU -> Linear, then residual + LN ---
    h2b = h2.astype(MXU_DTYPE)               # cast once for the FFN
    f1 = jnp.maximum(
        jnp.dot(h2b, w1[...], preferred_element_type=jnp.float32) + bf1_ref[...],
        0.0)
    f2 = jnp.dot(f1.astype(MXU_DTYPE), w2[...],
                 preferred_element_type=jnp.float32) + bf2
    out_ref[...] = (h2 + _layer_norm(f2, g3, be3)).astype(out_ref.dtype)


def _zero_map(ndim):
    def idx(b):
        return (0,) * ndim
    return idx


def decoder_layer(x, enc, weights, *, num_heads):
    B, S, E = x.shape
    T = enc.shape[1]

    act_specs = [
        pl.BlockSpec((None, S, E), lambda b: (b, 0, 0)),   # decoder activations
        pl.BlockSpec((None, T, E), lambda b: (b, 0, 0)),   # encoder output
    ]
    # Weights: full blocks, constant index map -> resident in VMEM across grid.
    weight_specs = [pl.BlockSpec(w.shape, _zero_map(w.ndim)) for w in weights]

    out_shapes = (
        jax.ShapeDtypeStruct((B, S, E), jnp.float32),    # layer output
        jax.ShapeDtypeStruct((B, S, E), CACHE_DTYPE),    # k_self (lane-dense)
        jax.ShapeDtypeStruct((B, S, E), CACHE_DTYPE),    # v_self
        jax.ShapeDtypeStruct((B, T, E), CACHE_DTYPE),    # k_cross
        jax.ShapeDtypeStruct((B, T, E), CACHE_DTYPE),    # v_cross
    )
    out_specs = (
        pl.BlockSpec((None, S, E), lambda b: (b, 0, 0)),
        pl.BlockSpec((None, S, E), lambda b: (b, 0, 0)),
        pl.BlockSpec((None, S, E), lambda b: (b, 0, 0)),
        pl.BlockSpec((None, T, E), lambda b: (b, 0, 0)),
        pl.BlockSpec((None, T, E), lambda b: (b, 0, 0)),
    )
    return pl.pallas_call(
        functools.partial(decoder_layer_kernel, num_heads=num_heads),
        out_shape=out_shapes,
        grid=(B,),
        in_specs=act_specs + weight_specs,
        out_specs=out_specs,
        scratch_shapes=[pltpu.VMEM((S, E), MXU_DTYPE)],   # per-head ctx scratch
        compiler_params=pltpu.CompilerParams(
            dimension_semantics=("parallel",),
            vmem_limit_bytes=_vmem_limit_bytes()),
    )(x, enc, *weights)


# ----------------------------------------------------------------------------
# final vocab projection: 2-D (row-tile x vocab-tile) parallel grid
# ----------------------------------------------------------------------------
def final_projection_kernel(x_ref, w_ref, b_ref, o_ref):
    o_ref[...] = (jnp.dot(x_ref[...], w_ref[...],
                          preferred_element_type=jnp.float32)
                  + b_ref[...]).astype(o_ref.dtype)


def final_projection(x, w, b, *, tile_rows=256, tile_v=2048):
    B, S, E = x.shape
    rows = B * S
    V = w.shape[1]

    rows_pad = ((rows + 7) // 8) * 8          # sublane-aligned row count
    x2 = x.reshape(rows, E)
    if rows_pad != rows:
        x2 = jnp.pad(x2, ((0, rows_pad - rows), (0, 0)))
    x2 = x2.astype(w.dtype)

    tr = min(tile_rows, rows_pad)
    tr -= tr % 8
    while tr > 8 and rows_pad % tr != 0:
        tr -= 8

    if V % 128 == 0:
        tv = min(tile_v, V)
        tv -= tv % 128
        while tv > 128 and V % tv != 0:
            tv -= 128
    else:
        tv = V                                # fall back to full vocab block

    out = pl.pallas_call(
        final_projection_kernel,
        out_shape=jax.ShapeDtypeStruct((rows_pad, V), jnp.float32),
        grid=(rows_pad // tr, V // tv),
        in_specs=[pl.BlockSpec((tr, E), lambda i, j: (i, 0)),
                  pl.BlockSpec((E, tv), lambda i, j: (0, j)),
                  pl.BlockSpec((1, tv), lambda i, j: (0, j))],
        out_specs=pl.BlockSpec((tr, tv), lambda i, j: (i, j)),
        compiler_params=pltpu.CompilerParams(
            dimension_semantics=("parallel", "parallel"),
            vmem_limit_bytes=_vmem_limit_bytes()),
    )(x2, w, b)
    return out[:rows].reshape(B, S, V)


# ----------------------------------------------------------------------------
# full decoder forward (eval semantics, no past_k/past_v)
# ----------------------------------------------------------------------------
def _sin_pos_encoding(seq_len, embed_dim):
    # TODO(synk): SinPositionalEncoding source not in the spec; standard
    # sinusoidal encoding assumed (sin on even dims, cos on odd dims).
    pos = jnp.arange(seq_len, dtype=jnp.float32)[:, None]
    i = jnp.arange(embed_dim, dtype=jnp.float32)[None, :]
    angle = pos / jnp.power(10000.0, 2.0 * jnp.floor(i / 2.0) / embed_dim)
    return jnp.where(i % 2 == 0, jnp.sin(angle), jnp.cos(angle))


def transformer_decoder(decoder_input, encoder_output, params, *, num_heads):
    # TODO(synk): embedding gather + positional add stay in plain JAX (a small
    # gather has no clean Pallas win); all dense layer math runs in Pallas.
    emb = jnp.take(params["embedding"], decoder_input, axis=0)        # [B,S,E]
    B, S, E = emb.shape
    T = encoder_output.shape[1]
    hd = E // num_heads

    x = emb + _sin_pos_encoding(S, E)[None, :, :]   # dropout = identity (eval)

    ks_l, vs_l, kc_l, vc_l = [], [], [], []
    for layer_w in params["layers"]:
        x, ks, vs, kc, vc = decoder_layer(x, encoder_output, layer_w,
                                          num_heads=num_heads)
        ks_l.append(ks); vs_l.append(vs); kc_l.append(kc); vc_l.append(vc)

    logits = final_projection(x, params["w_out"], params["b_out"])

    # Single layout conversion of the lane-dense bf16 caches to the PyTorch
    # [B, NH, S, hd] convention, done once after all layers (bf16 halves bytes).
    def to_heads(a, L):
        return jnp.transpose(a.reshape(B, L, num_heads, hd), (0, 2, 1, 3))
    pk_self = [to_heads(a, S) for a in ks_l]
    pv_self = [to_heads(a, S) for a in vs_l]
    pk_cross = [to_heads(a, T) for a in kc_l]
    pv_cross = [to_heads(a, T) for a in vc_l]
    return logits, pk_self, pv_self, pk_cross, pv_cross


# ----------------------------------------------------------------------------
# deterministic parameter construction (linear weights stored [in, out])
# ----------------------------------------------------------------------------
def init_params(key, vocab_size, num_layers, embed_dim, hidden_dim):
    E, H = embed_dim, hidden_dim

    def linear(k, fan_in, shape_w, shape_b):
        k1, k2 = jax.random.split(k)
        bound = 1.0 / math.sqrt(fan_in)
        w = jax.random.uniform(k1, shape_w, jnp.float32, -bound, bound)
        b = jax.random.uniform(k2, shape_b, jnp.float32, -bound, bound)
        return w.astype(MXU_DTYPE), b   # matrices bf16 (MXU), biases f32

    ones_e = jnp.ones((E,), jnp.float32)
    zeros_e = jnp.zeros((E,), jnp.float32)

    keys = jax.random.split(key, num_layers + 2)
    layers = []
    for li in range(num_layers):
        ks = jax.random.split(keys[li], 10)
        wq_s, bq_s = linear(ks[0], E, (E, E), (E,))
        wk_s, bk_s = linear(ks[1], E, (E, E), (E,))
        wv_s, bv_s = linear(ks[2], E, (E, E), (E,))
        wo_s, bo_s = linear(ks[3], E, (E, E), (E,))
        wq_c, bq_c = linear(ks[4], E, (E, E), (E,))
        wk_c, bk_c = linear(ks[5], E, (E, E), (E,))
        wv_c, bv_c = linear(ks[6], E, (E, E), (E,))
        wo_c, bo_c = linear(ks[7], E, (E, E), (E,))
        w1, bf1 = linear(ks[8], E, (E, H), (1, H))
        w2, bf2 = linear(ks[9], H, (H, E), (E,))
        # Pack all (E,)-sized small params into one (16, E) f32 array
        # (row order matches the kernel's unpack; row 15 is padding).
        vec_pack = jnp.stack(
            [bq_s, bk_s, bv_s, bo_s, ones_e, zeros_e,
             bq_c, bk_c, bv_c, bo_c, ones_e, zeros_e,
             bf2, ones_e, zeros_e, zeros_e], axis=0)
        layers.append((wq_s, wk_s, wv_s, wo_s,
                       wq_c, wk_c, wv_c, wo_c,
                       w1, w2, vec_pack, bf1))
    embedding = jax.random.normal(keys[num_layers], (vocab_size, E), jnp.float32)
    w_out, b_out = linear(keys[num_layers + 1], E, (E, vocab_size), (1, vocab_size))
    return {"embedding": embedding, "layers": layers,
            "w_out": w_out, "b_out": b_out}


if __name__ == "__main__":
    B, S, T, E, H, NH = 2, 8, 8, 64, 128, 2
    VOCAB, LAYERS = 128, 2

    key = jax.random.PRNGKey(0)
    k_ids, k_enc, k_par = jax.random.split(key, 3)
    decoder_input = jax.random.randint(k_ids, (B, S), 0, VOCAB)
    encoder_output = jax.random.normal(k_enc, (B, T, E), jnp.float32)
    params = init_params(k_par, VOCAB, LAYERS, E, H)

    fwd = jax.jit(functools.partial(transformer_decoder, num_heads=NH))
    outs = fwd(decoder_input, encoder_output, params)
    jax.block_until_ready(outs)
    logits, pk_self, pv_self, pk_cross, pv_cross = outs

    hd = E // NH
    assert logits.shape == (B, S, VOCAB)
    assert len(pk_self) == LAYERS and pk_self[0].shape == (B, NH, S, hd)
    assert pv_self[0].shape == (B, NH, S, hd)
    assert pk_cross[0].shape == (B, NH, T, hd)
    assert pv_cross[0].shape == (B, NH, T, hd)
    assert bool(jnp.all(jnp.isfinite(logits)))

    print("KERNEL_OK")
</pallas_src>

<mosaic_0001>
module attributes {stable_mosaic.version = 11 : i64} {
  func.func @final_projection_kernel(%arg0: i32, %arg1: i32, %arg2: memref<16x64xbf16, #tpu.memory_space<vmem>>, %arg3: memref<64x128xbf16, #tpu.memory_space<vmem>>, %arg4: memref<1x128xf32, #tpu.memory_space<vmem>>, %arg5: memref<16x128xf32, #tpu.memory_space<vmem>>) attributes {dimension_semantics = [#tpu.dimension_semantics<parallel>, #tpu.dimension_semantics<parallel>], iteration_bounds = array<i64: 1, 1>, scalar_prefetch = 0 : i64, scratch_operands = 0 : i64, tpu.core_type = #tpu.core_type<tc>, window_params = [{transform_indices = @transform_0, window_bounds = array<i64: 16, 64>}, {transform_indices = @transform_1, window_bounds = array<i64: 64, 128>}, {transform_indices = @transform_2, window_bounds = array<i64: 1, 128>}, {transform_indices = @transform_3, window_bounds = array<i64: 16, 128>}]} {
    %c0 = arith.constant 0 : index
    %c0_0 = arith.constant 0 : index
    %0 = vector.load %arg2[%c0, %c0_0] : memref<16x64xbf16, #tpu.memory_space<vmem>>, vector<16x64xbf16>
    %c0_1 = arith.constant 0 : index
    %c0_2 = arith.constant 0 : index
    %1 = vector.load %arg3[%c0_1, %c0_2] : memref<64x128xbf16, #tpu.memory_space<vmem>>, vector<64x128xbf16>
    %cst = arith.constant dense<0.000000e+00> : vector<16x128xf32>
    %2 = tpu.matmul %0, %1, %cst {dimension_numbers = #tpu.dot_dimension_numbers<[1], [0], [0], [1], [0, 0, 1, 1], [], []>} : vector<16x64xbf16>, vector<64x128xbf16>, vector<16x128xf32> -> vector<16x128xf32>
    %c0_3 = arith.constant 0 : index
    %c0_4 = arith.constant 0 : index
    %3 = vector.load %arg4[%c0_3, %c0_4] : memref<1x128xf32, #tpu.memory_space<vmem>>, vector<1x128xf32>
    %4 = vector.broadcast %3 : vector<1x128xf32> to vector<16x128xf32>
    %5 = arith.addf %2, %4 : vector<16x128xf32>
    %c0_5 = arith.constant 0 : index
    %c0_6 = arith.constant 0 : index
    %6 = vector.load %arg5[%c0_5, %c0_6] : memref<16x128xf32, #tpu.memory_space<vmem>>, vector<16x128xf32>
    tpu.vector_store %arg5[%c0_5, %c0_6], %5 {strides = array<i32>} : memref<16x128xf32, #tpu.memory_space<vmem>>, vector<16x128xf32>,
    return
  }
  func.func @transform_0(%arg0: i32, %arg1: i32) -> (i32, i32) {
    %c0_i32 = arith.constant 0 : i32
    %c0_i32_0 = arith.constant 0 : i32
    return %arg0, %c0_i32 : i32, i32
  }
  func.func @transform_1(%arg0: i32, %arg1: i32) -> (i32, i32) {
    %c0_i32 = arith.constant 0 : i32
    %c0_i32_0 = arith.constant 0 : i32
    return %c0_i32, %arg1 : i32, i32
  }
  func.func @transform_2(%arg0: i32, %arg1: i32) -> (i32, i32) {
    %c0_i32 = arith.constant 0 : i32
    %c0_i32_0 = arith.constant 0 : i32
    return %c0_i32, %arg1 : i32, i32
  }
  func.func @transform_3(%arg0: i32, %arg1: i32) -> (i32, i32) {
    %c0_i32 = arith.constant 0 : i32
    return %arg0, %arg1 : i32, i32
  }
}

module attributes {stable_mosaic.version = 11 : i64} {
  func.func @decoder_layer_kernel(%arg0: i32, %arg1: memref<1x8x64xf32, #tpu.memory_space<vmem>>, %arg2: memref<1x8x64xf32, #tpu.memory_space<vmem>>, %arg3: memref<64x64xbf16, #tpu.memory_space<vmem>>, %arg4: memref<64x64xbf16, #tpu.memory_space<vmem>>, %arg5: memref<64x64xbf16, #tpu.memory_space<vmem>>, %arg6: memref<64x64xbf16, #tpu.memory_space<vmem>>, %arg7: memref<64x64xbf16, #tpu.memory_space<vmem>>, %arg8: memref<64x64xbf16, #tpu.memory_space<vmem>>, %arg9: memref<64x64xbf16, #tpu.memory_space<vmem>>, %arg10: memref<64x64xbf16, #tpu.memory_space<vmem>>, %arg11: memref<64x128xbf16, #tpu.memory_space<vmem>>, %arg12: memref<128x64xbf16, #tpu.memory_space<vmem>>, %arg13: memref<16x64xf32, #tpu.memory_space<vmem>>, %arg14: memref<1x128xf32, #tpu.memory_space<vmem>>, %arg15: memref<1x8x64xf32, #tpu.memory_space<vmem>>, %arg16: memref<1x8x64xbf16, #tpu.memory_space<vmem>>, %arg17: memref<1x8x64xbf16, #tpu.memory_space<vmem>>, %arg18: memref<1x8x64xbf16, #tpu.memory_space<vmem>>, %arg19: memref<1x8x64xbf16, #tpu.memory_space<vmem>>, %arg20: memref<8x64xbf16, #tpu.memory_space<vmem>>) attributes {dimension_semantics = [#tpu.dimension_semantics<parallel>], iteration_bounds = array<i64: 2>, scalar_prefetch = 0 : i64, scratch_operands = 1 : i64, tpu.core_type = #tpu.core_type<tc>, window_params = [{transform_indices = @transform_0, window_bounds = array<i64: 1, 8, 64>}, {transform_indices = @transform_1, window_bounds = array<i64: 1, 8, 64>}, {pipeline_mode = #tpu.pipeline_mode<synchronous>, transform_indices = @transform_2, window_bounds = array<i64: 64, 64>}, {pipeline_mode = #tpu.pipeline_mode<synchronous>, transform_indices = @transform_3, window_bounds = array<i64: 64, 64>}, {pipeline_mode = #tpu.pipeline_mode<synchronous>, transform_indices = @transform_4, window_bounds = array<i64: 64, 64>}, {pipeline_mode = #tpu.pipeline_mode<synchronous>, transform_indices = @transform_5, window_bounds = array<i64: 64, 64>}, {pipeline_mode = #tpu.pipeline_mode<synchronous>, transform_indices = @transform_6, window_bounds = array<i64: 64, 64>}, {pipeline_mode = #tpu.pipeline_mode<synchronous>, transform_indices = @transform_7, window_bounds = array<i64: 64, 64>}, {pipeline_mode = #tpu.pipeline_mode<synchronous>, transform_indices = @transform_8, window_bounds = array<i64: 64, 64>}, {pipeline_mode = #tpu.pipeline_mode<synchronous>, transform_indices = @transform_9, window_bounds = array<i64: 64, 64>}, {pipeline_mode = #tpu.pipeline_mode<synchronous>, transform_indices = @transform_10, window_bounds = array<i64: 64, 128>}, {pipeline_mode = #tpu.pipeline_mode<synchronous>, transform_indices = @transform_11, window_bounds = array<i64: 128, 64>}, {pipeline_mode = #tpu.pipeline_mode<synchronous>, transform_indices = @transform_12, window_bounds = array<i64: 16, 64>}, {pipeline_mode = #tpu.pipeline_mode<synchronous>, transform_indices = @transform_13, window_bounds = array<i64: 1, 128>}, {transform_indices = @transform_14, window_bounds = array<i64: 1, 8, 64>}, {transform_indices = @transform_15, window_bounds = array<i64: 1, 8, 64>}, {transform_indices = @transform_16, window_bounds = array<i64: 1, 8, 64>}, {transform_indices = @transform_17, window_bounds = array<i64: 1, 8, 64>}, {transform_indices = @transform_18, window_bounds = array<i64: 1, 8, 64>}]} {
    %c0 = arith.constant 0 : index
    %c0_0 = arith.constant 0 : index
    %c0_1 = arith.constant 0 : index
    %0 = vector.load %arg1[%c0, %c0_0, %c0_1] : memref<1x8x64xf32, #tpu.memory_space<vmem>>, vector<1x8x64xf32>
    %1 = vector.shape_cast %0 : vector<1x8x64xf32> to vector<8x64xf32>
    %c0_2 = arith.constant 0 : index
    %c0_3 = arith.constant 0 : index
    %c0_4 = arith.constant 0 : index
    %2 = vector.load %arg2[%c0_2, %c0_3, %c0_4] : memref<1x8x64xf32, #tpu.memory_space<vmem>>, vector<1x8x64xf32>
    %3 = vector.shape_cast %2 : vector<1x8x64xf32> to vector<8x64xf32>
    %c0_5 = arith.constant 0 : index
    %c0_6 = arith.constant 0 : index
    %4 = vector.load %arg13[%c0_5, %c0_6] : memref<16x64xf32, #tpu.memory_space<vmem>>, vector<16x64xf32>
    %5 = vector.extract_strided_slice %4 {offsets = [0, 0], sizes = [1, 64], strides = [1, 1]} : vector<16x64xf32> to vector<1x64xf32>
    %6 = vector.extract_strided_slice %4 {offsets = [1, 0], sizes = [1, 64], strides = [1, 1]} : vector<16x64xf32> to vector<1x64xf32>
    %7 = vector.extract_strided_slice %4 {offsets = [2, 0], sizes = [1, 64], strides = [1, 1]} : vector<16x64xf32> to vector<1x64xf32>
    %8 = vector.extract_strided_slice %4 {offsets = [3, 0], sizes = [1, 64], strides = [1, 1]} : vector<16x64xf32> to vector<1x64xf32>
    %9 = vector.extract_strided_slice %4 {offsets = [4, 0], sizes = [1, 64], strides = [1, 1]} : vector<16x64xf32> to vector<1x64xf32>
    %10 = vector.extract_strided_slice %4 {offsets = [5, 0], sizes = [1, 64], strides = [1, 1]} : vector<16x64xf32> to vector<1x64xf32>
    %11 = vector.extract_strided_slice %4 {offsets = [6, 0], sizes = [1, 64], strides = [1, 1]} : vector<16x64xf32> to vector<1x64xf32>
    %12 = vector.extract_strided_slice %4 {offsets = [7, 0], sizes = [1, 64], strides = [1, 1]} : vector<16x64xf32> to vector<1x64xf32>
    %13 = vector.extract_strided_slice %4 {offsets = [8, 0], sizes = [1, 64], strides = [1, 1]} : vector<16x64xf32> to vector<1x64xf32>
    %14 = vector.extract_strided_slice %4 {offsets = [9, 0], sizes = [1, 64], strides = [1, 1]} : vector<16x64xf32> to vector<1x64xf32>
    %15 = vector.extract_strided_slice %4 {offsets = [10, 0], sizes = [1, 64], strides = [1, 1]} : vector<16x64xf32> to vector<1x64xf32>
    %16 = vector.extract_strided_slice %4 {offsets = [11, 0], sizes = [1, 64], strides = [1, 1]} : vector<16x64xf32> to vector<1x64xf32>
    %17 = vector.extract_strided_slice %4 {offsets = [12, 0], sizes = [1, 64], strides = [1, 1]} : vector<16x64xf32> to vector<1x64xf32>
    %18 = vector.extract_strided_slice %4 {offsets = [13, 0], sizes = [1, 64], strides = [1, 1]} : vector<16x64xf32> to vector<1x64xf32>
    %19 = vector.extract_strided_slice %4 {offsets = [14, 0], sizes = [1, 64], strides = [1, 1]} : vector<16x64xf32> to vector<1x64xf32>
    %c0_7 = arith.constant 0 : index
    %c0_8 = arith.constant 0 : index
    %20 = vector.load %arg3[%c0_7, %c0_8] : memref<64x64xbf16, #tpu.memory_space<vmem>>, vector<64x64xbf16>
    %c0_9 = arith.constant 0 : index
    %c0_10 = arith.constant 0 : index
    %21 = vector.load %arg4[%c0_9, %c0_10] : memref<64x64xbf16, #tpu.memory_space<vmem>>, vector<64x64xbf16>
    %c0_11 = arith.constant 0 : index
    %c0_12 = arith.constant 0 : index
    %22 = vector.load %arg5[%c0_11, %c0_12] : memref<64x64xbf16, #tpu.memory_space<vmem>>, vector<64x64xbf16>
    %c0_13 = arith.constant 0 : index
    %c0_14 = arith.constant 0 : index
    %23 = vector.load %arg6[%c0_13, %c0_14] : memref<64x64xbf16, #tpu.memory_space<vmem>>, vector<64x64xbf16>
    %24 = arith.truncf %1 : vector<8x64xf32> to vector<8x64xbf16>
    %cst = arith.constant dense<0.000000e+00> : vector<8x64xf32>
    %25 = tpu.matmul %24, %20, %cst {dimension_numbers = #tpu.dot_dimension_numbers<[1], [0], [0], [1], [0, 0, 1, 1], [], []>} : vector<8x64xbf16>, vector<64x64xbf16>, vector<8x64xf32> -> vector<8x64xf32>
    %26 = vector.broadcast %5 : vector<1x64xf32> to vector<8x64xf32>
    %27 = arith.addf %25, %26 : vector<8x64xf32>
    %cst_15 = arith.constant dense<0.000000e+00> : vector<8x64xf32>
    %28 = tpu.matmul %24, %21, %cst_15 {dimension_numbers = #tpu.dot_dimension_numbers<[1], [0], [0], [1], [0, 0, 1, 1], [], []>} : vector<8x64xbf16>, vector<64x64xbf16>, vector<8x64xf32> -> vector<8x64xf32>
    %29 = vector.broadcast %6 : vector<1x64xf32> to vector<8x64xf32>
    %30 = arith.addf %28, %29 : vector<8x64xf32>
    %cst_16 = arith.constant dense<0.000000e+00> : vector<8x64xf32>
    %31 = tpu.matmul %24, %22, %cst_16 {dimension_numbers = #tpu.dot_dimension_numbers<[1], [0], [0], [1], [0, 0, 1, 1], [], []>} : vector<8x64xbf16>, vector<64x64xbf16>, vector<8x64xf32> -> vector<8x64xf32>
    %32 = vector.broadcast %7 : vector<1x64xf32> to vector<8x64xf32>
    %33 = arith.addf %31, %32 : vector<8x64xf32>
    %34 = arith.truncf %27 : vector<8x64xf32> to vector<8x64xbf16>
    %35 = arith.truncf %30 : vector<8x64xf32> to vector<8x64xbf16>
    %36 = arith.truncf %33 : vector<8x64xf32> to vector<8x64xbf16>
    %37 = tpu.iota {dimensions = array<i32: 0>} : vector<8x8xi32>
    %38 = tpu.iota {dimensions = array<i32: 1>} : vector<8x8xi32>
    %39 = arith.cmpi sgt, %38, %37 : vector<8x8xi32>
    %40 = vector.extract_strided_slice %34 {offsets = [0, 0], sizes = [8, 32], strides = [1, 1]} : vector<8x64xbf16> to vector<8x32xbf16>
    %41 = vector.extract_strided_slice %35 {offsets = [0, 0], sizes = [8, 32], strides = [1, 1]} : vector<8x64xbf16> to vector<8x32xbf16>
    %cst_17 = arith.constant dense<0.000000e+00> : vector<8x8xf32>
    %42 = tpu.matmul %40, %41, %cst_17 {dimension_numbers = #tpu.dot_dimension_numbers<[1], [1], [0], [0], [0, 0, 1, 0], [], []>} : vector<8x32xbf16>, vector<8x32xbf16>, vector<8x8xf32> -> vector<8x8xf32>
    %cst_18 = arith.constant 0.176776692 : f32
    %43 = vector.broadcast %cst_18 : f32 to vector<8x8xf32>
    %44 = arith.mulf %42, %43 : vector<8x8xf32>
    %cst_19 = arith.constant 0xFF800000 : f32
    %45 = vector.broadcast %cst_19 : f32 to vector<8x8xf32>
    %46 = arith.select %39, %45, %44 : vector<8x8xi1>, vector<8x8xf32>
    %cst_20 = arith.constant dense<0xFF800000> : vector<8xf32>
    %47 = vector.multi_reduction <maximumf>, %46, %cst_20 [1] : vector<8x8xf32> to vector<8xf32>
    %48 = vector.shape_cast %47 : vector<8xf32> to vector<8x1xf32>
    %49 = vector.broadcast %48 : vector<8x1xf32> to vector<8x8xf32>
    %50 = arith.subf %46, %49 : vector<8x8xf32>
    %51 = math.exp %50 : vector<8x8xf32>
    %cst_21 = arith.constant dense<0.000000e+00> : vector<8xf32>
    %52 = vector.multi_reduction <add>, %51, %cst_21 [1] : vector<8x8xf32> to vector<8xf32>
    %53 = vector.shape_cast %52 : vector<8xf32> to vector<8x1xf32>
    %54 = tpu.reciprocal %53 {approx = true} : vector<8x1xf32> -> vector<8x1xf32>
    %55 = vector.broadcast %54 : vector<8x1xf32> to vector<8x8xf32>
    %56 = arith.mulf %51, %55 : vector<8x8xf32>
    %57 = arith.truncf %56 : vector<8x8xf32> to vector<8x8xbf16>
    %58 = vector.extract_strided_slice %36 {offsets = [0, 0], sizes = [8, 32], strides = [1, 1]} : vector<8x64xbf16> to vector<8x32xbf16>
    %cst_22 = arith.constant dense<0.000000e+00> : vector<8x32xf32>
    %59 = tpu.matmul %57, %58, %cst_22 {dimension_numbers = #tpu.dot_dimension_numbers<[1], [0], [0], [1], [0, 0, 1, 1], [], []>} : vector<8x8xbf16>, vector<8x32xbf16>, vector<8x32xf32> -> vector<8x32xf32>
    %60 = arith.truncf %59 : vector<8x32xf32> to vector<8x32xbf16>
    %c0_23 = arith.constant 0 : index
    %c0_24 = arith.constant 0 : index
    %61 = vector.load %arg20[%c0_23, %c0_24] : memref<8x64xbf16, #tpu.memory_space<vmem>>, vector<8x32xbf16>
    tpu.vector_store %arg20[%c0_23, %c0_24], %60 {strides = array<i32>} : memref<8x64xbf16, #tpu.memory_space<vmem>>, vector<8x32xbf16>,
    %62 = vector.extract_strided_slice %34 {offsets = [0, 32], sizes = [8, 32], strides = [1, 1]} : vector<8x64xbf16> to vector<8x32xbf16>
    %63 = vector.extract_strided_slice %35 {offsets = [0, 32], sizes = [8, 32], strides = [1, 1]} : vector<8x64xbf16> to vector<8x32xbf16>
    %cst_25 = arith.constant dense<0.000000e+00> : vector<8x8xf32>
    %64 = tpu.matmul %62, %63, %cst_25 {dimension_numbers = #tpu.dot_dimension_numbers<[1], [1], [0], [0], [0, 0, 1, 0], [], []>} : vector<8x32xbf16>, vector<8x32xbf16>, vector<8x8xf32> -> vector<8x8xf32>
    %cst_26 = arith.constant 0.176776692 : f32
    %65 = vector.broadcast %cst_26 : f32 to vector<8x8xf32>
    %66 = arith.mulf %64, %65 : vector<8x8xf32>
    %cst_27 = arith.constant 0xFF800000 : f32
    %67 = vector.broadcast %cst_27 : f32 to vector<8x8xf32>
    %68 = arith.select %39, %67, %66 : vector<8x8xi1>, vector<8x8xf32>
    %cst_28 = arith.constant dense<0xFF800000> : vector<8xf32>
    %69 = vector.multi_reduction <maximumf>, %68, %cst_28 [1] : vector<8x8xf32> to vector<8xf32>
    %70 = vector.shape_cast %69 : vector<8xf32> to vector<8x1xf32>
    %71 = vector.broadcast %70 : vector<8x1xf32> to vector<8x8xf32>
    %72 = arith.subf %68, %71 : vector<8x8xf32>
    %73 = math.exp %72 : vector<8x8xf32>
    %cst_29 = arith.constant dense<0.000000e+00> : vector<8xf32>
    %74 = vector.multi_reduction <add>, %73, %cst_29 [1] : vector<8x8xf32> to vector<8xf32>
    %75 = vector.shape_cast %74 : vector<8xf32> to vector<8x1xf32>
    %76 = tpu.reciprocal %75 {approx = true} : vector<8x1xf32> -> vector<8x1xf32>
    %77 = vector.broadcast %76 : vector<8x1xf32> to vector<8x8xf32>
    %78 = arith.mulf %73, %77 : vector<8x8xf32>
    %79 = arith.truncf %78 : vector<8x8xf32> to vector<8x8xbf16>
    %80 = vector.extract_strided_slice %36 {offsets = [0, 32], sizes = [8, 32], strides = [1, 1]} : vector<8x64xbf16> to vector<8x32xbf16>
    %cst_30 = arith.constant dense<0.000000e+00> : vector<8x32xf32>
    %81 = tpu.matmul %79, %80, %cst_30 {dimension_numbers = #tpu.dot_dimension_numbers<[1], [0], [0], [1], [0, 0, 1, 1], [], []>} : vector<8x8xbf16>, vector<8x32xbf16>, vector<8x32xf32> -> vector<8x32xf32>
    %82 = arith.truncf %81 : vector<8x32xf32> to vector<8x32xbf16>
    %c0_31 = arith.constant 0 : index
    %c32 = arith.constant 32 : index
    %83 = vector.load %arg20[%c0_31, %c32] : memref<8x64xbf16, #tpu.memory_space<vmem>>, vector<8x32xbf16>
    tpu.vector_store %arg20[%c0_31, %c32], %82 {strides = array<i32>} : memref<8x64xbf16, #tpu.memory_space<vmem>>, vector<8x32xbf16>,
    %c0_32 = arith.constant 0 : index
    %c0_33 = arith.constant 0 : index
    %84 = vector.load %arg20[%c0_32, %c0_33] : memref<8x64xbf16, #tpu.memory_space<vmem>>, vector<8x64xbf16>
    %cst_34 = arith.constant dense<0.000000e+00> : vector<8x64xf32>
    %85 = tpu.matmul %84, %23, %cst_34 {dimension_numbers = #tpu.dot_dimension_numbers<[1], [0], [0], [1], [0, 0, 1, 1], [], []>} : vector<8x64xbf16>, vector<64x64xbf16>, vector<8x64xf32> -> vector<8x64xf32>
    %86 = vector.broadcast %8 : vector<1x64xf32> to vector<8x64xf32>
    %87 = arith.addf %85, %86 : vector<8x64xf32>
    %c0_35 = arith.constant 0 : index
    %c0_36 = arith.constant 0 : index
    %c0_37 = arith.constant 0 : index
    %88 = vector.load %arg16[%c0_35, %c0_36, %c0_37] : memref<1x8x64xbf16, #tpu.memory_space<vmem>>, vector<1x8x64xbf16>
    %89 = vector.shape_cast %88 : vector<1x8x64xbf16> to vector<8x64xbf16>
    %90 = vector.shape_cast %35 : vector<8x64xbf16> to vector<1x8x64xbf16>
    tpu.vector_store %arg16[%c0_35, %c0_36, %c0_37], %90 {strides = array<i32>} : memref<1x8x64xbf16, #tpu.memory_space<vmem>>, vector<1x8x64xbf16>,
    %c0_38 = arith.constant 0 : index
    %c0_39 = arith.constant 0 : index
    %c0_40 = arith.constant 0 : index
    %91 = vector.load %arg17[%c0_38, %c0_39, %c0_40] : memref<1x8x64xbf16, #tpu.memory_space<vmem>>, vector<1x8x64xbf16>
    %92 = vector.shape_cast %91 : vector<1x8x64xbf16> to vector<8x64xbf16>
    %93 = vector.shape_cast %36 : vector<8x64xbf16> to vector<1x8x64xbf16>
    tpu.vector_store %arg17[%c0_38, %c0_39, %c0_40], %93 {strides = array<i32>} : memref<1x8x64xbf16, #tpu.memory_space<vmem>>, vector<1x8x64xbf16>,
    %cst_41 = arith.constant dense<0.000000e+00> : vector<8xf32>
    %94 = vector.multi_reduction <add>, %87, %cst_41 [1] : vector<8x64xf32> to vector<8xf32>
    %95 = vector.shape_cast %94 : vector<8xf32> to vector<8x1xf32>
    %cst_42 = arith.constant 6.400000e+01 : f32
    %96 = vector.broadcast %cst_42 : f32 to vector<8x1xf32>
    %97 = arith.divf %95, %96 : vector<8x1xf32>
    %98 = vector.broadcast %97 : vector<8x1xf32> to vector<8x64xf32>
    %99 = arith.subf %87, %98 : vector<8x64xf32>
    %100 = arith.mulf %99, %99 : vector<8x64xf32>
    %cst_43 = arith.constant dense<0.000000e+00> : vector<8xf32>
    %101 = vector.multi_reduction <add>, %100, %cst_43 [1] : vector<8x64xf32> to vector<8xf32>
    %102 = vector.shape_cast %101 : vector<8xf32> to vector<8x1xf32>
    %cst_44 = arith.constant 6.400000e+01 : f32
    %103 = vector.broadcast %cst_44 : f32 to vector<8x1xf32>
    %104 = arith.divf %102, %103 : vector<8x1xf32>
    %105 = vector.broadcast %97 : vector<8x1xf32> to vector<8x64xf32>
    %106 = arith.subf %87, %105 : vector<8x64xf32>
    %cst_45 = arith.constant 9.99999974E-6 : f32
    %107 = vector.broadcast %cst_45 : f32 to vector<8x1xf32>
    %108 = arith.addf %104, %107 : vector<8x1xf32>
    %109 = math.rsqrt %108 : vector<8x1xf32>
    %110 = vector.broadcast %109 : vector<8x1xf32> to vector<8x64xf32>
    %111 = arith.mulf %106, %110 : vector<8x64xf32>
    %112 = vector.broadcast %9 : vector<1x64xf32> to vector<8x64xf32>
    %113 = arith.mulf %111, %112 : vector<8x64xf32>
    %114 = vector.broadcast %10 : vector<1x64xf32> to vector<8x64xf32>
    %115 = arith.addf %113, %114 : vector<8x64xf32>
    %116 = arith.addf %1, %115 : vector<8x64xf32>
    %c0_46 = arith.constant 0 : index
    %c0_47 = arith.constant 0 : index
    %117 = vector.load %arg7[%c0_46, %c0_47] : memref<64x64xbf16, #tpu.memory_space<vmem>>, vector<64x64xbf16>
    %c0_48 = arith.constant 0 : index
    %c0_49 = arith.constant 0 : index
    %118 = vector.load %arg8[%c0_48, %c0_49] : memref<64x64xbf16, #tpu.memory_space<vmem>>, vector<64x64xbf16>
    %c0_50 = arith.constant 0 : index
    %c0_51 = arith.constant 0 : index
    %119 = vector.load %arg9[%c0_50, %c0_51] : memref<64x64xbf16, #tpu.memory_space<vmem>>, vector<64x64xbf16>
    %c0_52 = arith.constant 0 : index
    %c0_53 = arith.constant 0 : index
    %120 = vector.load %arg10[%c0_52, %c0_53] : memref<64x64xbf16, #tpu.memory_space<vmem>>, vector<64x64xbf16>
    %121 = arith.truncf %116 : vector<8x64xf32> to vector<8x64xbf16>
    %122 = arith.truncf %3 : vector<8x64xf32> to vector<8x64xbf16>
    %cst_54 = arith.constant dense<0.000000e+00> : vector<8x64xf32>
    %123 = tpu.matmul %121, %117, %cst_54 {dimension_numbers = #tpu.dot_dimension_numbers<[1], [0], [0], [1], [0, 0, 1, 1], [], []>} : vector<8x64xbf16>, vector<64x64xbf16>, vector<8x64xf32> -> vector<8x64xf32>
    %124 = vector.broadcast %11 : vector<1x64xf32> to vector<8x64xf32>
    %125 = arith.addf %123, %124 : vector<8x64xf32>
    %cst_55 = arith.constant dense<0.000000e+00> : vector<8x64xf32>
    %126 = tpu.matmul %122, %118, %cst_55 {dimension_numbers = #tpu.dot_dimension_numbers<[1], [0], [0], [1], [0, 0, 1, 1], [], []>} : vector<8x64xbf16>, vector<64x64xbf16>, vector<8x64xf32> -> vector<8x64xf32>
    %127 = vector.broadcast %12 : vector<1x64xf32> to vector<8x64xf32>
    %128 = arith.addf %126, %127 : vector<8x64xf32>
    %cst_56 = arith.constant dense<0.000000e+00> : vector<8x64xf32>
    %129 = tpu.matmul %122, %119, %cst_56 {dimension_numbers = #tpu.dot_dimension_numbers<[1], [0], [0], [1], [0, 0, 1, 1], [], []>} : vector<8x64xbf16>, vector<64x64xbf16>, vector<8x64xf32> -> vector<8x64xf32>
    %130 = vector.broadcast %13 : vector<1x64xf32> to vector<8x64xf32>
    %131 = arith.addf %129, %130 : vector<8x64xf32>
    %132 = arith.truncf %125 : vector<8x64xf32> to vector<8x64xbf16>
    %133 = arith.truncf %128 : vector<8x64xf32> to vector<8x64xbf16>
    %134 = arith.truncf %131 : vector<8x64xf32> to vector<8x64xbf16>
    %135 = vector.extract_strided_slice %132 {offsets = [0, 0], sizes = [8, 32], strides = [1, 1]} : vector<8x64xbf16> to vector<8x32xbf16>
    %136 = vector.extract_strided_slice %133 {offsets = [0, 0], sizes = [8, 32], strides = [1, 1]} : vector<8x64xbf16> to vector<8x32xbf16>
    %cst_57 = arith.constant dense<0.000000e+00> : vector<8x8xf32>
    %137 = tpu.matmul %135, %136, %cst_57 {dimension_numbers = #tpu.dot_dimension_numbers<[1], [1], [0], [0], [0, 0, 1, 0], [], []>} : vector<8x32xbf16>, vector<8x32xbf16>, vector<8x8xf32> -> vector<8x8xf32>
    %cst_58 = arith.constant 0.176776692 : f32
    %138 = vector.broadcast %cst_58 : f32 to vector<8x8xf32>
    %139 = arith.mulf %137, %138 : vector<8x8xf32>
    %cst_59 = arith.constant dense<0xFF800000> : vector<8xf32>
    %140 = vector.multi_reduction <maximumf>, %139, %cst_59 [1] : vector<8x8xf32> to vector<8xf32>
    %141 = vector.shape_cast %140 : vector<8xf32> to vector<8x1xf32>
    %142 = vector.broadcast %141 : vector<8x1xf32> to vector<8x8xf32>
    %143 = arith.subf %139, %142 : vector<8x8xf32>
    %144 = math.exp %143 : vector<8x8xf32>
    %cst_60 = arith.constant dense<0.000000e+00> : vector<8xf32>
    %145 = vector.multi_reduction <add>, %144, %cst_60 [1] : vector<8x8xf32> to vector<8xf32>
    %146 = vector.shape_cast %145 : vector<8xf32> to vector<8x1xf32>
    %147 = tpu.reciprocal %146 {approx = true} : vector<8x1xf32> -> vector<8x1xf32>
    %148 = vector.broadcast %147 : vector<8x1xf32> to vector<8x8xf32>
    %149 = arith.mulf %144, %148 : vector<8x8xf32>
    %150 = arith.truncf %149 : vector<8x8xf32> to vector<8x8xbf16>
    %151 = vector.extract_strided_slice %134 {offsets = [0, 0], sizes = [8, 32], strides = [1, 1]} : vector<8x64xbf16> to vector<8x32xbf16>
    %cst_61 = arith.constant dense<0.000000e+00> : vector<8x32xf32>
    %152 = tpu.matmul %150, %151, %cst_61 {dimension_numbers = #tpu.dot_dimension_numbers<[1], [0], [0], [1], [0, 0, 1, 1], [], []>} : vector<8x8xbf16>, vector<8x32xbf16>, vector<8x32xf32> -> vector<8x32xf32>
    %153 = arith.truncf %152 : vector<8x32xf32> to vector<8x32xbf16>
    %c0_62 = arith.constant 0 : index
    %c0_63 = arith.constant 0 : index
    %154 = vector.load %arg20[%c0_62, %c0_63] : memref<8x64xbf16, #tpu.memory_space<vmem>>, vector<8x32xbf16>
    tpu.vector_store %arg20[%c0_62, %c0_63], %153 {strides = array<i32>} : memref<8x64xbf16, #tpu.memory_space<vmem>>, vector<8x32xbf16>,
    %155 = vector.extract_strided_slice %132 {offsets = [0, 32], sizes = [8, 32], strides = [1, 1]} : vector<8x64xbf16> to vector<8x32xbf16>
    %156 = vector.extract_strided_slice %133 {offsets = [0, 32], sizes = [8, 32], strides = [1, 1]} : vector<8x64xbf16> to vector<8x32xbf16>
    %cst_64 = arith.constant dense<0.000000e+00> : vector<8x8xf32>
    %157 = tpu.matmul %155, %156, %cst_64 {dimension_numbers = #tpu.dot_dimension_numbers<[1], [1], [0], [0], [0, 0, 1, 0], [], []>} : vector<8x32xbf16>, vector<8x32xbf16>, vector<8x8xf32> -> vector<8x8xf32>
    %cst_65 = arith.constant 0.176776692 : f32
    %158 = vector.broadcast %cst_65 : f32 to vector<8x8xf32>
    %159 = arith.mulf %157, %158 : vector<8x8xf32>
    %cst_66 = arith.constant dense<0xFF800000> : vector<8xf32>
    %160 = vector.multi_reduction <maximumf>, %159, %cst_66 [1] : vector<8x8xf32> to vector<8xf32>
    %161 = vector.shape_cast %160 : vector<8xf32> to vector<8x1xf32>
    %162 = vector.broadcast %161 : vector<8x1xf32> to vector<8x8xf32>
    %163 = arith.subf %159, %162 : vector<8x8xf32>
    %164 = math.exp %163 : vector<8x8xf32>
    %cst_67 = arith.constant dense<0.000000e+00> : vector<8xf32>
    %165 = vector.multi_reduction <add>, %164, %cst_67 [1] : vector<8x8xf32> to vector<8xf32>
    %166 = vector.shape_cast %165 : vector<8xf32> to vector<8x1xf32>
    %167 = tpu.reciprocal %166 {approx = true} : vector<8x1xf32> -> vector<8x1xf32>
    %168 = vector.broadcast %167 : vector<8x1xf32> to vector<8x8xf32>
    %169 = arith.mulf %164, %168 : vector<8x8xf32>
    %170 = arith.truncf %169 : vector<8x8xf32> to vector<8x8xbf16>
    %171 = vector.extract_strided_slice %134 {offsets = [0, 32], sizes = [8, 32], strides = [1, 1]} : vector<8x64xbf16> to vector<8x32xbf16>
    %cst_68 = arith.constant dense<0.000000e+00> : vector<8x32xf32>
    %172 = tpu.matmul %170, %171, %cst_68 {dimension_numbers = #tpu.dot_dimension_numbers<[1], [0], [0], [1], [0, 0, 1, 1], [], []>} : vector<8x8xbf16>, vector<8x32xbf16>, vector<8x32xf32> -> vector<8x32xf32>
    %173 = arith.truncf %172 : vector<8x32xf32> to vector<8x32xbf16>
    %c0_69 = arith.constant 0 : index
    %c32_70 = arith.constant 32 : index
    %174 = vector.load %arg20[%c0_69, %c32_70] : memref<8x64xbf16, #tpu.memory_space<vmem>>, vector<8x32xbf16>
    tpu.vector_store %arg20[%c0_69, %c32_70], %173 {strides = array<i32>} : memref<8x64xbf16, #tpu.memory_space<vmem>>, vector<8x32xbf16>,
    %c0_71 = arith.constant 0 : index
    %c0_72 = arith.constant 0 : index
    %175 = vector.load %arg20[%c0_71, %c0_72] : memref<8x64xbf16, #tpu.memory_space<vmem>>, vector<8x64xbf16>
    %cst_73 = arith.constant dense<0.000000e+00> : vector<8x64xf32>
    %176 = tpu.matmul %175, %120, %cst_73 {dimension_numbers = #tpu.dot_dimension_numbers<[1], [0], [0], [1], [0, 0, 1, 1], [], []>} : vector<8x64xbf16>, vector<64x64xbf16>, vector<8x64xf32> -> vector<8x64xf32>
    %177 = vector.broadcast %14 : vector<1x64xf32> to vector<8x64xf32>
    %178 = arith.addf %176, %177 : vector<8x64xf32>
    %c0_74 = arith.constant 0 : index
    %c0_75 = arith.constant 0 : index
    %c0_76 = arith.constant 0 : index
    %179 = vector.load %arg18[%c0_74, %c0_75, %c0_76] : memref<1x8x64xbf16, #tpu.memory_space<vmem>>, vector<1x8x64xbf16>
    %180 = vector.shape_cast %179 : vector<1x8x64xbf16> to vector<8x64xbf16>
    %181 = vector.shape_cast %133 : vector<8x64xbf16> to vector<1x8x64xbf16>
    tpu.vector_store %arg18[%c0_74, %c0_75, %c0_76], %181 {strides = array<i32>} : memref<1x8x64xbf16, #tpu.memory_space<vmem>>, vector<1x8x64xbf16>,
    %c0_77 = arith.constant 0 : index
    %c0_78 = arith.constant 0 : index
    %c0_79 = arith.constant 0 : index
    %182 = vector.load %arg19[%c0_77, %c0_78, %c0_79] : memref<1x8x64xbf16, #tpu.memory_space<vmem>>, vector<1x8x64xbf16>
    %183 = vector.shape_cast %182 : vector<1x8x64xbf16> to vector<8x64xbf16>
    %184 = vector.shape_cast %134 : vector<8x64xbf16> to vector<1x8x64xbf16>
    tpu.vector_store %arg19[%c0_77, %c0_78, %c0_79], %184 {strides = array<i32>} : memref<1x8x64xbf16, #tpu.memory_space<vmem>>, vector<1x8x64xbf16>,
    %cst_80 = arith.constant dense<0.000000e+00> : vector<8xf32>
    %185 = vector.multi_reduction <add>, %178, %cst_80 [1] : vector<8x64xf32> to vector<8xf32>
    %186 = vector.shape_cast %185 : vector<8xf32> to vector<8x1xf32>
    %cst_81 = arith.constant 6.400000e+01 : f32
    %187 = vector.broadcast %cst_81 : f32 to vector<8x1xf32>
    %188 = arith.divf %186, %187 : vector<8x1xf32>
    %189 = vector.broadcast %188 : vector<8x1xf32> to vector<8x64xf32>
    %190 = arith.subf %178, %189 : vector<8x64xf32>
    %191 = arith.mulf %190, %190 : vector<8x64xf32>
    %cst_82 = arith.constant dense<0.000000e+00> : vector<8xf32>
    %192 = vector.multi_reduction <add>, %191, %cst_82 [1] : vector<8x64xf32> to vector<8xf32>
    %193 = vector.shape_cast %192 : vector<8xf32> to vector<8x1xf32>
    %cst_83 = arith.constant 6.400000e+01 : f32
    %194 = vector.broadcast %cst_83 : f32 to vector<8x1xf32>
    %195 = arith.divf %193, %194 : vector<8x1xf32>
    %196 = vector.broadcast %188 : vector<8x1xf32> to vector<8x64xf32>
    %197 = arith.subf %178, %196 : vector<8x64xf32>
    %cst_84 = arith.constant 9.99999974E-6 : f32
    %198 = vector.broadcast %cst_84 : f32 to vector<8x1xf32>
    %199 = arith.addf %195, %198 : vector<8x1xf32>
    %200 = math.rsqrt %199 : vector<8x1xf32>
    %201 = vector.broadcast %200 : vector<8x1xf32> to vector<8x64xf32>
    %202 = arith.mulf %197, %201 : vector<8x64xf32>
    %203 = vector.broadcast %15 : vector<1x64xf32> to vector<8x64xf32>
    %204 = arith.mulf %202, %203 : vector<8x64xf32>
    %205 = vector.broadcast %16 : vector<1x64xf32> to vector<8x64xf32>
    %206 = arith.addf %204, %205 : vector<8x64xf32>
    %207 = arith.addf %116, %206 : vector<8x64xf32>
    %208 = arith.truncf %207 : vector<8x64xf32> to vector<8x64xbf16>
    %c0_85 = arith.constant 0 : index
    %c0_86 = arith.constant 0 : index
    %209 = vector.load %arg11[%c0_85, %c0_86] : memref<64x128xbf16, #tpu.memory_space<vmem>>, vector<64x128xbf16>
    %cst_87 = arith.constant dense<0.000000e+00> : vector<8x128xf32>
    %210 = tpu.matmul %208, %209, %cst_87 {dimension_numbers = #tpu.dot_dimension_numbers<[1], [0], [0], [1], [0, 0, 1, 1], [], []>} : vector<8x64xbf16>, vector<64x128xbf16>, vector<8x128xf32> -> vector<8x128xf32>
    %c0_88 = arith.constant 0 : index
    %c0_89 = arith.constant 0 : index
    %211 = vector.load %arg14[%c0_88, %c0_89] : memref<1x128xf32, #tpu.memory_space<vmem>>, vector<1x128xf32>
    %212 = vector.broadcast %211 : vector<1x128xf32> to vector<8x128xf32>
    %213 = arith.addf %210, %212 : vector<8x128xf32>
    %cst_90 = arith.constant 0.000000e+00 : f32
    %214 = vector.broadcast %cst_90 : f32 to vector<8x128xf32>
    %215 = arith.maximumf %213, %214 : vector<8x128xf32>
    %216 = arith.truncf %215 : vector<8x128xf32> to vector<8x128xbf16>
    %c0_91 = arith.constant 0 : index
    %c0_92 = arith.constant 0 : index
    %217 = vector.load %arg12[%c0_91, %c0_92] : memref<128x64xbf16, #tpu.memory_space<vmem>>, vector<128x64xbf16>
    %cst_93 = arith.constant dense<0.000000e+00> : vector<8x64xf32>
    %218 = tpu.matmul %216, %217, %cst_93 {dimension_numbers = #tpu.dot_dimension_numbers<[1], [0], [0], [1], [0, 0, 1, 1], [], []>} : vector<8x128xbf16>, vector<128x64xbf16>, vector<8x64xf32> -> vector<8x64xf32>
    %219 = vector.broadcast %17 : vector<1x64xf32> to vector<8x64xf32>
    %220 = arith.addf %218, %219 : vector<8x64xf32>
    %cst_94 = arith.constant dense<0.000000e+00> : vector<8xf32>
    %221 = vector.multi_reduction <add>, %220, %cst_94 [1] : vector<8x64xf32> to vector<8xf32>
    %222 = vector.shape_cast %221 : vector<8xf32> to vector<8x1xf32>
    %cst_95 = arith.constant 6.400000e+01 : f32
    %223 = vector.broadcast %cst_95 : f32 to vector<8x1xf32>
    %224 = arith.divf %222, %223 : vector<8x1xf32>
    %225 = vector.broadcast %224 : vector<8x1xf32> to vector<8x64xf32>
    %226 = arith.subf %220, %225 : vector<8x64xf32>
    %227 = arith.mulf %226, %226 : vector<8x64xf32>
    %cst_96 = arith.constant dense<0.000000e+00> : vector<8xf32>
    %228 = vector.multi_reduction <add>, %227, %cst_96 [1] : vector<8x64xf32> to vector<8xf32>
    %229 = vector.shape_cast %228 : vector<8xf32> to vector<8x1xf32>
    %cst_97 = arith.constant 6.400000e+01 : f32
    %230 = vector.broadcast %cst_97 : f32 to vector<8x1xf32>
    %231 = arith.divf %229, %230 : vector<8x1xf32>
    %232 = vector.broadcast %224 : vector<8x1xf32> to vector<8x64xf32>
    %233 = arith.subf %220, %232 : vector<8x64xf32>
    %cst_98 = arith.constant 9.99999974E-6 : f32
    %234 = vector.broadcast %cst_98 : f32 to vector<8x1xf32>
    %235 = arith.addf %231, %234 : vector<8x1xf32>
    %236 = math.rsqrt %235 : vector<8x1xf32>
    %237 = vector.broadcast %236 : vector<8x1xf32> to vector<8x64xf32>
    %238 = arith.mulf %233, %237 : vector<8x64xf32>
    %239 = vector.broadcast %18 : vector<1x64xf32> to vector<8x64xf32>
    %240 = arith.mulf %238, %239 : vector<8x64xf32>
    %241 = vector.broadcast %19 : vector<1x64xf32> to vector<8x64xf32>
    %242 = arith.addf %240, %241 : vector<8x64xf32>
    %243 = arith.addf %207, %242 : vector<8x64xf32>
    %c0_99 = arith.constant 0 : index
    %c0_100 = arith.constant 0 : index
    %c0_101 = arith.constant 0 : index
    %244 = vector.load %arg15[%c0_99, %c0_100, %c0_101] : memref<1x8x64xf32, #tpu.memory_space<vmem>>, vector<1x8x64xf32>
    %245 = vector.shape_cast %244 : vector<1x8x64xf32> to vector<8x64xf32>
    %246 = vector.shape_cast %243 : vector<8x64xf32> to vector<1x8x64xf32>
    tpu.vector_store %arg15[%c0_99, %c0_100, %c0_101], %246 {strides = array<i32>} : memref<1x8x64xf32, #tpu.memory_space<vmem>>, vector<1x8x64xf32>,
    return
  }
  func.func @transform_0(%arg0: i32) -> (i32, i32, i32) {
    %c0_i32 = arith.constant 0 : i32
    %c0_i32_0 = arith.constant 0 : i32
    %c0_i32_1 = arith.constant 0 : i32
    return %arg0, %c0_i32, %c0_i32_0 : i32, i32, i32
  }
  func.func @transform_1(%arg0: i32) -> (i32, i32, i32) {
    %c0_i32 = arith.constant 0 : i32
    %c0_i32_0 = arith.constant 0 : i32
    %c0_i32_1 = arith.constant 0 : i32
    return %arg0, %c0_i32, %c0_i32_0 : i32, i32, i32
  }
  func.func @transform_2(%arg0: i32) -> (i32, i32) {
    %c0_i32 = arith.constant 0 : i32
    %c0_i32_0 = arith.constant 0 : i32
    %c0_i32_1 = arith.constant 0 : i32
    return %c0_i32, %c0_i32_0 : i32, i32
  }
  func.func @transform_3(%arg0: i32) -> (i32, i32) {
    %c0_i32 = arith.constant 0 : i32
    %c0_i32_0 = arith.constant 0 : i32
    %c0_i32_1 = arith.constant 0 : i32
    return %c0_i32, %c0_i32_0 : i32, i32
  }
  func.func @transform_4(%arg0: i32) -> (i32, i32) {
    %c0_i32 = arith.constant 0 : i32
    %c0_i32_0 = arith.constant 0 : i32
    %c0_i32_1 = arith.constant 0 : i32
    return %c0_i32, %c0_i32_0 : i32, i32
  }
  func.func @transform_5(%arg0: i32) -> (i32, i32) {
    %c0_i32 = arith.constant 0 : i32
    %c0_i32_0 = arith.constant 0 : i32
    %c0_i32_1 = arith.constant 0 : i32
    return %c0_i32, %c0_i32_0 : i32, i32
  }
  func.func @transform_6(%arg0: i32) -> (i32, i32) {
    %c0_i32 = arith.constant 0 : i32
    %c0_i32_0 = arith.constant 0 : i32
    %c0_i32_1 = arith.constant 0 : i32
    return %c0_i32, %c0_i32_0 : i32, i32
  }
  func.func @transform_7(%arg0: i32) -> (i32, i32) {
    %c0_i32 = arith.constant 0 : i32
    %c0_i32_0 = arith.constant 0 : i32
    %c0_i32_1 = arith.constant 0 : i32
    return %c0_i32, %c0_i32_0 : i32, i32
  }
  func.func @transform_8(%arg0: i32) -> (i32, i32) {
    %c0_i32 = arith.constant 0 : i32
    %c0_i32_0 = arith.constant 0 : i32
    %c0_i32_1 = arith.constant 0 : i32
    return %c0_i32, %c0_i32_0 : i32, i32
  }
  func.func @transform_9(%arg0: i32) -> (i32, i32) {
    %c0_i32 = arith.constant 0 : i32
    %c0_i32_0 = arith.constant 0 : i32
    %c0_i32_1 = arith.constant 0 : i32
    return %c0_i32, %c0_i32_0 : i32, i32
  }
  func.func @transform_10(%arg0: i32) -> (i32, i32) {
    %c0_i32 = arith.constant 0 : i32
    %c0_i32_0 = arith.constant 0 : i32
    %c0_i32_1 = arith.constant 0 : i32
    return %c0_i32, %c0_i32_0 : i32, i32
  }
  func.func @transform_11(%arg0: i32) -> (i32, i32) {
    %c0_i32 = arith.constant 0 : i32
    %c0_i32_0 = arith.constant 0 : i32
    %c0_i32_1 = arith.constant 0 : i32
    return %c0_i32, %c0_i32_0 : i32, i32
  }
  func.func @transform_12(%arg0: i32) -> (i32, i32) {
    %c0_i32 = arith.constant 0 : i32
    %c0_i32_0 = arith.constant 0 : i32
    %c0_i32_1 = arith.constant 0 : i32
    return %c0_i32, %c0_i32_0 : i32, i32
  }
  func.func @transform_13(%arg0: i32) -> (i32, i32) {
    %c0_i32 = arith.constant 0 : i32
    %c0_i32_0 = arith.constant 0 : i32
    %c0_i32_1 = arith.constant 0 : i32
    return %c0_i32, %c0_i32_0 : i32, i32
  }
  func.func @transform_14(%arg0: i32) -> (i32, i32, i32) {
    %c0_i32 = arith.constant 0 : i32
    %c0_i32_0 = arith.constant 0 : i32
    %c0_i32_1 = arith.constant 0 : i32
    return %arg0, %c0_i32, %c0_i32_0 : i32, i32, i32
  }
  func.func @transform_15(%arg0: i32) -> (i32, i32, i32) {
    %c0_i32 = arith.constant 0 : i32
    %c0_i32_0 = arith.constant 0 : i32
    %c0_i32_1 = arith.constant 0 : i32
    return %arg0, %c0_i32, %c0_i32_0 : i32, i32, i32
  }
  func.func @transform_16(%arg0: i32) -> (i32, i32, i32) {
    %c0_i32 = arith.constant 0 : i32
    %c0_i32_0 = arith.constant 0 : i32
    %c0_i32_1 = arith.constant 0 : i32
    return %arg0, %c0_i32, %c0_i32_0 : i32, i32, i32
  }
  func.func @transform_17(%arg0: i32) -> (i32, i32, i32) {
    %c0_i32 = arith.constant 0 : i32
    %c0_i32_0 = arith.constant 0 : i32
    %c0_i32_1 = arith.constant 0 : i32
    return %arg0, %c0_i32, %c0_i32_0 : i32, i32, i32
  }
  func.func @transform_18(%arg0: i32) -> (i32, i32, i32) {
    %c0_i32 = arith.constant 0 : i32
    %c0_i32_0 = arith.constant 0 : i32
    %c0_i32_1 = arith.constant 0 : i32
    return %arg0, %c0_i32, %c0_i32_0 : i32, i32, i32
  }
}

module attributes {stable_mosaic.version = 11 : i64} {
  func.func @decoder_layer_kernel(%arg0: i32, %arg1: memref<1x8x64xf32, #tpu.memory_space<vmem>>, %arg2: memref<1x8x64xf32, #tpu.memory_space<vmem>>, %arg3: memref<64x64xbf16, #tpu.memory_space<vmem>>, %arg4: memref<64x64xbf16, #tpu.memory_space<vmem>>, %arg5: memref<64x64xbf16, #tpu.memory_space<vmem>>, %arg6: memref<64x64xbf16, #tpu.memory_space<vmem>>, %arg7: memref<64x64xbf16, #tpu.memory_space<vmem>>, %arg8: memref<64x64xbf16, #tpu.memory_space<vmem>>, %arg9: memref<64x64xbf16, #tpu.memory_space<vmem>>, %arg10: memref<64x64xbf16, #tpu.memory_space<vmem>>, %arg11: memref<64x128xbf16, #tpu.memory_space<vmem>>, %arg12: memref<128x64xbf16, #tpu.memory_space<vmem>>, %arg13: memref<16x64xf32, #tpu.memory_space<vmem>>, %arg14: memref<1x128xf32, #tpu.memory_space<vmem>>, %arg15: memref<1x8x64xf32, #tpu.memory_space<vmem>>, %arg16: memref<1x8x64xbf16, #tpu.memory_space<vmem>>, %arg17: memref<1x8x64xbf16, #tpu.memory_space<vmem>>, %arg18: memref<1x8x64xbf16, #tpu.memory_space<vmem>>, %arg19: memref<1x8x64xbf16, #tpu.memory_space<vmem>>, %arg20: memref<8x64xbf16, #tpu.memory_space<vmem>>) attributes {dimension_semantics = [#tpu.dimension_semantics<parallel>], iteration_bounds = array<i64: 2>, scalar_prefetch = 0 : i64, scratch_operands = 1 : i64, tpu.core_type = #tpu.core_type<tc>, window_params = [{transform_indices = @transform_0, window_bounds = array<i64: 1, 8, 64>}, {transform_indices = @transform_1, window_bounds = array<i64: 1, 8, 64>}, {pipeline_mode = #tpu.pipeline_mode<synchronous>, transform_indices = @transform_2, window_bounds = array<i64: 64, 64>}, {pipeline_mode = #tpu.pipeline_mode<synchronous>, transform_indices = @transform_3, window_bounds = array<i64: 64, 64>}, {pipeline_mode = #tpu.pipeline_mode<synchronous>, transform_indices = @transform_4, window_bounds = array<i64: 64, 64>}, {pipeline_mode = #tpu.pipeline_mode<synchronous>, transform_indices = @transform_5, window_bounds = array<i64: 64, 64>}, {pipeline_mode = #tpu.pipeline_mode<synchronous>, transform_indices = @transform_6, window_bounds = array<i64: 64, 64>}, {pipeline_mode = #tpu.pipeline_mode<synchronous>, transform_indices = @transform_7, window_bounds = array<i64: 64, 64>}, {pipeline_mode = #tpu.pipeline_mode<synchronous>, transform_indices = @transform_8, window_bounds = array<i64: 64, 64>}, {pipeline_mode = #tpu.pipeline_mode<synchronous>, transform_indices = @transform_9, window_bounds = array<i64: 64, 64>}, {pipeline_mode = #tpu.pipeline_mode<synchronous>, transform_indices = @transform_10, window_bounds = array<i64: 64, 128>}, {pipeline_mode = #tpu.pipeline_mode<synchronous>, transform_indices = @transform_11, window_bounds = array<i64: 128, 64>}, {pipeline_mode = #tpu.pipeline_mode<synchronous>, transform_indices = @transform_12, window_bounds = array<i64: 16, 64>}, {pipeline_mode = #tpu.pipeline_mode<synchronous>, transform_indices = @transform_13, window_bounds = array<i64: 1, 128>}, {transform_indices = @transform_14, window_bounds = array<i64: 1, 8, 64>}, {transform_indices = @transform_15, window_bounds = array<i64: 1, 8, 64>}, {transform_indices = @transform_16, window_bounds = array<i64: 1, 8, 64>}, {transform_indices = @transform_17, window_bounds = array<i64: 1, 8, 64>}, {transform_indices = @transform_18, window_bounds = array<i64: 1, 8, 64>}]} {
    %c0 = arith.constant 0 : index
    %c0_0 = arith.constant 0 : index
    %c0_1 = arith.constant 0 : index
    %0 = vector.load %arg1[%c0, %c0_0, %c0_1] : memref<1x8x64xf32, #tpu.memory_space<vmem>>, vector<1x8x64xf32>
    %1 = vector.shape_cast %0 : vector<1x8x64xf32> to vector<8x64xf32>
    %c0_2 = arith.constant 0 : index
    %c0_3 = arith.constant 0 : index
    %c0_4 = arith.constant 0 : index
    %2 = vector.load %arg2[%c0_2, %c0_3, %c0_4] : memref<1x8x64xf32, #tpu.memory_space<vmem>>, vector<1x8x64xf32>
    %3 = vector.shape_cast %2 : vector<1x8x64xf32> to vector<8x64xf32>
    %c0_5 = arith.constant 0 : index
    %c0_6 = arith.constant 0 : index
    %4 = vector.load %arg13[%c0_5, %c0_6] : memref<16x64xf32, #tpu.memory_space<vmem>>, vector<16x64xf32>
    %5 = vector.extract_strided_slice %4 {offsets = [0, 0], sizes = [1, 64], strides = [1, 1]} : vector<16x64xf32> to vector<1x64xf32>
    %6 = vector.extract_strided_slice %4 {offsets = [1, 0], sizes = [1, 64], strides = [1, 1]} : vector<16x64xf32> to vector<1x64xf32>
    %7 = vector.extract_strided_slice %4 {offsets = [2, 0], sizes = [1, 64], strides = [1, 1]} : vector<16x64xf32> to vector<1x64xf32>
    %8 = vector.extract_strided_slice %4 {offsets = [3, 0], sizes = [1, 64], strides = [1, 1]} : vector<16x64xf32> to vector<1x64xf32>
    %9 = vector.extract_strided_slice %4 {offsets = [4, 0], sizes = [1, 64], strides = [1, 1]} : vector<16x64xf32> to vector<1x64xf32>
    %10 = vector.extract_strided_slice %4 {offsets = [5, 0], sizes = [1, 64], strides = [1, 1]} : vector<16x64xf32> to vector<1x64xf32>
    %11 = vector.extract_strided_slice %4 {offsets = [6, 0], sizes = [1, 64], strides = [1, 1]} : vector<16x64xf32> to vector<1x64xf32>
    %12 = vector.extract_strided_slice %4 {offsets = [7, 0], sizes = [1, 64], strides = [1, 1]} : vector<16x64xf32> to vector<1x64xf32>
    %13 = vector.extract_strided_slice %4 {offsets = [8, 0], sizes = [1, 64], strides = [1, 1]} : vector<16x64xf32> to vector<1x64xf32>
    %14 = vector.extract_strided_slice %4 {offsets = [9, 0], sizes = [1, 64], strides = [1, 1]} : vector<16x64xf32> to vector<1x64xf32>
    %15 = vector.extract_strided_slice %4 {offsets = [10, 0], sizes = [1, 64], strides = [1, 1]} : vector<16x64xf32> to vector<1x64xf32>
    %16 = vector.extract_strided_slice %4 {offsets = [11, 0], sizes = [1, 64], strides = [1, 1]} : vector<16x64xf32> to vector<1x64xf32>
    %17 = vector.extract_strided_slice %4 {offsets = [12, 0], sizes = [1, 64], strides = [1, 1]} : vector<16x64xf32> to vector<1x64xf32>
    %18 = vector.extract_strided_slice %4 {offsets = [13, 0], sizes = [1, 64], strides = [1, 1]} : vector<16x64xf32> to vector<1x64xf32>
    %19 = vector.extract_strided_slice %4 {offsets = [14, 0], sizes = [1, 64], strides = [1, 1]} : vector<16x64xf32> to vector<1x64xf32>
    %c0_7 = arith.constant 0 : index
    %c0_8 = arith.constant 0 : index
    %20 = vector.load %arg3[%c0_7, %c0_8] : memref<64x64xbf16, #tpu.memory_space<vmem>>, vector<64x64xbf16>
    %c0_9 = arith.constant 0 : index
    %c0_10 = arith.constant 0 : index
    %21 = vector.load %arg4[%c0_9, %c0_10] : memref<64x64xbf16, #tpu.memory_space<vmem>>, vector<64x64xbf16>
    %c0_11 = arith.constant 0 : index
    %c0_12 = arith.constant 0 : index
    %22 = vector.load %arg5[%c0_11, %c0_12] : memref<64x64xbf16, #tpu.memory_space<vmem>>, vector<64x64xbf16>
    %c0_13 = arith.constant 0 : index
    %c0_14 = arith.constant 0 : index
    %23 = vector.load %arg6[%c0_13, %c0_14] : memref<64x64xbf16, #tpu.memory_space<vmem>>, vector<64x64xbf16>
    %24 = arith.truncf %1 : vector<8x64xf32> to vector<8x64xbf16>
    %cst = arith.constant dense<0.000000e+00> : vector<8x64xf32>
    %25 = tpu.matmul %24, %20, %cst {dimension_numbers = #tpu.dot_dimension_numbers<[1], [0], [0], [1], [0, 0, 1, 1], [], []>} : vector<8x64xbf16>, vector<64x64xbf16>, vector<8x64xf32> -> vector<8x64xf32>
    %26 = vector.broadcast %5 : vector<1x64xf32> to vector<8x64xf32>
    %27 = arith.addf %25, %26 : vector<8x64xf32>
    %cst_15 = arith.constant dense<0.000000e+00> : vector<8x64xf32>
    %28 = tpu.matmul %24, %21, %cst_15 {dimension_numbers = #tpu.dot_dimension_numbers<[1], [0], [0], [1], [0, 0, 1, 1], [], []>} : vector<8x64xbf16>, vector<64x64xbf16>, vector<8x64xf32> -> vector<8x64xf32>
    %29 = vector.broadcast %6 : vector<1x64xf32> to vector<8x64xf32>
    %30 = arith.addf %28, %29 : vector<8x64xf32>
    %cst_16 = arith.constant dense<0.000000e+00> : vector<8x64xf32>
    %31 = tpu.matmul %24, %22, %cst_16 {dimension_numbers = #tpu.dot_dimension_numbers<[1], [0], [0], [1], [0, 0, 1, 1], [], []>} : vector<8x64xbf16>, vector<64x64xbf16>, vector<8x64xf32> -> vector<8x64xf32>
    %32 = vector.broadcast %7 : vector<1x64xf32> to vector<8x64xf32>
    %33 = arith.addf %31, %32 : vector<8x64xf32>
    %34 = arith.truncf %27 : vector<8x64xf32> to vector<8x64xbf16>
    %35 = arith.truncf %30 : vector<8x64xf32> to vector<8x64xbf16>
    %36 = arith.truncf %33 : vector<8x64xf32> to vector<8x64xbf16>
    %37 = tpu.iota {dimensions = array<i32: 0>} : vector<8x8xi32>
    %38 = tpu.iota {dimensions = array<i32: 1>} : vector<8x8xi32>
    %39 = arith.cmpi sgt, %38, %37 : vector<8x8xi32>
    %40 = vector.extract_strided_slice %34 {offsets = [0, 0], sizes = [8, 32], strides = [1, 1]} : vector<8x64xbf16> to vector<8x32xbf16>
    %41 = vector.extract_strided_slice %35 {offsets = [0, 0], sizes = [8, 32], strides = [1, 1]} : vector<8x64xbf16> to vector<8x32xbf16>
    %cst_17 = arith.constant dense<0.000000e+00> : vector<8x8xf32>
    %42 = tpu.matmul %40, %41, %cst_17 {dimension_numbers = #tpu.dot_dimension_numbers<[1], [1], [0], [0], [0, 0, 1, 0], [], []>} : vector<8x32xbf16>, vector<8x32xbf16>, vector<8x8xf32> -> vector<8x8xf32>
    %cst_18 = arith.constant 0.176776692 : f32
    %43 = vector.broadcast %cst_18 : f32 to vector<8x8xf32>
    %44 = arith.mulf %42, %43 : vector<8x8xf32>
    %cst_19 = arith.constant 0xFF800000 : f32
    %45 = vector.broadcast %cst_19 : f32 to vector<8x8xf32>
    %46 = arith.select %39, %45, %44 : vector<8x8xi1>, vector<8x8xf32>
    %cst_20 = arith.constant dense<0xFF800000> : vector<8xf32>
    %47 = vector.multi_reduction <maximumf>, %46, %cst_20 [1] : vector<8x8xf32> to vector<8xf32>
    %48 = vector.shape_cast %47 : vector<8xf32> to vector<8x1xf32>
    %49 = vector.broadcast %48 : vector<8x1xf32> to vector<8x8xf32>
    %50 = arith.subf %46, %49 : vector<8x8xf32>
    %51 = math.exp %50 : vector<8x8xf32>
    %cst_21 = arith.constant dense<0.000000e+00> : vector<8xf32>
    %52 = vector.multi_reduction <add>, %51, %cst_21 [1] : vector<8x8xf32> to vector<8xf32>
    %53 = vector.shape_cast %52 : vector<8xf32> to vector<8x1xf32>
    %54 = tpu.reciprocal %53 {approx = true} : vector<8x1xf32> -> vector<8x1xf32>
    %55 = vector.broadcast %54 : vector<8x1xf32> to vector<8x8xf32>
    %56 = arith.mulf %51, %55 : vector<8x8xf32>
    %57 = arith.truncf %56 : vector<8x8xf32> to vector<8x8xbf16>
    %58 = vector.extract_strided_slice %36 {offsets = [0, 0], sizes = [8, 32], strides = [1, 1]} : vector<8x64xbf16> to vector<8x32xbf16>
    %cst_22 = arith.constant dense<0.000000e+00> : vector<8x32xf32>
    %59 = tpu.matmul %57, %58, %cst_22 {dimension_numbers = #tpu.dot_dimension_numbers<[1], [0], [0], [1], [0, 0, 1, 1], [], []>} : vector<8x8xbf16>, vector<8x32xbf16>, vector<8x32xf32> -> vector<8x32xf32>
    %60 = arith.truncf %59 : vector<8x32xf32> to vector<8x32xbf16>
    %c0_23 = arith.constant 0 : index
    %c0_24 = arith.constant 0 : index
    %61 = vector.load %arg20[%c0_23, %c0_24] : memref<8x64xbf16, #tpu.memory_space<vmem>>, vector<8x32xbf16>
    tpu.vector_store %arg20[%c0_23, %c0_24], %60 {strides = array<i32>} : memref<8x64xbf16, #tpu.memory_space<vmem>>, vector<8x32xbf16>,
    %62 = vector.extract_strided_slice %34 {offsets = [0, 32], sizes = [8, 32], strides = [1, 1]} : vector<8x64xbf16> to vector<8x32xbf16>
    %63 = vector.extract_strided_slice %35 {offsets = [0, 32], sizes = [8, 32], strides = [1, 1]} : vector<8x64xbf16> to vector<8x32xbf16>
    %cst_25 = arith.constant dense<0.000000e+00> : vector<8x8xf32>
    %64 = tpu.matmul %62, %63, %cst_25 {dimension_numbers = #tpu.dot_dimension_numbers<[1], [1], [0], [0], [0, 0, 1, 0], [], []>} : vector<8x32xbf16>, vector<8x32xbf16>, vector<8x8xf32> -> vector<8x8xf32>
    %cst_26 = arith.constant 0.176776692 : f32
    %65 = vector.broadcast %cst_26 : f32 to vector<8x8xf32>
    %66 = arith.mulf %64, %65 : vector<8x8xf32>
    %cst_27 = arith.constant 0xFF800000 : f32
    %67 = vector.broadcast %cst_27 : f32 to vector<8x8xf32>
    %68 = arith.select %39, %67, %66 : vector<8x8xi1>, vector<8x8xf32>
    %cst_28 = arith.constant dense<0xFF800000> : vector<8xf32>
    %69 = vector.multi_reduction <maximumf>, %68, %cst_28 [1] : vector<8x8xf32> to vector<8xf32>
    %70 = vector.shape_cast %69 : vector<8xf32> to vector<8x1xf32>
    %71 = vector.broadcast %70 : vector<8x1xf32> to vector<8x8xf32>
    %72 = arith.subf %68, %71 : vector<8x8xf32>
    %73 = math.exp %72 : vector<8x8xf32>
    %cst_29 = arith.constant dense<0.000000e+00> : vector<8xf32>
    %74 = vector.multi_reduction <add>, %73, %cst_29 [1] : vector<8x8xf32> to vector<8xf32>
    %75 = vector.shape_cast %74 : vector<8xf32> to vector<8x1xf32>
    %76 = tpu.reciprocal %75 {approx = true} : vector<8x1xf32> -> vector<8x1xf32>
    %77 = vector.broadcast %76 : vector<8x1xf32> to vector<8x8xf32>
    %78 = arith.mulf %73, %77 : vector<8x8xf32>
    %79 = arith.truncf %78 : vector<8x8xf32> to vector<8x8xbf16>
    %80 = vector.extract_strided_slice %36 {offsets = [0, 32], sizes = [8, 32], strides = [1, 1]} : vector<8x64xbf16> to vector<8x32xbf16>
    %cst_30 = arith.constant dense<0.000000e+00> : vector<8x32xf32>
    %81 = tpu.matmul %79, %80, %cst_30 {dimension_numbers = #tpu.dot_dimension_numbers<[1], [0], [0], [1], [0, 0, 1, 1], [], []>} : vector<8x8xbf16>, vector<8x32xbf16>, vector<8x32xf32> -> vector<8x32xf32>
    %82 = arith.truncf %81 : vector<8x32xf32> to vector<8x32xbf16>
    %c0_31 = arith.constant 0 : index
    %c32 = arith.constant 32 : index
    %83 = vector.load %arg20[%c0_31, %c32] : memref<8x64xbf16, #tpu.memory_space<vmem>>, vector<8x32xbf16>
    tpu.vector_store %arg20[%c0_31, %c32], %82 {strides = array<i32>} : memref<8x64xbf16, #tpu.memory_space<vmem>>, vector<8x32xbf16>,
    %c0_32 = arith.constant 0 : index
    %c0_33 = arith.constant 0 : index
    %84 = vector.load %arg20[%c0_32, %c0_33] : memref<8x64xbf16, #tpu.memory_space<vmem>>, vector<8x64xbf16>
    %cst_34 = arith.constant dense<0.000000e+00> : vector<8x64xf32>
    %85 = tpu.matmul %84, %23, %cst_34 {dimension_numbers = #tpu.dot_dimension_numbers<[1], [0], [0], [1], [0, 0, 1, 1], [], []>} : vector<8x64xbf16>, vector<64x64xbf16>, vector<8x64xf32> -> vector<8x64xf32>
    %86 = vector.broadcast %8 : vector<1x64xf32> to vector<8x64xf32>
    %87 = arith.addf %85, %86 : vector<8x64xf32>
    %c0_35 = arith.constant 0 : index
    %c0_36 = arith.constant 0 : index
    %c0_37 = arith.constant 0 : index
    %88 = vector.load %arg16[%c0_35, %c0_36, %c0_37] : memref<1x8x64xbf16, #tpu.memory_space<vmem>>, vector<1x8x64xbf16>
    %89 = vector.shape_cast %88 : vector<1x8x64xbf16> to vector<8x64xbf16>
    %90 = vector.shape_cast %35 : vector<8x64xbf16> to vector<1x8x64xbf16>
    tpu.vector_store %arg16[%c0_35, %c0_36, %c0_37], %90 {strides = array<i32>} : memref<1x8x64xbf16, #tpu.memory_space<vmem>>, vector<1x8x64xbf16>,
    %c0_38 = arith.constant 0 : index
    %c0_39 = arith.constant 0 : index
    %c0_40 = arith.constant 0 : index
    %91 = vector.load %arg17[%c0_38, %c0_39, %c0_40] : memref<1x8x64xbf16, #tpu.memory_space<vmem>>, vector<1x8x64xbf16>
    %92 = vector.shape_cast %91 : vector<1x8x64xbf16> to vector<8x64xbf16>
    %93 = vector.shape_cast %36 : vector<8x64xbf16> to vector<1x8x64xbf16>
    tpu.vector_store %arg17[%c0_38, %c0_39, %c0_40], %93 {strides = array<i32>} : memref<1x8x64xbf16, #tpu.memory_space<vmem>>, vector<1x8x64xbf16>,
    %cst_41 = arith.constant dense<0.000000e+00> : vector<8xf32>
    %94 = vector.multi_reduction <add>, %87, %cst_41 [1] : vector<8x64xf32> to vector<8xf32>
    %95 = vector.shape_cast %94 : vector<8xf32> to vector<8x1xf32>
    %cst_42 = arith.constant 6.400000e+01 : f32
    %96 = vector.broadcast %cst_42 : f32 to vector<8x1xf32>
    %97 = arith.divf %95, %96 : vector<8x1xf32>
    %98 = vector.broadcast %97 : vector<8x1xf32> to vector<8x64xf32>
    %99 = arith.subf %87, %98 : vector<8x64xf32>
    %100 = arith.mulf %99, %99 : vector<8x64xf32>
    %cst_43 = arith.constant dense<0.000000e+00> : vector<8xf32>
    %101 = vector.multi_reduction <add>, %100, %cst_43 [1] : vector<8x64xf32> to vector<8xf32>
    %102 = vector.shape_cast %101 : vector<8xf32> to vector<8x1xf32>
    %cst_44 = arith.constant 6.400000e+01 : f32
    %103 = vector.broadcast %cst_44 : f32 to vector<8x1xf32>
    %104 = arith.divf %102, %103 : vector<8x1xf32>
    %105 = vector.broadcast %97 : vector<8x1xf32> to vector<8x64xf32>
    %106 = arith.subf %87, %105 : vector<8x64xf32>
    %cst_45 = arith.constant 9.99999974E-6 : f32
    %107 = vector.broadcast %cst_45 : f32 to vector<8x1xf32>
    %108 = arith.addf %104, %107 : vector<8x1xf32>
    %109 = math.rsqrt %108 : vector<8x1xf32>
    %110 = vector.broadcast %109 : vector<8x1xf32> to vector<8x64xf32>
    %111 = arith.mulf %106, %110 : vector<8x64xf32>
    %112 = vector.broadcast %9 : vector<1x64xf32> to vector<8x64xf32>
    %113 = arith.mulf %111, %112 : vector<8x64xf32>
    %114 = vector.broadcast %10 : vector<1x64xf32> to vector<8x64xf32>
    %115 = arith.addf %113, %114 : vector<8x64xf32>
    %116 = arith.addf %1, %115 : vector<8x64xf32>
    %c0_46 = arith.constant 0 : index
    %c0_47 = arith.constant 0 : index
    %117 = vector.load %arg7[%c0_46, %c0_47] : memref<64x64xbf16, #tpu.memory_space<vmem>>, vector<64x64xbf16>
    %c0_48 = arith.constant 0 : index
    %c0_49 = arith.constant 0 : index
    %118 = vector.load %arg8[%c0_48, %c0_49] : memref<64x64xbf16, #tpu.memory_space<vmem>>, vector<64x64xbf16>
    %c0_50 = arith.constant 0 : index
    %c0_51 = arith.constant 0 : index
    %119 = vector.load %arg9[%c0_50, %c0_51] : memref<64x64xbf16, #tpu.memory_space<vmem>>, vector<64x64xbf16>
    %c0_52 = arith.constant 0 : index
    %c0_53 = arith.constant 0 : index
    %120 = vector.load %arg10[%c0_52, %c0_53] : memref<64x64xbf16, #tpu.memory_space<vmem>>, vector<64x64xbf16>
    %121 = arith.truncf %116 : vector<8x64xf32> to vector<8x64xbf16>
    %122 = arith.truncf %3 : vector<8x64xf32> to vector<8x64xbf16>
    %cst_54 = arith.constant dense<0.000000e+00> : vector<8x64xf32>
    %123 = tpu.matmul %121, %117, %cst_54 {dimension_numbers = #tpu.dot_dimension_numbers<[1], [0], [0], [1], [0, 0, 1, 1], [], []>} : vector<8x64xbf16>, vector<64x64xbf16>, vector<8x64xf32> -> vector<8x64xf32>
    %124 = vector.broadcast %11 : vector<1x64xf32> to vector<8x64xf32>
    %125 = arith.addf %123, %124 : vector<8x64xf32>
    %cst_55 = arith.constant dense<0.000000e+00> : vector<8x64xf32>
    %126 = tpu.matmul %122, %118, %cst_55 {dimension_numbers = #tpu.dot_dimension_numbers<[1], [0], [0], [1], [0, 0, 1, 1], [], []>} : vector<8x64xbf16>, vector<64x64xbf16>, vector<8x64xf32> -> vector<8x64xf32>
    %127 = vector.broadcast %12 : vector<1x64xf32> to vector<8x64xf32>
    %128 = arith.addf %126, %127 : vector<8x64xf32>
    %cst_56 = arith.constant dense<0.000000e+00> : vector<8x64xf32>
    %129 = tpu.matmul %122, %119, %cst_56 {dimension_numbers = #tpu.dot_dimension_numbers<[1], [0], [0], [1], [0, 0, 1, 1], [], []>} : vector<8x64xbf16>, vector<64x64xbf16>, vector<8x64xf32> -> vector<8x64xf32>
    %130 = vector.broadcast %13 : vector<1x64xf32> to vector<8x64xf32>
    %131 = arith.addf %129, %130 : vector<8x64xf32>
    %132 = arith.truncf %125 : vector<8x64xf32> to vector<8x64xbf16>
    %133 = arith.truncf %128 : vector<8x64xf32> to vector<8x64xbf16>
    %134 = arith.truncf %131 : vector<8x64xf32> to vector<8x64xbf16>
    %135 = vector.extract_strided_slice %132 {offsets = [0, 0], sizes = [8, 32], strides = [1, 1]} : vector<8x64xbf16> to vector<8x32xbf16>
    %136 = vector.extract_strided_slice %133 {offsets = [0, 0], sizes = [8, 32], strides = [1, 1]} : vector<8x64xbf16> to vector<8x32xbf16>
    %cst_57 = arith.constant dense<0.000000e+00> : vector<8x8xf32>
    %137 = tpu.matmul %135, %136, %cst_57 {dimension_numbers = #tpu.dot_dimension_numbers<[1], [1], [0], [0], [0, 0, 1, 0], [], []>} : vector<8x32xbf16>, vector<8x32xbf16>, vector<8x8xf32> -> vector<8x8xf32>
    %cst_58 = arith.constant 0.176776692 : f32
    %138 = vector.broadcast %cst_58 : f32 to vector<8x8xf32>
    %139 = arith.mulf %137, %138 : vector<8x8xf32>
    %cst_59 = arith.constant dense<0xFF800000> : vector<8xf32>
    %140 = vector.multi_reduction <maximumf>, %139, %cst_59 [1] : vector<8x8xf32> to vector<8xf32>
    %141 = vector.shape_cast %140 : vector<8xf32> to vector<8x1xf32>
    %142 = vector.broadcast %141 : vector<8x1xf32> to vector<8x8xf32>
    %143 = arith.subf %139, %142 : vector<8x8xf32>
    %144 = math.exp %143 : vector<8x8xf32>
    %cst_60 = arith.constant dense<0.000000e+00> : vector<8xf32>
    %145 = vector.multi_reduction <add>, %144, %cst_60 [1] : vector<8x8xf32> to vector<8xf32>
    %146 = vector.shape_cast %145 : vector<8xf32> to vector<8x1xf32>
    %147 = tpu.reciprocal %146 {approx = true} : vector<8x1xf32> -> vector<8x1xf32>
    %148 = vector.broadcast %147 : vector<8x1xf32> to vector<8x8xf32>
    %149 = arith.mulf %144, %148 : vector<8x8xf32>
    %150 = arith.truncf %149 : vector<8x8xf32> to vector<8x8xbf16>
    %151 = vector.extract_strided_slice %134 {offsets = [0, 0], sizes = [8, 32], strides = [1, 1]} : vector<8x64xbf16> to vector<8x32xbf16>
    %cst_61 = arith.constant dense<0.000000e+00> : vector<8x32xf32>
    %152 = tpu.matmul %150, %151, %cst_61 {dimension_numbers = #tpu.dot_dimension_numbers<[1], [0], [0], [1], [0, 0, 1, 1], [], []>} : vector<8x8xbf16>, vector<8x32xbf16>, vector<8x32xf32> -> vector<8x32xf32>
    %153 = arith.truncf %152 : vector<8x32xf32> to vector<8x32xbf16>
    %c0_62 = arith.constant 0 : index
    %c0_63 = arith.constant 0 : index
    %154 = vector.load %arg20[%c0_62, %c0_63] : memref<8x64xbf16, #tpu.memory_space<vmem>>, vector<8x32xbf16>
    tpu.vector_store %arg20[%c0_62, %c0_63], %153 {strides = array<i32>} : memref<8x64xbf16, #tpu.memory_space<vmem>>, vector<8x32xbf16>,
    %155 = vector.extract_strided_slice %132 {offsets = [0, 32], sizes = [8, 32], strides = [1, 1]} : vector<8x64xbf16> to vector<8x32xbf16>
    %156 = vector.extract_strided_slice %133 {offsets = [0, 32], sizes = [8, 32], strides = [1, 1]} : vector<8x64xbf16> to vector<8x32xbf16>
    %cst_64 = arith.constant dense<0.000000e+00> : vector<8x8xf32>
    %157 = tpu.matmul %155, %156, %cst_64 {dimension_numbers = #tpu.dot_dimension_numbers<[1], [1], [0], [0], [0, 0, 1, 0], [], []>} : vector<8x32xbf16>, vector<8x32xbf16>, vector<8x8xf32> -> vector<8x8xf32>
    %cst_65 = arith.constant 0.176776692 : f32
    %158 = vector.broadcast %cst_65 : f32 to vector<8x8xf32>
    %159 = arith.mulf %157, %158 : vector<8x8xf32>
    %cst_66 = arith.constant dense<0xFF800000> : vector<8xf32>
    %160 = vector.multi_reduction <maximumf>, %159, %cst_66 [1] : vector<8x8xf32> to vector<8xf32>
    %161 = vector.shape_cast %160 : vector<8xf32> to vector<8x1xf32>
    %162 = vector.broadcast %161 : vector<8x1xf32> to vector<8x8xf32>
    %163 = arith.subf %159, %162 : vector<8x8xf32>
    %164 = math.exp %163 : vector<8x8xf32>
    %cst_67 = arith.constant dense<0.000000e+00> : vector<8xf32>
    %165 = vector.multi_reduction <add>, %164, %cst_67 [1] : vector<8x8xf32> to vector<8xf32>
    %166 = vector.shape_cast %165 : vector<8xf32> to vector<8x1xf32>
    %167 = tpu.reciprocal %166 {approx = true} : vector<8x1xf32> -> vector<8x1xf32>
    %168 = vector.broadcast %167 : vector<8x1xf32> to vector<8x8xf32>
    %169 = arith.mulf %164, %168 : vector<8x8xf32>
    %170 = arith.truncf %169 : vector<8x8xf32> to vector<8x8xbf16>
    %171 = vector.extract_strided_slice %134 {offsets = [0, 32], sizes = [8, 32], strides = [1, 1]} : vector<8x64xbf16> to vector<8x32xbf16>
    %cst_68 = arith.constant dense<0.000000e+00> : vector<8x32xf32>
    %172 = tpu.matmul %170, %171, %cst_68 {dimension_numbers = #tpu.dot_dimension_numbers<[1], [0], [0], [1], [0, 0, 1, 1], [], []>} : vector<8x8xbf16>, vector<8x32xbf16>, vector<8x32xf32> -> vector<8x32xf32>
    %173 = arith.truncf %172 : vector<8x32xf32> to vector<8x32xbf16>
    %c0_69 = arith.constant 0 : index
    %c32_70 = arith.constant 32 : index
    %174 = vector.load %arg20[%c0_69, %c32_70] : memref<8x64xbf16, #tpu.memory_space<vmem>>, vector<8x32xbf16>
    tpu.vector_store %arg20[%c0_69, %c32_70], %173 {strides = array<i32>} : memref<8x64xbf16, #tpu.memory_space<vmem>>, vector<8x32xbf16>,
    %c0_71 = arith.constant 0 : index
    %c0_72 = arith.constant 0 : index
    %175 = vector.load %arg20[%c0_71, %c0_72] : memref<8x64xbf16, #tpu.memory_space<vmem>>, vector<8x64xbf16>
    %cst_73 = arith.constant dense<0.000000e+00> : vector<8x64xf32>
    %176 = tpu.matmul %175, %120, %cst_73 {dimension_numbers = #tpu.dot_dimension_numbers<[1], [0], [0], [1], [0, 0, 1, 1], [], []>} : vector<8x64xbf16>, vector<64x64xbf16>, vector<8x64xf32> -> vector<8x64xf32>
    %177 = vector.broadcast %14 : vector<1x64xf32> to vector<8x64xf32>
    %178 = arith.addf %176, %177 : vector<8x64xf32>
    %c0_74 = arith.constant 0 : index
    %c0_75 = arith.constant 0 : index
    %c0_76 = arith.constant 0 : index
    %179 = vector.load %arg18[%c0_74, %c0_75, %c0_76] : memref<1x8x64xbf16, #tpu.memory_space<vmem>>, vector<1x8x64xbf16>
    %180 = vector.shape_cast %179 : vector<1x8x64xbf16> to vector<8x64xbf16>
    %181 = vector.shape_cast %133 : vector<8x64xbf16> to vector<1x8x64xbf16>
    tpu.vector_store %arg18[%c0_74, %c0_75, %c0_76], %181 {strides = array<i32>} : memref<1x8x64xbf16, #tpu.memory_space<vmem>>, vector<1x8x64xbf16>,
    %c0_77 = arith.constant 0 : index
    %c0_78 = arith.constant 0 : index
    %c0_79 = arith.constant 0 : index
    %182 = vector.load %arg19[%c0_77, %c0_78, %c0_79] : memref<1x8x64xbf16, #tpu.memory_space<vmem>>, vector<1x8x64xbf16>
    %183 = vector.shape_cast %182 : vector<1x8x64xbf16> to vector<8x64xbf16>
    %184 = vector.shape_cast %134 : vector<8x64xbf16> to vector<1x8x64xbf16>
    tpu.vector_store %arg19[%c0_77, %c0_78, %c0_79], %184 {strides = array<i32>} : memref<1x8x64xbf16, #tpu.memory_space<vmem>>, vector<1x8x64xbf16>,
    %cst_80 = arith.constant dense<0.000000e+00> : vector<8xf32>
    %185 = vector.multi_reduction <add>, %178, %cst_80 [1] : vector<8x64xf32> to vector<8xf32>
    %186 = vector.shape_cast %185 : vector<8xf32> to vector<8x1xf32>
    %cst_81 = arith.constant 6.400000e+01 : f32
    %187 = vector.broadcast %cst_81 : f32 to vector<8x1xf32>
    %188 = arith.divf %186, %187 : vector<8x1xf32>
    %189 = vector.broadcast %188 : vector<8x1xf32> to vector<8x64xf32>
    %190 = arith.subf %178, %189 : vector<8x64xf32>
    %191 = arith.mulf %190, %190 : vector<8x64xf32>
    %cst_82 = arith.constant dense<0.000000e+00> : vector<8xf32>
    %192 = vector.multi_reduction <add>, %191, %cst_82 [1] : vector<8x64xf32> to vector<8xf32>
    %193 = vector.shape_cast %192 : vector<8xf32> to vector<8x1xf32>
    %cst_83 = arith.constant 6.400000e+01 : f32
    %194 = vector.broadcast %cst_83 : f32 to vector<8x1xf32>
    %195 = arith.divf %193, %194 : vector<8x1xf32>
    %196 = vector.broadcast %188 : vector<8x1xf32> to vector<8x64xf32>
    %197 = arith.subf %178, %196 : vector<8x64xf32>
    %cst_84 = arith.constant 9.99999974E-6 : f32
    %198 = vector.broadcast %cst_84 : f32 to vector<8x1xf32>
    %199 = arith.addf %195, %198 : vector<8x1xf32>
    %200 = math.rsqrt %199 : vector<8x1xf32>
    %201 = vector.broadcast %200 : vector<8x1xf32> to vector<8x64xf32>
    %202 = arith.mulf %197, %201 : vector<8x64xf32>
    %203 = vector.broadcast %15 : vector<1x64xf32> to vector<8x64xf32>
    %204 = arith.mulf %202, %203 : vector<8x64xf32>
    %205 = vector.broadcast %16 : vector<1x64xf32> to vector<8x64xf32>
    %206 = arith.addf %204, %205 : vector<8x64xf32>
    %207 = arith.addf %116, %206 : vector<8x64xf32>
    %208 = arith.truncf %207 : vector<8x64xf32> to vector<8x64xbf16>
    %c0_85 = arith.constant 0 : index
    %c0_86 = arith.constant 0 : index
    %209 = vector.load %arg11[%c0_85, %c0_86] : memref<64x128xbf16, #tpu.memory_space<vmem>>, vector<64x128xbf16>
    %cst_87 = arith.constant dense<0.000000e+00> : vector<8x128xf32>
    %210 = tpu.matmul %208, %209, %cst_87 {dimension_numbers = #tpu.dot_dimension_numbers<[1], [0], [0], [1], [0, 0, 1, 1], [], []>} : vector<8x64xbf16>, vector<64x128xbf16>, vector<8x128xf32> -> vector<8x128xf32>
    %c0_88 = arith.constant 0 : index
    %c0_89 = arith.constant 0 : index
    %211 = vector.load %arg14[%c0_88, %c0_89] : memref<1x128xf32, #tpu.memory_space<vmem>>, vector<1x128xf32>
    %212 = vector.broadcast %211 : vector<1x128xf32> to vector<8x128xf32>
    %213 = arith.addf %210, %212 : vector<8x128xf32>
    %cst_90 = arith.constant 0.000000e+00 : f32
    %214 = vector.broadcast %cst_90 : f32 to vector<8x128xf32>
    %215 = arith.maximumf %213, %214 : vector<8x128xf32>
    %216 = arith.truncf %215 : vector<8x128xf32> to vector<8x128xbf16>
    %c0_91 = arith.constant 0 : index
    %c0_92 = arith.constant 0 : index
    %217 = vector.load %arg12[%c0_91, %c0_92] : memref<128x64xbf16, #tpu.memory_space<vmem>>, vector<128x64xbf16>
    %cst_93 = arith.constant dense<0.000000e+00> : vector<8x64xf32>
    %218 = tpu.matmul %216, %217, %cst_93 {dimension_numbers = #tpu.dot_dimension_numbers<[1], [0], [0], [1], [0, 0, 1, 1], [], []>} : vector<8x128xbf16>, vector<128x64xbf16>, vector<8x64xf32> -> vector<8x64xf32>
    %219 = vector.broadcast %17 : vector<1x64xf32> to vector<8x64xf32>
    %220 = arith.addf %218, %219 : vector<8x64xf32>
    %cst_94 = arith.constant dense<0.000000e+00> : vector<8xf32>
    %221 = vector.multi_reduction <add>, %220, %cst_94 [1] : vector<8x64xf32> to vector<8xf32>
    %222 = vector.shape_cast %221 : vector<8xf32> to vector<8x1xf32>
    %cst_95 = arith.constant 6.400000e+01 : f32
    %223 = vector.broadcast %cst_95 : f32 to vector<8x1xf32>
    %224 = arith.divf %222, %223 : vector<8x1xf32>
    %225 = vector.broadcast %224 : vector<8x1xf32> to vector<8x64xf32>
    %226 = arith.subf %220, %225 : vector<8x64xf32>
    %227 = arith.mulf %226, %226 : vector<8x64xf32>
    %cst_96 = arith.constant dense<0.000000e+00> : vector<8xf32>
    %228 = vector.multi_reduction <add>, %227, %cst_96 [1] : vector<8x64xf32> to vector<8xf32>
    %229 = vector.shape_cast %228 : vector<8xf32> to vector<8x1xf32>
    %cst_97 = arith.constant 6.400000e+01 : f32
    %230 = vector.broadcast %cst_97 : f32 to vector<8x1xf32>
    %231 = arith.divf %229, %230 : vector<8x1xf32>
    %232 = vector.broadcast %224 : vector<8x1xf32> to vector<8x64xf32>
    %233 = arith.subf %220, %232 : vector<8x64xf32>
    %cst_98 = arith.constant 9.99999974E-6 : f32
    %234 = vector.broadcast %cst_98 : f32 to vector<8x1xf32>
    %235 = arith.addf %231, %234 : vector<8x1xf32>
    %236 = math.rsqrt %235 : vector<8x1xf32>
    %237 = vector.broadcast %236 : vector<8x1xf32> to vector<8x64xf32>
    %238 = arith.mulf %233, %237 : vector<8x64xf32>
    %239 = vector.broadcast %18 : vector<1x64xf32> to vector<8x64xf32>
    %240 = arith.mulf %238, %239 : vector<8x64xf32>
    %241 = vector.broadcast %19 : vector<1x64xf32> to vector<8x64xf32>
    %242 = arith.addf %240, %241 : vector<8x64xf32>
    %243 = arith.addf %207, %242 : vector<8x64xf32>
    %c0_99 = arith.constant 0 : index
    %c0_100 = arith.constant 0 : index
    %c0_101 = arith.constant 0 : index
    %244 = vector.load %arg15[%c0_99, %c0_100, %c0_101] : memref<1x8x64xf32, #tpu.memory_space<vmem>>, vector<1x8x64xf32>
    %245 = vector.shape_cast %244 : vector<1x8x64xf32> to vector<8x64xf32>
    %246 = vector.shape_cast %243 : vector<8x64xf32> to vector<1x8x64xf32>
    tpu.vector_store %arg15[%c0_99, %c0_100, %c0_101], %246 {strides = array<i32>} : memref<1x8x64xf32, #tpu.memory_space<vmem>>, vector<1x8x64xf32>,
    return
  }
  func.func @transform_0(%arg0: i32) -> (i32, i32, i32) {
    %c0_i32 = arith.constant 0 : i32
    %c0_i32_0 = arith.constant 0 : i32
    %c0_i32_1 = arith.constant 0 : i32
    return %arg0, %c0_i32, %c0_i32_0 : i32, i32, i32
  }
  func.func @transform_1(%arg0: i32) -> (i32, i32, i32) {
    %c0_i32 = arith.constant 0 : i32
    %c0_i32_0 = arith.constant 0 : i32
    %c0_i32_1 = arith.constant 0 : i32
    return %arg0, %c0_i32, %c0_i32_0 : i32, i32, i32
  }
  func.func @transform_2(%arg0: i32) -> (i32, i32) {
    %c0_i32 = arith.constant 0 : i32
    %c0_i32_0 = arith.constant 0 : i32
    %c0_i32_1 = arith.constant 0 : i32
    return %c0_i32, %c0_i32_0 : i32, i32
  }
  func.func @transform_3(%arg0: i32) -> (i32, i32) {
    %c0_i32 = arith.constant 0 : i32
    %c0_i32_0 = arith.constant 0 : i32
    %c0_i32_1 = arith.constant 0 : i32
    return %c0_i32, %c0_i32_0 : i32, i32
  }
  func.func @transform_4(%arg0: i32) -> (i32, i32) {
    %c0_i32 = arith.constant 0 : i32
    %c0_i32_0 = arith.constant 0 : i32
    %c0_i32_1 = arith.constant 0 : i32
    return %c0_i32, %c0_i32_0 : i32, i32
  }
  func.func @transform_5(%arg0: i32) -> (i32, i32) {
    %c0_i32 = arith.constant 0 : i32
    %c0_i32_0 = arith.constant 0 : i32
    %c0_i32_1 = arith.constant 0 : i32
    return %c0_i32, %c0_i32_0 : i32, i32
  }
  func.func @transform_6(%arg0: i32) -> (i32, i32) {
    %c0_i32 = arith.constant 0 : i32
    %c0_i32_0 = arith.constant 0 : i32
    %c0_i32_1 = arith.constant 0 : i32
    return %c0_i32, %c0_i32_0 : i32, i32
  }
  func.func @transform_7(%arg0: i32) -> (i32, i32) {
    %c0_i32 = arith.constant 0 : i32
    %c0_i32_0 = arith.constant 0 : i32
    %c0_i32_1 = arith.constant 0 : i32
    return %c0_i32, %c0_i32_0 : i32, i32
  }
  func.func @transform_8(%arg0: i32) -> (i32, i32) {
    %c0_i32 = arith.constant 0 : i32
    %c0_i32_0 = arith.constant 0 : i32
    %c0_i32_1 = arith.constant 0 : i32
    return %c0_i32, %c0_i32_0 : i32, i32
  }
  func.func @transform_9(%arg0: i32) -> (i32, i32) {
    %c0_i32 = arith.constant 0 : i32
    %c0_i32_0 = arith.constant 0 : i32
    %c0_i32_1 = arith.constant 0 : i32
    return %c0_i32, %c0_i32_0 : i32, i32
  }
  func.func @transform_10(%arg0: i32) -> (i32, i32) {
    %c0_i32 = arith.constant 0 : i32
    %c0_i32_0 = arith.constant 0 : i32
    %c0_i32_1 = arith.constant 0 : i32
    return %c0_i32, %c0_i32_0 : i32, i32
  }
  func.func @transform_11(%arg0: i32) -> (i32, i32) {
    %c0_i32 = arith.constant 0 : i32
    %c0_i32_0 = arith.constant 0 : i32
    %c0_i32_1 = arith.constant 0 : i32
    return %c0_i32, %c0_i32_0 : i32, i32
  }
  func.func @transform_12(%arg0: i32) -> (i32, i32) {
    %c0_i32 = arith.constant 0 : i32
    %c0_i32_0 = arith.constant 0 : i32
    %c0_i32_1 = arith.constant 0 : i32
    return %c0_i32, %c0_i32_0 : i32, i32
  }
  func.func @transform_13(%arg0: i32) -> (i32, i32) {
    %c0_i32 = arith.constant 0 : i32
    %c0_i32_0 = arith.constant 0 : i32
    %c0_i32_1 = arith.constant 0 : i32
    return %c0_i32, %c0_i32_0 : i32, i32
  }
  func.func @transform_14(%arg0: i32) -> (i32, i32, i32) {
    %c0_i32 = arith.constant 0 : i32
    %c0_i32_0 = arith.constant 0 : i32
    %c0_i32_1 = arith.constant 0 : i32
    return %arg0, %c0_i32, %c0_i32_0 : i32, i32, i32
  }
  func.func @transform_15(%arg0: i32) -> (i32, i32, i32) {
    %c0_i32 = arith.constant 0 : i32
    %c0_i32_0 = arith.constant 0 : i32
    %c0_i32_1 = arith.constant 0 : i32
    return %arg0, %c0_i32, %c0_i32_0 : i32, i32, i32
  }
  func.func @transform_16(%arg0: i32) -> (i32, i32, i32) {
    %c0_i32 = arith.constant 0 : i32
    %c0_i32_0 = arith.constant 0 : i32
    %c0_i32_1 = arith.constant 0 : i32
    return %arg0, %c0_i32, %c0_i32_0 : i32, i32, i32
  }
  func.func @transform_17(%arg0: i32) -> (i32, i32, i32) {
    %c0_i32 = arith.constant 0 : i32
    %c0_i32_0 = arith.constant 0 : i32
    %c0_i32_1 = arith.constant 0 : i32
    return %arg0, %c0_i32, %c0_i32_0 : i32, i32, i32
  }
  func.func @transform_18(%arg0: i32) -> (i32, i32, i32) {
    %c0_i32 = arith.constant 0 : i32
    %c0_i32_0 = arith.constant 0 : i32
    %c0_i32_1 = arith.constant 0 : i32
    return %arg0, %c0_i32, %c0_i32_0 : i32, i32, i32
  }
}

</mosaic_0001>

<llo_original>
// kernel: transformer_decoder.5
$region0: #{transformer_decoder.5}
  #allocation0 [shape = 'u32[]', space=smem, size = 0x4, offset = 0x4, fixed_abs, tag = 'smem constant byte address 0x4 - core index']
  #allocation1 [shape = 'u32[72,128]{1,0:T(1,128)}', space=vmem, size = 0x9000, scoped, tag = 'internal scratch']
  %s0 = inlined_call_operand.vmem [shape: bf16[16,64], index: 0, kind: input, shape index: {}]
  %s1 = inlined_call_operand.vmem [shape: bf16[64,128], index: 1, kind: input, shape index: {}]
  %s2 = inlined_call_operand.vmem [shape: f32[1,128], index: 2, kind: input, shape index: {}]
  %s3 = inlined_call_operand.hbm [shape: f32[16,128], index: 3, kind: output, shape index: {}]
  %s4 = sld [smem:[#allocation0]]
  $region22: #{transformer_decoder.5} parent=0
    _
  %s6 = ssub.s32 1, %s4
  %s7 = scalar_select 0, %s6, %s4
  $region1: #{transformer_decoder.5} parent=0
    #allocation2 [shape = 'u8[8192]{0}', space=vmem, size = 0x2000, scoped, tag = 'output window, operand 0, single buffered']
    #allocation3 [shape = 's32[1]{0}', space=sflag, size = 0x4, scoped, tag = 'scoped memory for transformer_decoder.5']
    %8 = vsyncpa [#allocation3], 0
    // Predicated region
    $region2: #{transformer_decoder.5} parent=1 // pred_check
      _
    $region3: #{transformer_decoder.5} parent=1 // pred_check_branch
      %10 = sbr.rel (0) target = $region5
    $region4: #{transformer_decoder.5} parent=1 // pred_region
      _
    $region5: #{transformer_decoder.5} parent=1 // pred_fallthru
      _
    // Predicated region
    $region6: #{transformer_decoder.5} parent=1 // pred_check
      _
    $region7: #{transformer_decoder.5} parent=1 // pred_check_branch
      %12 = sbr.rel (0) target = $region9
    $region8: #{transformer_decoder.5} parent=1 // pred_region
      _
    $region9: #{transformer_decoder.5} parent=1 // pred_fallthru
      _
    // Predicated region
    $region10: #{transformer_decoder.5} parent=1 // pred_check
      _
    $region11: #{transformer_decoder.5} parent=1 // pred_check_branch
      %14 = sbr.rel (0) target = $region13
    $region12: #{transformer_decoder.5} parent=1 // pred_region
      _
    $region13: #{transformer_decoder.5} parent=1 // pred_fallthru
      _
    %v16 = vld [vmem:[%s0] sm:$0xf]
    %v17 = vld [vmem:[%s0 + $0x4] sm:$0xf]
    %v18 = vld [vmem:[%s1] sm:$0xf]
    %v19 = vld [vmem:[%s1 + $0x4] sm:$0xf]
    %v20 = vld [vmem:[%s1 + $0x8] sm:$0xf]
    %v21 = vld [vmem:[%s1 + $0xc] sm:$0xf]
    %v22 = vld [vmem:[%s1 + $0x10] sm:$0xf]
    %v23 = vld [vmem:[%s1 + $0x14] sm:$0xf]
    %v24 = vld [vmem:[%s1 + $0x18] sm:$0xf]
    %v25 = vld [vmem:[%s1 + $0x1c] sm:$0xf]
    %v26 = vld [vmem:[%s2] sm:$0x1]
    %v28 = vperm.slane %v26, 0
    %v32 = vunpack.c.l.b16 %v16
    %v33 = vunpack.c.l.b16 %v17
    %v34 = vpack.c.b16 %v33, %v32
    %v43 = vunpack.c.l.b16 %v18
    %v44 = vunpack.c.l.b16 %v19
    %v45 = vunpack.c.l.b16 %v20
    %v46 = vunpack.c.l.b16 %v21
    %v47 = vunpack.c.l.b16 %v22
    %v48 = vunpack.c.l.b16 %v23
    %v49 = vunpack.c.l.b16 %v24
    %v50 = vunpack.c.l.b16 %v25
    %v51 = vpack.c.b16 %v44, %v43
    %v52 = vpack.c.b16 %v46, %v45
    %v53 = vpack.c.b16 %v48, %v47
    %v54 = vpack.c.b16 %v50, %v49
    %vm59 = vcmask 523264
    %v61 = vsel %vm59, %v34, 0
    %63 = vmatpush.bf16.msra.mxu0 0
    %64 = vmatpush.bf16.msra.mxu0 0
    %65 = vmatpush.bf16.msra.mxu0 0
    %66 = vmatpush.bf16.msra.mxu0 0
    %67 = vmatpush.bf16.msra.mxu0 %v54
    %68 = vmatpush.bf16.msra.mxu0 %v53
    %69 = vmatpush.bf16.msra.mxu0 %v52
    %70 = vmatpush.bf16.msra.mxu0 %v51
    %71 = vmatmul.bf16.gmra.mxu0 %v61
    %v72 = vpop.f32.mrf.mxu0
    %v73 = vadd.f32 %v28, %v72
    %v74 = vpop.f32.mrf.mxu0
    %v75 = vadd.f32 %v28, %v74
    %76 = vdwg.mxu0
    %77 = vst [vmem:[#allocation2] sm:$0xff] %v73
    %78 = vst [vmem:[#allocation2 + $0x8] sm:$0xff] %v75
    // Predicated region
    $region14: #{transformer_decoder.5} parent=1 // pred_check
      _
    $region15: #{transformer_decoder.5} parent=1 // pred_check_branch
      %80 = sbr.rel (0) target = $region17
    $region16: #{transformer_decoder.5} parent=1 // pred_region
      %82 = vsyncadd [#allocation3], 0
      %s83 = sshll.u32 [#allocation2], 4
      %s84 = int_to_ptr.vmem [resolvable:$true] %s83
      %s85 = sshll.u32 %s3, 4
      %s86 = int_to_ptr.hbm [resolvable:$true] %s85
      %91 = dma.vmem_to_hbm [thread:$0]  %s84, 256, %s86, [#allocation3], 128, 128, 8
    $region17: #{transformer_decoder.5} parent=1 // pred_fallthru
      _
    // Predicated region
    $region18: #{transformer_decoder.5} parent=1 // pred_check
      _
    $region19: #{transformer_decoder.5} parent=1 // pred_check_branch
      %93 = sbr.rel (0) target = $region21
    $region20: #{transformer_decoder.5} parent=1 // pred_region
      %95 = dma.done [#allocation3], 256
    $region21: #{transformer_decoder.5} parent=1 // pred_fallthru
      _
    %96 = vsyncpa [#allocation3], 1

// kernel: transformer_decoder.4
$region0: #{transformer_decoder.4}
  #allocation0 [shape = 'u32[]', space=smem, size = 0x4, offset = 0x4, fixed_abs, tag = 'smem constant byte address 0x4 - core index']
  #allocation1 [shape = 'u32[72,128]{1,0:T(1,128)}', space=vmem, size = 0x9000, scoped, tag = 'internal scratch']
  #allocation2 [shape = 'bf16[8,64]{1,0:T(8,128)(2,1)}', space=vmem, size = 0x800, scoped, tag = 'scratch operand']
  %s0 = inlined_call_operand.vmem [shape: f32[2,8,64], index: 0, kind: input, shape index: {}]
  %s1 = inlined_call_operand.vmem [shape: f32[2,8,64], index: 1, kind: input, shape index: {}]
  %s2 = inlined_call_operand.vmem [shape: bf16[64,64], index: 2, kind: input, shape index: {}]
  %s3 = inlined_call_operand.vmem [shape: bf16[64,64], index: 3, kind: input, shape index: {}]
  %s4 = inlined_call_operand.vmem [shape: bf16[64,64], index: 4, kind: input, shape index: {}]
  %s5 = inlined_call_operand.vmem [shape: bf16[64,64], index: 5, kind: input, shape index: {}]
  %s6 = inlined_call_operand.vmem [shape: bf16[64,64], index: 6, kind: input, shape index: {}]
  %s7 = inlined_call_operand.vmem [shape: bf16[64,64], index: 7, kind: input, shape index: {}]
  %s8 = inlined_call_operand.vmem [shape: bf16[64,64], index: 8, kind: input, shape index: {}]
  %s9 = inlined_call_operand.hbm [shape: bf16[64,64], index: 9, kind: input, shape index: {}]
  %s10 = inlined_call_operand.hbm [shape: bf16[64,128], index: 10, kind: input, shape index: {}]
  %s11 = inlined_call_operand.vmem [shape: bf16[128,64], index: 11, kind: input, shape index: {}]
  %s12 = inlined_call_operand.hbm [shape: f32[16,64], index: 12, kind: input, shape index: {}]
  %s13 = inlined_call_operand.vmem [shape: f32[1,128], index: 13, kind: input, shape index: {}]
  %s14 = inlined_call_operand.vmem [shape: f32[2,8,64], index: 14, kind: output, shape index: {0}]
  %s15 = inlined_call_operand.vmem [shape: bf16[2,8,64], index: 15, kind: output, shape index: {1}]
  %s16 = inlined_call_operand.vmem [shape: bf16[2,8,64], index: 16, kind: output, shape index: {2}]
  %s17 = inlined_call_operand.vmem [shape: bf16[2,8,64], index: 17, kind: output, shape index: {3}]
  %s18 = inlined_call_operand.vmem [shape: bf16[2,8,64], index: 18, kind: output, shape index: {4}]
  %19 = xla_tuple %s14, %s15, %s16, %s17, %s18
  %s20 = sld [smem:[#allocation0]]
  $region133: #{transformer_decoder.4} parent=0
    _
  %s22 = ssub.s32 1, %s20
  %s23 = scalar_select 0, %s22, %s20
  $region1: #{transformer_decoder.4} parent=0
    #allocation3 [shape = 'u8[16384]{0}', space=vmem, size = 0x4000, scoped, tag = 'input window, operand 9, single buffered']
    #allocation4 [shape = 's32[2]{0}', space=sflag, size = 0x8, scoped, tag = 'scoped memory for transformer_decoder.4']
    #allocation5 [shape = 'u8[16384]{0}', space=vmem, size = 0x4000, scoped, tag = 'input window, operand 10, single buffered']
    #allocation6 [shape = 's32[1]{0}', space=sflag, size = 0x4, scoped, tag = 'scoped memory for transformer_decoder.4']
    #allocation7 [shape = 'u8[8192]{0}', space=vmem, size = 0x2000, scoped, tag = 'input window, operand 12, single buffered']
    %24 = vsyncpa [#allocation4], 0
    %25 = vsyncpa [#allocation6], 0
    loop: start=0, step=1, limit=4
    $region2: #{transformer_decoder.4} parent=1 // loop_pre_header
      _
    $region3: #{transformer_decoder.4} parent=1 // loop_header
      %s27 = sphi 0, %s31
      %p28 = scmp.ge.s32.totalorder %s27, 4
      %s37 = sphi 0, %s39
      %s40 = sphi 0, %s37
      %s41 = sphi 0, %s40
      %s57 = sphi 0, %s41
      %s63 = sphi 0, %s65
      %s66 = sphi 0, %s63
      %s67 = sphi 0, %s66
      %s83 = sphi 0, %s67
      %s87 = sphi 0, %s87
      %s89 = sphi 0, %s87
      %s90 = sphi 0, %s89
      %s104 = sphi 0, %s90
      %s108 = sphi 0, %s108
      %s110 = sphi 0, %s108
      %s111 = sphi 0, %s110
      %s125 = sphi 0, %s111
      %s129 = sphi 0, %s129
      %s131 = sphi 0, %s129
      %s132 = sphi 0, %s131
      %s146 = sphi 0, %s132
      %s150 = sphi 0, %s150
      %s152 = sphi 0, %s150
      %s153 = sphi 0, %s152
      %s167 = sphi 0, %s153
      %s171 = sphi 0, %s171
      %s173 = sphi 0, %s171
      %s174 = sphi 0, %s173
      %s188 = sphi 0, %s174
      %s192 = sphi 0, %s192
      %s194 = sphi 0, %s192
      %s195 = sphi 0, %s194
      %s209 = sphi 0, %s195
      %s213 = sphi 0, %s213
      %s215 = sphi 0, %s213
      %s216 = sphi 0, %s215
      %s230 = sphi 0, %s216
      %s234 = sphi 0, %s234
      %s236 = sphi 0, %s234
      %s237 = sphi 0, %s236
      %s251 = sphi 0, %s237
      %s255 = sphi 0, %s255
      %s257 = sphi 0, %s255
      %s258 = sphi 0, %s257
      %s272 = sphi 0, %s258
      %s276 = sphi 0, %s276
      %s278 = sphi 0, %s276
      %s279 = sphi 0, %s278
      %s293 = sphi 0, %s279
      %s297 = sphi 0, %s297
      %s299 = sphi 0, %s297
      %s300 = sphi 0, %s299
      %s314 = sphi 0, %s300
      %s318 = sphi 0, %s318
      %s320 = sphi 0, %s318
      %s321 = sphi 0, %s320
      %s335 = sphi 0, %s321
      %s341 = sphi 0, %s343
      %s344 = sphi 0, %s341
      %s345 = sphi 0, %s344
      %s361 = sphi 0, %s345
      %s367 = sphi 0, %s369
      %s370 = sphi 0, %s367
      %s371 = sphi 0, %s370
      %s387 = sphi 0, %s371
      %s393 = sphi 0, %s395
      %s396 = sphi 0, %s393
      %s397 = sphi 0, %s396
      %s413 = sphi 0, %s397
      %s419 = sphi 0, %s421
      %s422 = sphi 0, %s419
      %s423 = sphi 0, %s422
      %s439 = sphi 0, %s423
      %s445 = sphi 0, %s447
      %s448 = sphi 0, %s445
      %s449 = sphi 0, %s448
      %s465 = sphi 0, %s449
    $region4: #{transformer_decoder.4} parent=1 // loop_header_branch
      %30 = sbr.rel (%p28) target = $region8
    $region5: #{transformer_decoder.4} parent=1 // loop_body
      %s32 = ssub.s32 %s27, 1
      %s33 = ssub.s32 %s27, 2
      %s34 = sadd.s32 %s27, 1
      %s35 = ssub.s32 %s27, %s34
      %p36 = scmp.eq.s32.totalorder %s35, 0
      %s38 = sadd.s32 %s37, 1
      %s39 = scalar_select %p36, %s37, %s38
      %p42 = pneg %p36
      %p43 = scmp.eq.s32.totalorder %s27, 1
      %p44 = por %p42, %p43
      %p45 = scmp.ne.s32.totalorder %s37, %s40
      %p46 = scmp.eq.s32.totalorder %s27, 0
      %p47 = por %p45, %p46
      %p48 = scmp.ne.s32.totalorder %s37, %s40
      %p49 = scmp.eq.s32.totalorder %s32, 1
      %p50 = por %p48, %p49
      %p51 = scmp.ne.s32.totalorder %s40, %s41
      %p52 = scmp.eq.s32.totalorder %s32, 0
      %p53 = por %p51, %p52
      %p54 = scmp.ne.s32.totalorder %s40, %s41
      %p55 = scmp.eq.s32.totalorder %s33, 1
      %p56 = por %p54, %p55
      %p58 = scmp.ne.s32.totalorder %s41, %s57
      %p59 = scmp.eq.s32.totalorder %s33, 0
      %p60 = por %p58, %p59
      %s61 = ssub.s32 %s27, %s34
      %p62 = scmp.eq.s32.totalorder %s61, 0
      %s64 = sadd.s32 %s63, 1
      %s65 = scalar_select %p62, %s63, %s64
      %p68 = pneg %p62
      %p69 = scmp.eq.s32.totalorder %s27, 1
      %p70 = por %p68, %p69
      %p71 = scmp.ne.s32.totalorder %s63, %s66
      %p72 = scmp.eq.s32.totalorder %s27, 0
      %p73 = por %p71, %p72
      %p74 = scmp.ne.s32.totalorder %s63, %s66
      %p75 = scmp.eq.s32.totalorder %s32, 1
      %p76 = por %p74, %p75
      %p77 = scmp.ne.s32.totalorder %s66, %s67
      %p78 = scmp.eq.s32.totalorder %s32, 0
      %p79 = por %p77, %p78
      %p80 = scmp.ne.s32.totalorder %s66, %s67
      %p81 = scmp.eq.s32.totalorder %s33, 1
      %p82 = por %p80, %p81
      %p84 = scmp.ne.s32.totalorder %s67, %s83
      %p85 = scmp.eq.s32.totalorder %s33, 0
      %p86 = por %p84, %p85
      %s88 = sadd.s32 %s87, 1
      %p91 = scmp.eq.s32.totalorder %s27, 1
      %p92 = scmp.ne.s32.totalorder %s87, %s89
      %p93 = scmp.eq.s32.totalorder %s27, 0
      %p94 = por %p92, %p93
      %p95 = scmp.ne.s32.totalorder %s87, %s89
      %p96 = scmp.eq.s32.totalorder %s32, 1
      %p97 = por %p95, %p96
      %p98 = scmp.ne.s32.totalorder %s89, %s90
      %p99 = scmp.eq.s32.totalorder %s32, 0
      %p100 = por %p98, %p99
      %p101 = scmp.ne.s32.totalorder %s89, %s90
      %p102 = scmp.eq.s32.totalorder %s33, 1
      %p103 = por %p101, %p102
      %p105 = scmp.ne.s32.totalorder %s90, %s104
      %p106 = scmp.eq.s32.totalorder %s33, 0
      %p107 = por %p105, %p106
      %s109 = sadd.s32 %s108, 1
      %p112 = scmp.eq.s32.totalorder %s27, 1
      %p113 = scmp.ne.s32.totalorder %s108, %s110
      %p114 = scmp.eq.s32.totalorder %s27, 0
      %p115 = por %p113, %p114
      %p116 = scmp.ne.s32.totalorder %s108, %s110
      %p117 = scmp.eq.s32.totalorder %s32, 1
      %p118 = por %p116, %p117
      %p119 = scmp.ne.s32.totalorder %s110, %s111
      %p120 = scmp.eq.s32.totalorder %s32, 0
      %p121 = por %p119, %p120
      %p122 = scmp.ne.s32.totalorder %s110, %s111
      %p123 = scmp.eq.s32.totalorder %s33, 1
      %p124 = por %p122, %p123
      %p126 = scmp.ne.s32.totalorder %s111, %s125
      %p127 = scmp.eq.s32.totalorder %s33, 0
      %p128 = por %p126, %p127
      %s130 = sadd.s32 %s129, 1
      %p133 = scmp.eq.s32.totalorder %s27, 1
      %p134 = scmp.ne.s32.totalorder %s129, %s131
      %p135 = scmp.eq.s32.totalorder %s27, 0
      %p136 = por %p134, %p135
      %p137 = scmp.ne.s32.totalorder %s129, %s131
      %p138 = scmp.eq.s32.totalorder %s32, 1
      %p139 = por %p137, %p138
      %p140 = scmp.ne.s32.totalorder %s131, %s132
      %p141 = scmp.eq.s32.totalorder %s32, 0
      %p142 = por %p140, %p141
      %p143 = scmp.ne.s32.totalorder %s131, %s132
      %p144 = scmp.eq.s32.totalorder %s33, 1
      %p145 = por %p143, %p144
      %p147 = scmp.ne.s32.totalorder %s132, %s146
      %p148 = scmp.eq.s32.totalorder %s33, 0
      %p149 = por %p147, %p148
      %s151 = sadd.s32 %s150, 1
      %p154 = scmp.eq.s32.totalorder %s27, 1
      %p155 = scmp.ne.s32.totalorder %s150, %s152
      %p156 = scmp.eq.s32.totalorder %s27, 0
      %p157 = por %p155, %p156
      %p158 = scmp.ne.s32.totalorder %s150, %s152
      %p159 = scmp.eq.s32.totalorder %s32, 1
      %p160 = por %p158, %p159
      %p161 = scmp.ne.s32.totalorder %s152, %s153
      %p162 = scmp.eq.s32.totalorder %s32, 0
      %p163 = por %p161, %p162
      %p164 = scmp.ne.s32.totalorder %s152, %s153
      %p165 = scmp.eq.s32.totalorder %s33, 1
      %p166 = por %p164, %p165
      %p168 = scmp.ne.s32.totalorder %s153, %s167
      %p169 = scmp.eq.s32.totalorder %s33, 0
      %p170 = por %p168, %p169
      %s172 = sadd.s32 %s171, 1
      %p175 = scmp.eq.s32.totalorder %s27, 1
      %p176 = scmp.ne.s32.totalorder %s171, %s173
      %p177 = scmp.eq.s32.totalorder %s27, 0
      %p178 = por %p176, %p177
      %p179 = scmp.ne.s32.totalorder %s171, %s173
      %p180 = scmp.eq.s32.totalorder %s32, 1
      %p181 = por %p179, %p180
      %p182 = scmp.ne.s32.totalorder %s173, %s174
      %p183 = scmp.eq.s32.totalorder %s32, 0
      %p184 = por %p182, %p183
      %p185 = scmp.ne.s32.totalorder %s173, %s174
      %p186 = scmp.eq.s32.totalorder %s33, 1
      %p187 = por %p185, %p186
      %p189 = scmp.ne.s32.totalorder %s174, %s188
      %p190 = scmp.eq.s32.totalorder %s33, 0
      %p191 = por %p189, %p190
      %s193 = sadd.s32 %s192, 1
      %p196 = scmp.eq.s32.totalorder %s27, 1
      %p197 = scmp.ne.s32.totalorder %s192, %s194
      %p198 = scmp.eq.s32.totalorder %s27, 0
      %p199 = por %p197, %p198
      %p200 = scmp.ne.s32.totalorder %s192, %s194
      %p201 = scmp.eq.s32.totalorder %s32, 1
      %p202 = por %p200, %p201
      %p203 = scmp.ne.s32.totalorder %s194, %s195
      %p204 = scmp.eq.s32.totalorder %s32, 0
      %p205 = por %p203, %p204
      %p206 = scmp.ne.s32.totalorder %s194, %s195
      %p207 = scmp.eq.s32.totalorder %s33, 1
      %p208 = por %p206, %p207
      %p210 = scmp.ne.s32.totalorder %s195, %s209
      %p211 = scmp.eq.s32.totalorder %s33, 0
      %p212 = por %p210, %p211
      %s214 = sadd.s32 %s213, 1
      %p217 = scmp.eq.s32.totalorder %s27, 1
      %p218 = scmp.ne.s32.totalorder %s213, %s215
      %p219 = scmp.eq.s32.totalorder %s27, 0
      %p220 = por %p218, %p219
      %p221 = scmp.ne.s32.totalorder %s213, %s215
      %p222 = scmp.eq.s32.totalorder %s32, 1
      %p223 = por %p221, %p222
      %p224 = scmp.ne.s32.totalorder %s215, %s216
      %p225 = scmp.eq.s32.totalorder %s32, 0
      %p226 = por %p224, %p225
      %p227 = scmp.ne.s32.totalorder %s215, %s216
      %p228 = scmp.eq.s32.totalorder %s33, 1
      %p229 = por %p227, %p228
      %p231 = scmp.ne.s32.totalorder %s216, %s230
      %p232 = scmp.eq.s32.totalorder %s33, 0
      %p233 = por %p231, %p232
      %s235 = sadd.s32 %s234, 1
      %p238 = scmp.eq.s32.totalorder %s27, 1
      %p239 = scmp.ne.s32.totalorder %s234, %s236
      %p240 = scmp.eq.s32.totalorder %s27, 0
      %p241 = por %p239, %p240
      %p242 = scmp.ne.s32.totalorder %s234, %s236
      %p243 = scmp.eq.s32.totalorder %s32, 1
      %p244 = por %p242, %p243
      %p245 = scmp.ne.s32.totalorder %s236, %s237
      %p246 = scmp.eq.s32.totalorder %s32, 0
      %p247 = por %p245, %p246
      %p248 = scmp.ne.s32.totalorder %s236, %s237
      %p249 = scmp.eq.s32.totalorder %s33, 1
      %p250 = por %p248, %p249
      %p252 = scmp.ne.s32.totalorder %s237, %s251
      %p253 = scmp.eq.s32.totalorder %s33, 0
      %p254 = por %p252, %p253
      %s256 = sadd.s32 %s255, 1
      %p259 = scmp.eq.s32.totalorder %s27, 1
      %p260 = scmp.ne.s32.totalorder %s255, %s257
      %p261 = scmp.eq.s32.totalorder %s27, 0
      %p262 = por %p260, %p261
      %p263 = scmp.ne.s32.totalorder %s255, %s257
      %p264 = scmp.eq.s32.totalorder %s32, 1
      %p265 = por %p263, %p264
      %p266 = scmp.ne.s32.totalorder %s257, %s258
      %p267 = scmp.eq.s32.totalorder %s32, 0
      %p268 = por %p266, %p267
      %p269 = scmp.ne.s32.totalorder %s257, %s258
      %p270 = scmp.eq.s32.totalorder %s33, 1
      %p271 = por %p269, %p270
      %p273 = scmp.ne.s32.totalorder %s258, %s272
      %p274 = scmp.eq.s32.totalorder %s33, 0
      %p275 = por %p273, %p274
      %s277 = sadd.s32 %s276, 1
      %p280 = scmp.eq.s32.totalorder %s27, 1
      %p281 = scmp.ne.s32.totalorder %s276, %s278
      %p282 = scmp.eq.s32.totalorder %s27, 0
      %p283 = por %p281, %p282
      %p284 = scmp.ne.s32.totalorder %s276, %s278
      %p285 = scmp.eq.s32.totalorder %s32, 1
      %p286 = por %p284, %p285
      %p287 = scmp.ne.s32.totalorder %s278, %s279
      %p288 = scmp.eq.s32.totalorder %s32, 0
      %p289 = por %p287, %p288
      %p290 = scmp.ne.s32.totalorder %s278, %s279
      %p291 = scmp.eq.s32.totalorder %s33, 1
      %p292 = por %p290, %p291
      %p294 = scmp.ne.s32.totalorder %s279, %s293
      %p295 = scmp.eq.s32.totalorder %s33, 0
      %p296 = por %p294, %p295
      %s298 = sadd.s32 %s297, 1
      %p301 = scmp.eq.s32.totalorder %s27, 1
      %p302 = scmp.ne.s32.totalorder %s297, %s299
      %p303 = scmp.eq.s32.totalorder %s27, 0
      %p304 = por %p302, %p303
      %p305 = scmp.ne.s32.totalorder %s297, %s299
      %p306 = scmp.eq.s32.totalorder %s32, 1
      %p307 = por %p305, %p306
      %p308 = scmp.ne.s32.totalorder %s299, %s300
      %p309 = scmp.eq.s32.totalorder %s32, 0
      %p310 = por %p308, %p309
      %p311 = scmp.ne.s32.totalorder %s299, %s300
      %p312 = scmp.eq.s32.totalorder %s33, 1
      %p313 = por %p311, %p312
      %p315 = scmp.ne.s32.totalorder %s300, %s314
      %p316 = scmp.eq.s32.totalorder %s33, 0
      %p317 = por %p315, %p316
      %s319 = sadd.s32 %s318, 1
      %p322 = scmp.eq.s32.totalorder %s27, 1
      %p323 = scmp.ne.s32.totalorder %s318, %s320
      %p324 = scmp.eq.s32.totalorder %s27, 0
      %p325 = por %p323, %p324
      %p326 = scmp.ne.s32.totalorder %s318, %s320
      %p327 = scmp.eq.s32.totalorder %s32, 1
      %p328 = por %p326, %p327
      %p329 = scmp.ne.s32.totalorder %s320, %s321
      %p330 = scmp.eq.s32.totalorder %s32, 0
      %p331 = por %p329, %p330
      %p332 = scmp.ne.s32.totalorder %s320, %s321
      %p333 = scmp.eq.s32.totalorder %s33, 1
      %p334 = por %p332, %p333
      %p336 = scmp.ne.s32.totalorder %s321, %s335
      %p337 = scmp.eq.s32.totalorder %s33, 0
      %p338 = por %p336, %p337
      %s339 = ssub.s32 %s27, %s34
      %p340 = scmp.eq.s32.totalorder %s339, 0
      %s342 = sadd.s32 %s341, 1
      %s343 = scalar_select %p340, %s341, %s342
      %p346 = pneg %p340
      %p347 = scmp.eq.s32.totalorder %s27, 1
      %p348 = por %p346, %p347
      %p349 = scmp.ne.s32.totalorder %s341, %s344
      %p350 = scmp.eq.s32.totalorder %s27, 0
      %p351 = por %p349, %p350
      %p352 = scmp.ne.s32.totalorder %s341, %s344
      %p353 = scmp.eq.s32.totalorder %s32, 1
      %p354 = por %p352, %p353
      %p355 = scmp.ne.s32.totalorder %s344, %s345
      %p356 = scmp.eq.s32.totalorder %s32, 0
      %p357 = por %p355, %p356
      %p358 = scmp.ne.s32.totalorder %s344, %s345
      %p359 = scmp.eq.s32.totalorder %s33, 1
      %p360 = por %p358, %p359
      %p362 = scmp.ne.s32.totalorder %s345, %s361
      %p363 = scmp.eq.s32.totalorder %s33, 0
      %p364 = por %p362, %p363
      %s365 = ssub.s32 %s27, %s34
      %p366 = scmp.eq.s32.totalorder %s365, 0
      %s368 = sadd.s32 %s367, 1
      %s369 = scalar_select %p366, %s367, %s368
      %p372 = pneg %p366
      %p373 = scmp.eq.s32.totalorder %s27, 1
      %p374 = por %p372, %p373
      %p375 = scmp.ne.s32.totalorder %s367, %s370
      %p376 = scmp.eq.s32.totalorder %s27, 0
      %p377 = por %p375, %p376
      %p378 = scmp.ne.s32.totalorder %s367, %s370
      %p379 = scmp.eq.s32.totalorder %s32, 1
      %p380 = por %p378, %p379
      %p381 = scmp.ne.s32.totalorder %s370, %s371
      %p382 = scmp.eq.s32.totalorder %s32, 0
      %p383 = por %p381, %p382
      %p384 = scmp.ne.s32.totalorder %s370, %s371
      %p385 = scmp.eq.s32.totalorder %s33, 1
      %p386 = por %p384, %p385
      %p388 = scmp.ne.s32.totalorder %s371, %s387
      %p389 = scmp.eq.s32.totalorder %s33, 0
      %p390 = por %p388, %p389
      %s391 = ssub.s32 %s27, %s34
      %p392 = scmp.eq.s32.totalorder %s391, 0
      %s394 = sadd.s32 %s393, 1
      %s395 = scalar_select %p392, %s393, %s394
      %p398 = pneg %p392
      %p399 = scmp.eq.s32.totalorder %s27, 1
      %p400 = por %p398, %p399
      %p401 = scmp.ne.s32.totalorder %s393, %s396
      %p402 = scmp.eq.s32.totalorder %s27, 0
      %p403 = por %p401, %p402
      %p404 = scmp.ne.s32.totalorder %s393, %s396
      %p405 = scmp.eq.s32.totalorder %s32, 1
      %p406 = por %p404, %p405
      %p407 = scmp.ne.s32.totalorder %s396, %s397
      %p408 = scmp.eq.s32.totalorder %s32, 0
      %p409 = por %p407, %p408
      %p410 = scmp.ne.s32.totalorder %s396, %s397
      %p411 = scmp.eq.s32.totalorder %s33, 1
      %p412 = por %p410, %p411
      %p414 = scmp.ne.s32.totalorder %s397, %s413
      %p415 = scmp.eq.s32.totalorder %s33, 0
      %p416 = por %p414, %p415
      %s417 = ssub.s32 %s27, %s34
      %p418 = scmp.eq.s32.totalorder %s417, 0
      %s420 = sadd.s32 %s419, 1
      %s421 = scalar_select %p418, %s419, %s420
      %p424 = pneg %p418
      %p425 = scmp.eq.s32.totalorder %s27, 1
      %p426 = por %p424, %p425
      %p427 = scmp.ne.s32.totalorder %s419, %s422
      %p428 = scmp.eq.s32.totalorder %s27, 0
      %p429 = por %p427, %p428
      %p430 = scmp.ne.s32.totalorder %s419, %s422
      %p431 = scmp.eq.s32.totalorder %s32, 1
      %p432 = por %p430, %p431
      %p433 = scmp.ne.s32.totalorder %s422, %s423
      %p434 = scmp.eq.s32.totalorder %s32, 0
      %p435 = por %p433, %p434
      %p436 = scmp.ne.s32.totalorder %s422, %s423
      %p437 = scmp.eq.s32.totalorder %s33, 1
      %p438 = por %p436, %p437
      %p440 = scmp.ne.s32.totalorder %s423, %s439
      %p441 = scmp.eq.s32.totalorder %s33, 0
      %p442 = por %p440, %p441
      %s443 = ssub.s32 %s27, %s34
      %p444 = scmp.eq.s32.totalorder %s443, 0
      %s446 = sadd.s32 %s445, 1
      %s447 = scalar_select %p444, %s445, %s446
      %p450 = pneg %p444
      %p451 = scmp.eq.s32.totalorder %s27, 1
      %p452 = por %p450, %p451
      %p453 = scmp.ne.s32.totalorder %s445, %s448
      %p454 = scmp.eq.s32.totalorder %s27, 0
      %p455 = por %p453, %p454
      %p456 = scmp.ne.s32.totalorder %s445, %s448
      %p457 = scmp.eq.s32.totalorder %s32, 1
      %p458 = por %p456, %p457
      %p459 = scmp.ne.s32.totalorder %s448, %s449
      %p460 = scmp.eq.s32.totalorder %s32, 0
      %p461 = por %p459, %p460
      %p462 = scmp.ne.s32.totalorder %s448, %s449
      %p463 = scmp.eq.s32.totalorder %s33, 1
      %p464 = por %p462, %p463
      %p466 = scmp.ne.s32.totalorder %s449, %s465
      %p467 = scmp.eq.s32.totalorder %s33, 0
      %p468 = por %p466, %p467
      %p469 = scmp.le.s32.totalorder 1, %s27
      %p470 = scmp.lt.s32.totalorder %s27, 3
      %p471 = pnand %p469, %p470
      %p472 = pneg %p471
      // Predicated region
      $region9: #{transformer_decoder.4} parent=5 // pred_check
        _
      $region10: #{transformer_decoder.4} parent=5 // pred_check_branch
        %474 = sbr.rel (%p471) target = $region12
      $region11: #{transformer_decoder.4} parent=5 // pred_region
        %s475 = ssub.s32 %s27, 1
        // Predicated region
        $region13: #{transformer_decoder.4} parent=11 // pred_check
          %p476 = pneg %p100
        $region14: #{transformer_decoder.4} parent=11 // pred_check_branch
          %478 = sbr.rel (%p476) target = $region16
        $region15: #{transformer_decoder.4} parent=11 // pred_region
          _
        $region16: #{transformer_decoder.4} parent=11 // pred_fallthru
          _
        // Predicated region
        $region17: #{transformer_decoder.4} parent=11 // pred_check
          %p479 = pneg %p121
        $region18: #{transformer_decoder.4} parent=11 // pred_check_branch
          %481 = sbr.rel (%p479) target = $region20
        $region19: #{transformer_decoder.4} parent=11 // pred_region
          _
        $region20: #{transformer_decoder.4} parent=11 // pred_fallthru
          _
        // Predicated region
        $region21: #{transformer_decoder.4} parent=11 // pred_check
          %p482 = pneg %p142
        $region22: #{transformer_decoder.4} parent=11 // pred_check_branch
          %484 = sbr.rel (%p482) target = $region24
        $region23: #{transformer_decoder.4} parent=11 // pred_region
          _
        $region24: #{transformer_decoder.4} parent=11 // pred_fallthru
          _
        // Predicated region
        $region25: #{transformer_decoder.4} parent=11 // pred_check
          %p485 = pneg %p163
        $region26: #{transformer_decoder.4} parent=11 // pred_check_branch
          %487 = sbr.rel (%p485) target = $region28
        $region27: #{transformer_decoder.4} parent=11 // pred_region
          _
        $region28: #{transformer_decoder.4} parent=11 // pred_fallthru
          _
        // Predicated region
        $region29: #{transformer_decoder.4} parent=11 // pred_check
          %p488 = pneg %p184
        $region30: #{transformer_decoder.4} parent=11 // pred_check_branch
          %490 = sbr.rel (%p488) target = $region32
        $region31: #{transformer_decoder.4} parent=11 // pred_region
          _
        $region32: #{transformer_decoder.4} parent=11 // pred_fallthru
          _
        // Predicated region
        $region33: #{transformer_decoder.4} parent=11 // pred_check
          %p491 = pneg %p205
        $region34: #{transformer_decoder.4} parent=11 // pred_check_branch
          %493 = sbr.rel (%p491) target = $region36
        $region35: #{transformer_decoder.4} parent=11 // pred_region
          _
        $region36: #{transformer_decoder.4} parent=11 // pred_fallthru
          _
        // Predicated region
        $region37: #{transformer_decoder.4} parent=11 // pred_check
          %p494 = pneg %p226
        $region38: #{transformer_decoder.4} parent=11 // pred_check_branch
          %496 = sbr.rel (%p494) target = $region40
        $region39: #{transformer_decoder.4} parent=11 // pred_region
          _
        $region40: #{transformer_decoder.4} parent=11 // pred_fallthru
          _
        // Predicated region
        $region41: #{transformer_decoder.4} parent=11 // pred_check
          %p497 = pneg %p247
        $region42: #{transformer_decoder.4} parent=11 // pred_check_branch
          %499 = sbr.rel (%p497) target = $region44
        $region43: #{transformer_decoder.4} parent=11 // pred_region
          %501 = vsyncadd [#allocation4], 0
          %s502 = sshll.u32 %s9, 4
          %s503 = int_to_ptr.hbm [resolvable:$true] %s502
          %s504 = sshll.u32 [#allocation3], 4
          %s505 = int_to_ptr.vmem [resolvable:$true] %s504
          %510 = dma.hbm_to_vmem [thread:$0]  %s503, 512, %s505, [#allocation4], 64, 64, 4
        $region44: #{transformer_decoder.4} parent=11 // pred_fallthru
          _
        // Predicated region
        $region45: #{transformer_decoder.4} parent=11 // pred_check
          %p511 = pneg %p268
        $region46: #{transformer_decoder.4} parent=11 // pred_check_branch
          %513 = sbr.rel (%p511) target = $region48
        $region47: #{transformer_decoder.4} parent=11 // pred_region
          %515 = vsyncadd [#allocation6], 0
          %s516 = sshll.u32 %s10, 4
          %s517 = int_to_ptr.hbm [resolvable:$true] %s516
          %s518 = sshll.u32 [#allocation5], 4
          %s519 = int_to_ptr.vmem [resolvable:$true] %s518
          %524 = dma.hbm_to_vmem [thread:$0]  %s517, 512, %s519, [#allocation6], 64, 64, 4
        $region48: #{transformer_decoder.4} parent=11 // pred_fallthru
          _
        // Predicated region
        $region49: #{transformer_decoder.4} parent=11 // pred_check
          %p525 = pneg %p289
        $region50: #{transformer_decoder.4} parent=11 // pred_check_branch
          %527 = sbr.rel (%p525) target = $region52
        $region51: #{transformer_decoder.4} parent=11 // pred_region
          _
        $region52: #{transformer_decoder.4} parent=11 // pred_fallthru
          _
        // Predicated region
        $region53: #{transformer_decoder.4} parent=11 // pred_check
          %p528 = pneg %p310
        $region54: #{transformer_decoder.4} parent=11 // pred_check_branch
          %530 = sbr.rel (%p528) target = $region56
        $region55: #{transformer_decoder.4} parent=11 // pred_region
          %532 = vsyncadd [#allocation6], 0
          %s533 = sshll.u32 %s12, 4
          %s534 = int_to_ptr.hbm [resolvable:$true] %s533
          %s535 = sshll.u32 [#allocation7], 4
          %s536 = int_to_ptr.vmem [resolvable:$true] %s535
          %541 = dma.hbm_to_vmem [thread:$0]  %s534, 256, %s536, [#allocation6], 128, 128, 8
        $region56: #{transformer_decoder.4} parent=11 // pred_fallthru
          _
        // Predicated region
        $region57: #{transformer_decoder.4} parent=11 // pred_check
          %p542 = pneg %p331
        $region58: #{transformer_decoder.4} parent=11 // pred_check_branch
          %544 = sbr.rel (%p542) target = $region60
        $region59: #{transformer_decoder.4} parent=11 // pred_region
          _
        $region60: #{transformer_decoder.4} parent=11 // pred_fallthru
          _
      $region12: #{transformer_decoder.4} parent=5 // pred_fallthru
        _
      %p545 = scmp.lt.s32.totalorder %s27, 2
      // Predicated region
      $region61: #{transformer_decoder.4} parent=5 // pred_check
        %p546 = pneg %p545
      $region62: #{transformer_decoder.4} parent=5 // pred_check_branch
        %548 = sbr.rel (%p546) target = $region64
      $region63: #{transformer_decoder.4} parent=5 // pred_region
        // Predicated region
        $region65: #{transformer_decoder.4} parent=63 // pred_check
          %p549 = pneg %p47
        $region66: #{transformer_decoder.4} parent=63 // pred_check_branch
          %551 = sbr.rel (%p549) target = $region68
        $region67: #{transformer_decoder.4} parent=63 // pred_region
          %p552 = scmp.lt.s32.totalorder %s27, 1
          %s553 = scalar_select %p552, %s27, 1
          %s554 = smul.addr %s553, 8
          %s555 = scalar_lea.vmem %s0, %s554
        $region68: #{transformer_decoder.4} parent=63 // pred_fallthru
          _
        // Predicated region
        $region69: #{transformer_decoder.4} parent=63 // pred_check
          %p556 = pneg %p73
        $region70: #{transformer_decoder.4} parent=63 // pred_check_branch
          %558 = sbr.rel (%p556) target = $region72
        $region71: #{transformer_decoder.4} parent=63 // pred_region
          %p559 = scmp.lt.s32.totalorder %s27, 1
          %s560 = scalar_select %p559, %s27, 1
          %s561 = smul.addr %s560, 8
          %s562 = scalar_lea.vmem %s1, %s561
        $region72: #{transformer_decoder.4} parent=63 // pred_fallthru
          _
      $region64: #{transformer_decoder.4} parent=5 // pred_fallthru
        _
      %p563 = scmp.le.s32.totalorder 1, %s27
      %p564 = scmp.lt.s32.totalorder %s27, 3
      %p565 = pnand %p563, %p564
      %p566 = pneg %p565
      // Predicated region
      $region73: #{transformer_decoder.4} parent=5 // pred_check
        _
      $region74: #{transformer_decoder.4} parent=5 // pred_check_branch
        %568 = sbr.rel (%p565) target = $region76
      $region75: #{transformer_decoder.4} parent=5 // pred_region
        %s569 = ssub.s32 %s27, 1
        // Predicated region
        $region77: #{transformer_decoder.4} parent=75 // pred_check
          %p570 = pneg %p247
        $region78: #{transformer_decoder.4} parent=75 // pred_check_branch
          %572 = sbr.rel (%p570) target = $region80
        $region79: #{transformer_decoder.4} parent=75 // pred_region
          %574 = dma.done [#allocation4], 512
        $region80: #{transformer_decoder.4} parent=75 // pred_fallthru
          _
        // Predicated region
        $region81: #{transformer_decoder.4} parent=75 // pred_check
          %p575 = pneg %p268
        $region82: #{transformer_decoder.4} parent=75 // pred_check_branch
          %577 = sbr.rel (%p575) target = $region84
        $region83: #{transformer_decoder.4} parent=75 // pred_region
          %579 = dma.done [#allocation6], 512
        $region84: #{transformer_decoder.4} parent=75 // pred_fallthru
          _
        // Predicated region
        $region85: #{transformer_decoder.4} parent=75 // pred_check
          %p580 = pneg %p310
        $region86: #{transformer_decoder.4} parent=75 // pred_check_branch
          %582 = sbr.rel (%p580) target = $region88
        $region87: #{transformer_decoder.4} parent=75 // pred_region
          %584 = dma.done [#allocation6], 256
        $region88: #{transformer_decoder.4} parent=75 // pred_fallthru
          _
        %p585 = scmp.lt.s32.totalorder %s32, 1
        %s586 = scalar_select %p585, %s32, 1
        %s587 = smul.addr %s586, 8
        %s588 = scalar_lea.vmem %s0, %s587
        %p589 = pneg %p53
        %p590 = pneg %p50
        %p591 = scmp.lt.s32.totalorder %s32, 1
        %s592 = scalar_select %p591, %s32, 1
        %s593 = smul.addr %s592, 8
        %s594 = scalar_lea.vmem %s1, %s593
        %p595 = pneg %p79
        %p596 = pneg %p76
        %p597 = pneg %p100
        %p598 = pneg %p97
        %p599 = pneg %p121
        %p600 = pneg %p118
        %p601 = pneg %p142
        %p602 = pneg %p139
        %p603 = pneg %p163
        %p604 = pneg %p160
        %p605 = pneg %p184
        %p606 = pneg %p181
        %p607 = pneg %p205
        %p608 = pneg %p202
        %p609 = pneg %p226
        %p610 = pneg %p223
        %p611 = pneg %p247
        %p612 = pneg %p244
        %p613 = pneg %p268
        %p614 = pneg %p265
        %p615 = pneg %p289
        %p616 = pneg %p286
        %p617 = pneg %p310
        %p618 = pneg %p307
        %p619 = pneg %p331
        %p620 = pneg %p328
        %p621 = pneg %p357
        %p622 = pneg %p354
        %p623 = scmp.lt.s32.totalorder %s32, 1
        %s624 = scalar_select %p623, %s32, 1
        %s625 = smul.addr %s624, 8
        %s626 = scalar_lea.vmem %s14, %s625
        %p627 = pneg %p383
        %p628 = pneg %p380
        %p629 = scmp.lt.s32.totalorder %s32, 1
        %s630 = scalar_select %p629, %s32, 1
        %s631 = smul.addr %s630, 4
        %s632 = scalar_lea.vmem %s15, %s631
        %p633 = pneg %p409
        %p634 = pneg %p406
        %p635 = scmp.lt.s32.totalorder %s32, 1
        %s636 = scalar_select %p635, %s32, 1
        %s637 = smul.addr %s636, 4
        %s638 = scalar_lea.vmem %s16, %s637
        %p639 = pneg %p435
        %p640 = pneg %p432
        %p641 = scmp.lt.s32.totalorder %s32, 1
        %s642 = scalar_select %p641, %s32, 1
        %s643 = smul.addr %s642, 4
        %s644 = scalar_lea.vmem %s17, %s643
        %p645 = pneg %p461
        %p646 = pneg %p458
        %p647 = scmp.lt.s32.totalorder %s32, 1
        %s648 = scalar_select %p647, %s32, 1
        %s649 = smul.addr %s648, 4
        %s650 = scalar_lea.vmem %s18, %s649
        %p651 = scmp.lt.s32.totalorder %s32, 1
        %s652 = scalar_select %p651, %s32, 1
        %s653 = smul.addr %s652, 8
        %s654 = scalar_lea.vmem %s0, %s653
        %p655 = scmp.lt.s32.totalorder %s32, 1
        %s656 = scalar_select %p655, %s32, 1
        %s657 = smul.addr %s656, 8
        %s658 = scalar_lea.vmem %s1, %s657
        %p659 = scmp.lt.s32.totalorder %s32, 1
        %s660 = scalar_select %p659, %s32, 1
        %s661 = smul.addr %s660, 8
        %s662 = scalar_lea.vmem %s14, %s661
        %p663 = scmp.lt.s32.totalorder %s32, 1
        %s664 = scalar_select %p663, %s32, 1
        %s665 = smul.addr %s664, 4
        %s666 = scalar_lea.vmem %s15, %s665
        %p667 = scmp.lt.s32.totalorder %s32, 1
        %s668 = scalar_select %p667, %s32, 1
        %s669 = smul.addr %s668, 4
        %s670 = scalar_lea.vmem %s16, %s669
        %p671 = scmp.lt.s32.totalorder %s32, 1
        %s672 = scalar_select %p671, %s32, 1
        %s673 = smul.addr %s672, 4
        %s674 = scalar_lea.vmem %s17, %s673
        %p675 = scmp.lt.s32.totalorder %s32, 1
        %s676 = scalar_select %p675, %s32, 1
        %s677 = smul.addr %s676, 4
        %s678 = scalar_lea.vmem %s18, %s677
        %v680 = vld [vmem:[%s654] sm:$0xff]
        %v681 = vld [vmem:[%s658] sm:$0xff]
        %v682 = vld [vmem:[#allocation7] sm:$0xff]
        %v683 = vld [vmem:[#allocation7 + $0x8] sm:$0xff]
        %v684 = vld [vmem:[%s2] sm:$0xf]
        %v685 = vld [vmem:[%s2 + $0x4] sm:$0xf]
        %v686 = vld [vmem:[%s2 + $0x8] sm:$0xf]
        %v687 = vld [vmem:[%s2 + $0xc] sm:$0xf]
        %v688 = vld [vmem:[%s2 + $0x10] sm:$0xf]
        %v689 = vld [vmem:[%s2 + $0x14] sm:$0xf]
        %v690 = vld [vmem:[%s2 + $0x18] sm:$0xf]
        %v691 = vld [vmem:[%s2 + $0x1c] sm:$0xf]
        %v692 = vld [vmem:[%s3] sm:$0xf]
        %v693 = vld [vmem:[%s3 + $0x4] sm:$0xf]
        %v694 = vld [vmem:[%s3 + $0x8] sm:$0xf]
        %v695 = vld [vmem:[%s3 + $0xc] sm:$0xf]
        %v696 = vld [vmem:[%s3 + $0x10] sm:$0xf]
        %v697 = vld [vmem:[%s3 + $0x14] sm:$0xf]
        %v698 = vld [vmem:[%s3 + $0x18] sm:$0xf]
        %v699 = vld [vmem:[%s3 + $0x1c] sm:$0xf]
        %v700 = vld [vmem:[%s4] sm:$0xf]
        %v701 = vld [vmem:[%s4 + $0x4] sm:$0xf]
        %v702 = vld [vmem:[%s4 + $0x8] sm:$0xf]
        %v703 = vld [vmem:[%s4 + $0xc] sm:$0xf]
        %v704 = vld [vmem:[%s4 + $0x10] sm:$0xf]
        %v705 = vld [vmem:[%s4 + $0x14] sm:$0xf]
        %v706 = vld [vmem:[%s4 + $0x18] sm:$0xf]
        %v707 = vld [vmem:[%s4 + $0x1c] sm:$0xf]
        %v708 = vld [vmem:[%s5] sm:$0xf]
        %v709 = vld [vmem:[%s5 + $0x4] sm:$0xf]
        %v710 = vld [vmem:[%s5 + $0x8] sm:$0xf]
        %v711 = vld [vmem:[%s5 + $0xc] sm:$0xf]
        %v712 = vld [vmem:[%s5 + $0x10] sm:$0xf]
        %v713 = vld [vmem:[%s5 + $0x14] sm:$0xf]
        %v714 = vld [vmem:[%s5 + $0x18] sm:$0xf]
        %v715 = vld [vmem:[%s5 + $0x1c] sm:$0xf]
        %v716 = vpack.c.bf16 %v680, %v680
        %v717 = vperm.slane %v682, 0
        %v726 = vunpack.c.l.b16 %v684
        %v727 = vunpack.c.l.b16 %v685
        %v728 = vunpack.c.l.b16 %v686
        %v729 = vunpack.c.l.b16 %v687
        %v730 = vunpack.c.l.b16 %v688
        %v731 = vunpack.c.l.b16 %v689
        %v732 = vunpack.c.l.b16 %v690
        %v733 = vunpack.c.l.b16 %v691
        %v734 = vpack.c.b16 %v727, %v726
        %v735 = vpack.c.b16 %v729, %v728
        %v736 = vpack.c.b16 %v731, %v730
        %v737 = vpack.c.b16 %v733, %v732
        %vm742 = vcmask 523264
        %v744 = vsel %vm742, %v716, 0
        %746 = vmatpush.bf16.msra.mxu0 0
        %747 = vmatpush.bf16.msra.mxu0 0
        %748 = vmatpush.bf16.msra.mxu0 0
        %749 = vmatpush.bf16.msra.mxu0 0
        %750 = vmatpush.bf16.msra.mxu0 %v737
        %751 = vmatpush.bf16.msra.mxu0 %v736
        %752 = vmatpush.bf16.msra.mxu0 %v735
        %753 = vmatpush.bf16.msra.mxu0 %v734
        %754 = vmatmul.bf16.gmra.mxu0 %v744
        %v755 = vpop.f32.mrf.mxu0
        %v756 = vadd.f32 %v717, %v755
        %v757 = vpop.f32.mrf.mxu0
        %758 = vdwg.mxu0
        %v759 = vperm.slane %v682, 1
        %v768 = vunpack.c.l.b16 %v692
        %v769 = vunpack.c.l.b16 %v693
        %v770 = vunpack.c.l.b16 %v694
        %v771 = vunpack.c.l.b16 %v695
        %v772 = vunpack.c.l.b16 %v696
        %v773 = vunpack.c.l.b16 %v697
        %v774 = vunpack.c.l.b16 %v698
        %v775 = vunpack.c.l.b16 %v699
        %v776 = vpack.c.b16 %v769, %v768
        %v777 = vpack.c.b16 %v771, %v770
        %v778 = vpack.c.b16 %v773, %v772
        %v779 = vpack.c.b16 %v775, %v774
        %784 = vmatpush.bf16.msra.mxu0 0
        %785 = vmatpush.bf16.msra.mxu0 0
        %786 = vmatpush.bf16.msra.mxu0 0
        %787 = vmatpush.bf16.msra.mxu0 0
        %788 = vmatpush.bf16.msra.mxu0 %v779
        %789 = vmatpush.bf16.msra.mxu0 %v778
        %790 = vmatpush.bf16.msra.mxu0 %v777
        %791 = vmatpush.bf16.msra.mxu0 %v776
        %792 = vmatmul.bf16.gmra.mxu0 %v744
        %v793 = vpop.f32.mrf.mxu0
        %v794 = vadd.f32 %v759, %v793
        %v795 = vpop.f32.mrf.mxu0
        %796 = vdwg.mxu0
        %v797 = vperm.slane %v682, 2
        %v806 = vunpack.c.l.b16 %v700
        %v807 = vunpack.c.l.b16 %v701
        %v808 = vunpack.c.l.b16 %v702
        %v809 = vunpack.c.l.b16 %v703
        %v810 = vunpack.c.l.b16 %v704
        %v811 = vunpack.c.l.b16 %v705
        %v812 = vunpack.c.l.b16 %v706
        %v813 = vunpack.c.l.b16 %v707
        %v814 = vpack.c.b16 %v807, %v806
        %v815 = vpack.c.b16 %v809, %v808
        %v816 = vpack.c.b16 %v811, %v810
        %v817 = vpack.c.b16 %v813, %v812
        %822 = vmatpush.bf16.msra.mxu0 0
        %823 = vmatpush.bf16.msra.mxu0 0
        %824 = vmatpush.bf16.msra.mxu0 0
        %825 = vmatpush.bf16.msra.mxu0 0
        %826 = vmatpush.bf16.msra.mxu0 %v817
        %827 = vmatpush.bf16.msra.mxu0 %v816
        %828 = vmatpush.bf16.msra.mxu0 %v815
        %829 = vmatpush.bf16.msra.mxu0 %v814
        %830 = vmatmul.bf16.gmra.mxu0 %v744
        %v831 = vpop.f32.mrf.mxu0
        %v832 = vadd.f32 %v797, %v831
        %v833 = vpop.f32.mrf.mxu0
        %834 = vdwg.mxu0
        %v835 = vpack.c.bf16 %v756, %v756
        %v836 = vpack.c.bf16 %v794, %v794
        %v837 = vpack.c.bf16 %v832, %v832
        %v838 = vlaneseq
        %v839 = vshrl.u32 %v838, 7
        %v840 = vlaneseq
        %v841 = vand.u32 %v840, 127
        %vm842 = vcmp.gt.s32.totalorder %v841, %v839
        %vm843 = vcmask 261120
        %v845 = vsel %vm843, %v835, 0
        %v848 = vsel %vm843, %v836, 0
        %850 = vmatpush.bf16.xpose.msra.mxu0 0
        %851 = vmatpush.bf16.xpose.msra.mxu0 0
        %852 = vmatpush.bf16.xpose.msra.mxu0 0
        %853 = vmatpush.bf16.xpose.msra.mxu0 0
        %854 = vmatpush.bf16.xpose.msra.mxu0 0
        %855 = vmatpush.bf16.xpose.msra.mxu0 0
        %856 = vmatpush.bf16.xpose.msra.mxu0 0
        %857 = vmatpush.bf16.xpose.msra.mxu0 %v848
        %858 = vmatmul.bf16.gmra.mxu0 %v845
        %v859 = vpop.f32.mrf.mxu0
        %v860 = vadd.f32 0.0, %v859
        %v861 = vpop.f32.mrf.mxu0
        %862 = vdwg.mxu0
        %v863 = vmul.f32 %v860, 0.17677669
        %v864 = vsel %vm842, -inf, %v863
        %vm865 = vcmask 64512
        %v866 = vsel %vm865, %v864, -inf
        %867 = vmax.xlane.f32.xlu0 %v866
        %v868 = vpop.xlane.xlu0 %867
        %v869 = vsub.f32 %v864, %v868
        %v870 = vmul.f32 %v869, 1.442695
        %v871 = vpow.pop %v870
        %v872 = vsel %vm865, %v871, 0.0
        %873 = vadd.xlane.f32.xlu0 %v872
        %v874 = vpop.xlane.xlu0 %873
        %v875 = vrcp.pop %v874
        %v876 = vmul.f32 %v871, %v875
        %v877 = vpack.c.bf16 %v876, %v876
        %v879 = vsel %vm865, %v877, 0
        %vm881 = vcmask 1043456
        %v883 = vsel %vm881, %v837, 0
        %885 = vmatpush.bf16.msra.mxu0 0
        %886 = vmatpush.bf16.msra.mxu0 0
        %887 = vmatpush.bf16.msra.mxu0 0
        %888 = vmatpush.bf16.msra.mxu0 0
        %889 = vmatpush.bf16.msra.mxu0 0
        %890 = vmatpush.bf16.msra.mxu0 0
        %891 = vmatpush.bf16.msra.mxu0 0
        %892 = vmatpush.bf16.msra.mxu0 %v883
        %893 = vmatmul.bf16.gmra.mxu0 %v879
        %v894 = vpop.f32.mrf.mxu0
        %v895 = vadd.f32 0.0, %v894
        %v896 = vpop.f32.mrf.mxu0
        %897 = vdwg.mxu0
        %v898 = vpack.c.bf16 %v895, %v895
        %vm899 = vcmask 257024
        %900 = vst.msk [vmem:[#allocation2] sm:$0xf] %vm899, %v898
        %v902 = vunpack.c.l.b16 %v835
        %v903 = vpack.c.b16 %v902, %v902
        %904 = vrot.lane.b32.xlu0 %v903, 96
        %v905 = vpop.permute.xlu0 %904
        %v907 = vunpack.c.l.b16 %v836
        %v908 = vpack.c.b16 %v907, %v907
        %909 = vrot.lane.b32.xlu0 %v908, 96
        %v910 = vpop.permute.xlu0 %909
        %v912 = vsel %vm843, %v905, 0
        %v915 = vsel %vm843, %v910, 0
        %917 = vmatpush.bf16.xpose.msra.mxu0 0
        %918 = vmatpush.bf16.xpose.msra.mxu0 0
        %919 = vmatpush.bf16.xpose.msra.mxu0 0
        %920 = vmatpush.bf16.xpose.msra.mxu0 0
        %921 = vmatpush.bf16.xpose.msra.mxu0 0
        %922 = vmatpush.bf16.xpose.msra.mxu0 0
        %923 = vmatpush.bf16.xpose.msra.mxu0 0
        %924 = vmatpush.bf16.xpose.msra.mxu0 %v915
        %925 = vmatmul.bf16.gmra.mxu0 %v912
        %v926 = vpop.f32.mrf.mxu0
        %v927 = vadd.f32 0.0, %v926
        %v928 = vpop.f32.mrf.mxu0
        %929 = vdwg.mxu0
        %v930 = vmul.f32 %v927, 0.17677669
        %v931 = vsel %vm842, -inf, %v930
        %v932 = vsel %vm865, %v931, -inf
        %933 = vmax.xlane.f32.xlu0 %v932
        %v934 = vpop.xlane.xlu0 %933
        %v935 = vsub.f32 %v931, %v934
        %v936 = vmul.f32 %v935, 1.442695
        %v937 = vpow.pop %v936
        %v938 = vsel %vm865, %v937, 0.0
        %939 = vadd.xlane.f32.xlu0 %v938
        %v940 = vpop.xlane.xlu0 %939
        %v941 = vrcp.pop %v940
        %v942 = vmul.f32 %v937, %v941
        %v943 = vpack.c.bf16 %v942, %v942
        %v945 = vunpack.c.l.b16 %v837
        %v946 = vpack.c.b16 %v945, %v945
        %947 = vrot.lane.b32.xlu0 %v946, 96
        %v948 = vpop.permute.xlu0 %947
        %v950 = vsel %vm865, %v943, 0
        %v953 = vsel %vm881, %v948, 0
        %955 = vmatpush.bf16.msra.mxu0 0
        %956 = vmatpush.bf16.msra.mxu0 0
        %957 = vmatpush.bf16.msra.mxu0 0
        %958 = vmatpush.bf16.msra.mxu0 0
        %959 = vmatpush.bf16.msra.mxu0 0
        %960 = vmatpush.bf16.msra.mxu0 0
        %961 = vmatpush.bf16.msra.mxu0 0
        %962 = vmatpush.bf16.msra.mxu0 %v953
        %963 = vmatmul.bf16.gmra.mxu0 %v950
        %v964 = vpop.f32.mrf.mxu0
        %v965 = vadd.f32 0.0, %v964
        %v966 = vpop.f32.mrf.mxu0
        %967 = vdwg.mxu0
        %v968 = vpack.c.bf16 %v965, %v965
        %970 = vrot.lane.b32.xlu0 %v968, 32
        %v971 = vpop.permute.xlu0 %970
        %vm973 = vcmask 519424
        %974 = vst.msk [vmem:[#allocation2] sm:$0xf] %vm973, %v971
        %v975 = vld [vmem:[#allocation2] sm:$0xf]
        %v976 = vperm.slane %v682, 3
        %v985 = vunpack.c.l.b16 %v708
        %v986 = vunpack.c.l.b16 %v709
        %v987 = vunpack.c.l.b16 %v710
        %v988 = vunpack.c.l.b16 %v711
        %v989 = vunpack.c.l.b16 %v712
        %v990 = vunpack.c.l.b16 %v713
        %v991 = vunpack.c.l.b16 %v714
        %v992 = vunpack.c.l.b16 %v715
        %v993 = vpack.c.b16 %v986, %v985
        %v994 = vpack.c.b16 %v988, %v987
        %v995 = vpack.c.b16 %v990, %v989
        %v996 = vpack.c.b16 %v992, %v991
        %v1002 = vsel %vm742, %v975, 0
        %1004 = vmatpush.bf16.msra.mxu0 0
        %1005 = vmatpush.bf16.msra.mxu0 0
        %1006 = vmatpush.bf16.msra.mxu0 0
        %1007 = vmatpush.bf16.msra.mxu0 0
        %1008 = vmatpush.bf16.msra.mxu0 %v996
        %1009 = vmatpush.bf16.msra.mxu0 %v995
        %1010 = vmatpush.bf16.msra.mxu0 %v994
        %1011 = vmatpush.bf16.msra.mxu0 %v993
        %1012 = vmatmul.bf16.gmra.mxu0 %v1002
        %v1013 = vpop.f32.mrf.mxu0
        %v1014 = vadd.f32 %v976, %v1013
        %v1015 = vpop.f32.mrf.mxu0
        %1016 = vdwg.mxu0
        %vm1017 = vcmask 519168
        %1018 = vst.msk [vmem:[%s666] sm:$0xf] %vm1017, %v836
        %1019 = vst.msk [vmem:[%s670] sm:$0xf] %vm1017, %v837
        %v1020 = vsel %vm742, %v1014, 0.0
        %1021 = vadd.xlane.f32.xlu0 %v1020
        %v1022 = vpop.xlane.xlu0 %1021
        %v1023 = vrcp.pop 64.0
        %v1024 = vmul.f32 64.0, %v1023
        %v1025 = vsub.f32 1.0, %v1024
        %v1026 = vmul.f32 %v1023, %v1025
        %v1027 = vadd.f32 %v1023, %v1026
        %vm1028 = vweird.f32 %v1023
        %v1029 = vsel %vm1028, %v1023, %v1027
        %v1030 = vmul.f32 %v1022, %v1029
        %v1031 = vsub.f32 %v1014, %v1030
        %v1032 = vmul.f32 %v1031, %v1031
        %v1033 = vsel %vm742, %v1032, 0.0
        %1034 = vadd.xlane.f32.xlu0 %v1033
        %v1035 = vpop.xlane.xlu0 %1034
        %v1036 = vmul.f32 %v1035, %v1029
        %v1037 = vadd.f32 %v1036, 1e-05
        %v1038 = vrsqrt.pop %v1037
        %v1039 = vmul.f32 %v1038, %v1037
        %v1040 = vmul.f32 %v1039, %v1038
        %v1041 = vmul.f32 0.5, %v1040
        %v1042 = vsub.f32 1.5, %v1041
        %v1043 = vmul.f32 %v1038, %v1042
        %vm1044 = vweird.f32 %v1037
        %vm1045 = vweird.f32 %v1038
        %vm1046 = vmor %vm1044, %vm1045
        %v1047 = vsel %vm1046, %v1038, %v1043
        %v1048 = vmul.f32 %v1031, %v1047
        %v1049 = vperm.slane %v682, 4
        %v1050 = vmul.f32 %v1048, %v1049
        %v1051 = vperm.slane %v682, 5
        %v1052 = vadd.f32 %v1050, %v1051
        %v1053 = vadd.f32 %v680, %v1052
        %v1054 = vld [vmem:[%s6] sm:$0xf]
        %v1055 = vld [vmem:[%s6 + $0x4] sm:$0xf]
        %v1056 = vld [vmem:[%s6 + $0x8] sm:$0xf]
        %v1057 = vld [vmem:[%s6 + $0xc] sm:$0xf]
        %v1058 = vld [vmem:[%s6 + $0x10] sm:$0xf]
        %v1059 = vld [vmem:[%s6 + $0x14] sm:$0xf]
        %v1060 = vld [vmem:[%s6 + $0x18] sm:$0xf]
        %v1061 = vld [vmem:[%s6 + $0x1c] sm:$0xf]
        %v1062 = vld [vmem:[%s7] sm:$0xf]
        %v1063 = vld [vmem:[%s7 + $0x4] sm:$0xf]
        %v1064 = vld [vmem:[%s7 + $0x8] sm:$0xf]
        %v1065 = vld [vmem:[%s7 + $0xc] sm:$0xf]
        %v1066 = vld [vmem:[%s7 + $0x10] sm:$0xf]
        %v1067 = vld [vmem:[%s7 + $0x14] sm:$0xf]
        %v1068 = vld [vmem:[%s7 + $0x18] sm:$0xf]
        %v1069 = vld [vmem:[%s7 + $0x1c] sm:$0xf]
        %v1070 = vld [vmem:[%s8] sm:$0xf]
        %v1071 = vld [vmem:[%s8 + $0x4] sm:$0xf]
        %v1072 = vld [vmem:[%s8 + $0x8] sm:$0xf]
        %v1073 = vld [vmem:[%s8 + $0xc] sm:$0xf]
        %v1074 = vld [vmem:[%s8 + $0x10] sm:$0xf]
        %v1075 = vld [vmem:[%s8 + $0x14] sm:$0xf]
        %v1076 = vld [vmem:[%s8 + $0x18] sm:$0xf]
        %v1077 = vld [vmem:[%s8 + $0x1c] sm:$0xf]
        %v1078 = vld [vmem:[#allocation3] sm:$0xf]
        %v1079 = vld [vmem:[#allocation3 + $0x4] sm:$0xf]
        %v1080 = vld [vmem:[#allocation3 + $0x8] sm:$0xf]
        %v1081 = vld [vmem:[#allocation3 + $0xc] sm:$0xf]
        %v1082 = vld [vmem:[#allocation3 + $0x10] sm:$0xf]
        %v1083 = vld [vmem:[#allocation3 + $0x14] sm:$0xf]
        %v1084 = vld [vmem:[#allocation3 + $0x18] sm:$0xf]
        %v1085 = vld [vmem:[#allocation3 + $0x1c] sm:$0xf]
        %v1086 = vpack.c.bf16 %v1053, %v1053
        %v1087 = vpack.c.bf16 %v681, %v681
        %v1088 = vperm.slane %v682, 6
        %v1097 = vunpack.c.l.b16 %v1054
        %v1098 = vunpack.c.l.b16 %v1055
        %v1099 = vunpack.c.l.b16 %v1056
        %v1100 = vunpack.c.l.b16 %v1057
        %v1101 = vunpack.c.l.b16 %v1058
        %v1102 = vunpack.c.l.b16 %v1059
        %v1103 = vunpack.c.l.b16 %v1060
        %v1104 = vunpack.c.l.b16 %v1061
        %v1105 = vpack.c.b16 %v1098, %v1097
        %v1106 = vpack.c.b16 %v1100, %v1099
        %v1107 = vpack.c.b16 %v1102, %v1101
        %v1108 = vpack.c.b16 %v1104, %v1103
        %v1114 = vsel %vm742, %v1086, 0
        %1116 = vmatpush.bf16.msra.mxu0 0
        %1117 = vmatpush.bf16.msra.mxu0 0
        %1118 = vmatpush.bf16.msra.mxu0 0
        %1119 = vmatpush.bf16.msra.mxu0 0
        %1120 = vmatpush.bf16.msra.mxu0 %v1108
        %1121 = vmatpush.bf16.msra.mxu0 %v1107
        %1122 = vmatpush.bf16.msra.mxu0 %v1106
        %1123 = vmatpush.bf16.msra.mxu0 %v1105
        %1124 = vmatmul.bf16.gmra.mxu0 %v1114
        %v1125 = vpop.f32.mrf.mxu0
        %v1126 = vadd.f32 %v1088, %v1125
        %v1127 = vpop.f32.mrf.mxu0
        %1128 = vdwg.mxu0
        %v1129 = vperm.slane %v682, 7
        %v1138 = vunpack.c.l.b16 %v1062
        %v1139 = vunpack.c.l.b16 %v1063
        %v1140 = vunpack.c.l.b16 %v1064
        %v1141 = vunpack.c.l.b16 %v1065
        %v1142 = vunpack.c.l.b16 %v1066
        %v1143 = vunpack.c.l.b16 %v1067
        %v1144 = vunpack.c.l.b16 %v1068
        %v1145 = vunpack.c.l.b16 %v1069
        %v1146 = vpack.c.b16 %v1139, %v1138
        %v1147 = vpack.c.b16 %v1141, %v1140
        %v1148 = vpack.c.b16 %v1143, %v1142
        %v1149 = vpack.c.b16 %v1145, %v1144
        %v1155 = vsel %vm742, %v1087, 0
        %1157 = vmatpush.bf16.msra.mxu0 0
        %1158 = vmatpush.bf16.msra.mxu0 0
        %1159 = vmatpush.bf16.msra.mxu0 0
        %1160 = vmatpush.bf16.msra.mxu0 0
        %1161 = vmatpush.bf16.msra.mxu0 %v1149
        %1162 = vmatpush.bf16.msra.mxu0 %v1148
        %1163 = vmatpush.bf16.msra.mxu0 %v1147
        %1164 = vmatpush.bf16.msra.mxu0 %v1146
        %1165 = vmatmul.bf16.gmra.mxu0 %v1155
        %v1166 = vpop.f32.mrf.mxu0
        %v1167 = vadd.f32 %v1129, %v1166
        %v1168 = vpop.f32.mrf.mxu0
        %1169 = vdwg.mxu0
        %v1170 = vperm.slane %v683, 0
        %v1179 = vunpack.c.l.b16 %v1070
        %v1180 = vunpack.c.l.b16 %v1071
        %v1181 = vunpack.c.l.b16 %v1072
        %v1182 = vunpack.c.l.b16 %v1073
        %v1183 = vunpack.c.l.b16 %v1074
        %v1184 = vunpack.c.l.b16 %v1075
        %v1185 = vunpack.c.l.b16 %v1076
        %v1186 = vunpack.c.l.b16 %v1077
        %v1187 = vpack.c.b16 %v1180, %v1179
        %v1188 = vpack.c.b16 %v1182, %v1181
        %v1189 = vpack.c.b16 %v1184, %v1183
        %v1190 = vpack.c.b16 %v1186, %v1185
        %1195 = vmatpush.bf16.msra.mxu0 0
        %1196 = vmatpush.bf16.msra.mxu0 0
        %1197 = vmatpush.bf16.msra.mxu0 0
        %1198 = vmatpush.bf16.msra.mxu0 0
        %1199 = vmatpush.bf16.msra.mxu0 %v1190
        %1200 = vmatpush.bf16.msra.mxu0 %v1189
        %1201 = vmatpush.bf16.msra.mxu0 %v1188
        %1202 = vmatpush.bf16.msra.mxu0 %v1187
        %1203 = vmatmul.bf16.gmra.mxu0 %v1155
        %v1204 = vpop.f32.mrf.mxu0
        %v1205 = vadd.f32 %v1170, %v1204
        %v1206 = vpop.f32.mrf.mxu0
        %1207 = vdwg.mxu0
        %v1208 = vpack.c.bf16 %v1126, %v1126
        %v1209 = vpack.c.bf16 %v1167, %v1167
        %v1210 = vpack.c.bf16 %v1205, %v1205
        %v1212 = vsel %vm843, %v1208, 0
        %v1215 = vsel %vm843, %v1209, 0
        %1217 = vmatpush.bf16.xpose.msra.mxu0 0
        %1218 = vmatpush.bf16.xpose.msra.mxu0 0
        %1219 = vmatpush.bf16.xpose.msra.mxu0 0
        %1220 = vmatpush.bf16.xpose.msra.mxu0 0
        %1221 = vmatpush.bf16.xpose.msra.mxu0 0
        %1222 = vmatpush.bf16.xpose.msra.mxu0 0
        %1223 = vmatpush.bf16.xpose.msra.mxu0 0
        %1224 = vmatpush.bf16.xpose.msra.mxu0 %v1215
        %1225 = vmatmul.bf16.gmra.mxu0 %v1212
        %v1226 = vpop.f32.mrf.mxu0
        %v1227 = vadd.f32 0.0, %v1226
        %v1228 = vpop.f32.mrf.mxu0
        %1229 = vdwg.mxu0
        %v1230 = vmul.f32 %v1227, 0.17677669
        %v1231 = vsel %vm865, %v1230, -inf
        %1232 = vmax.xlane.f32.xlu0 %v1231
        %v1233 = vpop.xlane.xlu0 %1232
        %v1234 = vsub.f32 %v1230, %v1233
        %v1235 = vmul.f32 %v1234, 1.442695
        %v1236 = vpow.pop %v1235
        %v1237 = vsel %vm865, %v1236, 0.0
        %1238 = vadd.xlane.f32.xlu0 %v1237
        %v1239 = vpop.xlane.xlu0 %1238
        %v1240 = vrcp.pop %v1239
        %v1241 = vmul.f32 %v1236, %v1240
        %v1242 = vpack.c.bf16 %v1241, %v1241
        %v1244 = vsel %vm865, %v1242, 0
        %v1247 = vsel %vm881, %v1210, 0
        %1249 = vmatpush.bf16.msra.mxu0 0
        %1250 = vmatpush.bf16.msra.mxu0 0
        %1251 = vmatpush.bf16.msra.mxu0 0
        %1252 = vmatpush.bf16.msra.mxu0 0
        %1253 = vmatpush.bf16.msra.mxu0 0
        %1254 = vmatpush.bf16.msra.mxu0 0
        %1255 = vmatpush.bf16.msra.mxu0 0
        %1256 = vmatpush.bf16.msra.mxu0 %v1247
        %1257 = vmatmul.bf16.gmra.mxu0 %v1244
        %v1258 = vpop.f32.mrf.mxu0
        %v1259 = vadd.f32 0.0, %v1258
        %v1260 = vpop.f32.mrf.mxu0
        %1261 = vdwg.mxu0
        %v1262 = vpack.c.bf16 %v1259, %v1259
        %1263 = vst.msk [vmem:[#allocation2] sm:$0xf] %vm899, %v1262
        %v1265 = vunpack.c.l.b16 %v1208
        %v1266 = vpack.c.b16 %v1265, %v1265
        %1267 = vrot.lane.b32.xlu0 %v1266, 96
        %v1268 = vpop.permute.xlu0 %1267
        %v1270 = vunpack.c.l.b16 %v1209
        %v1271 = vpack.c.b16 %v1270, %v1270
        %1272 = vrot.lane.b32.xlu0 %v1271, 96
        %v1273 = vpop.permute.xlu0 %1272
        %v1275 = vsel %vm843, %v1268, 0
        %v1278 = vsel %vm843, %v1273, 0
        %1280 = vmatpush.bf16.xpose.msra.mxu0 0
        %1281 = vmatpush.bf16.xpose.msra.mxu0 0
        %1282 = vmatpush.bf16.xpose.msra.mxu0 0
        %1283 = vmatpush.bf16.xpose.msra.mxu0 0
        %1284 = vmatpush.bf16.xpose.msra.mxu0 0
        %1285 = vmatpush.bf16.xpose.msra.mxu0 0
        %1286 = vmatpush.bf16.xpose.msra.mxu0 0
        %1287 = vmatpush.bf16.xpose.msra.mxu0 %v1278
        %1288 = vmatmul.bf16.gmra.mxu0 %v1275
        %v1289 = vpop.f32.mrf.mxu0
        %v1290 = vadd.f32 0.0, %v1289
        %v1291 = vpop.f32.mrf.mxu0
        %1292 = vdwg.mxu0
        %v1293 = vmul.f32 %v1290, 0.17677669
        %v1294 = vsel %vm865, %v1293, -inf
        %1295 = vmax.xlane.f32.xlu0 %v1294
        %v1296 = vpop.xlane.xlu0 %1295
        %v1297 = vsub.f32 %v1293, %v1296
        %v1298 = vmul.f32 %v1297, 1.442695
        %v1299 = vpow.pop %v1298
        %v1300 = vsel %vm865, %v1299, 0.0
        %1301 = vadd.xlane.f32.xlu0 %v1300
        %v1302 = vpop.xlane.xlu0 %1301
        %v1303 = vrcp.pop %v1302
        %v1304 = vmul.f32 %v1299, %v1303
        %v1305 = vpack.c.bf16 %v1304, %v1304
        %v1307 = vunpack.c.l.b16 %v1210
        %v1308 = vpack.c.b16 %v1307, %v1307
        %1309 = vrot.lane.b32.xlu0 %v1308, 96
        %v1310 = vpop.permute.xlu0 %1309
        %v1312 = vsel %vm865, %v1305, 0
        %v1315 = vsel %vm881, %v1310, 0
        %1317 = vmatpush.bf16.msra.mxu0 0
        %1318 = vmatpush.bf16.msra.mxu0 0
        %1319 = vmatpush.bf16.msra.mxu0 0
        %1320 = vmatpush.bf16.msra.mxu0 0
        %1321 = vmatpush.bf16.msra.mxu0 0
        %1322 = vmatpush.bf16.msra.mxu0 0
        %1323 = vmatpush.bf16.msra.mxu0 0
        %1324 = vmatpush.bf16.msra.mxu0 %v1315
        %1325 = vmatmul.bf16.gmra.mxu0 %v1312
        %v1326 = vpop.f32.mrf.mxu0
        %v1327 = vadd.f32 0.0, %v1326
        %v1328 = vpop.f32.mrf.mxu0
        %1329 = vdwg.mxu0
        %v1330 = vpack.c.bf16 %v1327, %v1327
        %1332 = vrot.lane.b32.xlu0 %v1330, 32
        %v1333 = vpop.permute.xlu0 %1332
        %1335 = vst.msk [vmem:[#allocation2] sm:$0xf] %vm973, %v1333
        %v1336 = vld [vmem:[#allocation2] sm:$0xf]
        %v1337 = vperm.slane %v683, 1
        %v1346 = vunpack.c.l.b16 %v1078
        %v1347 = vunpack.c.l.b16 %v1079
        %v1348 = vunpack.c.l.b16 %v1080
        %v1349 = vunpack.c.l.b16 %v1081
        %v1350 = vunpack.c.l.b16 %v1082
        %v1351 = vunpack.c.l.b16 %v1083
        %v1352 = vunpack.c.l.b16 %v1084
        %v1353 = vunpack.c.l.b16 %v1085
        %v1354 = vpack.c.b16 %v1347, %v1346
        %v1355 = vpack.c.b16 %v1349, %v1348
        %v1356 = vpack.c.b16 %v1351, %v1350
        %v1357 = vpack.c.b16 %v1353, %v1352
        %v1363 = vsel %vm742, %v1336, 0
        %1365 = vmatpush.bf16.msra.mxu0 0
        %1366 = vmatpush.bf16.msra.mxu0 0
        %1367 = vmatpush.bf16.msra.mxu0 0
        %1368 = vmatpush.bf16.msra.mxu0 0
        %1369 = vmatpush.bf16.msra.mxu0 %v1357
        %1370 = vmatpush.bf16.msra.mxu0 %v1356
        %1371 = vmatpush.bf16.msra.mxu0 %v1355
        %1372 = vmatpush.bf16.msra.mxu0 %v1354
        %1373 = vmatmul.bf16.gmra.mxu0 %v1363
        %v1374 = vpop.f32.mrf.mxu0
        %v1375 = vadd.f32 %v1337, %v1374
        %v1376 = vpop.f32.mrf.mxu0
        %1377 = vdwg.mxu0
        %1378 = vst.msk [vmem:[%s674] sm:$0xf] %vm1017, %v1209
        %1379 = vst.msk [vmem:[%s678] sm:$0xf] %vm1017, %v1210
        %v1380 = vsel %vm742, %v1375, 0.0
        %1381 = vadd.xlane.f32.xlu0 %v1380
        %v1382 = vpop.xlane.xlu0 %1381
        %v1383 = vmul.f32 %v1382, %v1029
        %v1384 = vsub.f32 %v1375, %v1383
        %v1385 = vmul.f32 %v1384, %v1384
        %v1386 = vsel %vm742, %v1385, 0.0
        %1387 = vadd.xlane.f32.xlu0 %v1386
        %v1388 = vpop.xlane.xlu0 %1387
        %v1389 = vmul.f32 %v1388, %v1029
        %v1390 = vadd.f32 %v1389, 1e-05
        %v1391 = vrsqrt.pop %v1390
        %v1392 = vmul.f32 %v1391, %v1390
        %v1393 = vmul.f32 %v1392, %v1391
        %v1394 = vmul.f32 0.5, %v1393
        %v1395 = vsub.f32 1.5, %v1394
        %v1396 = vmul.f32 %v1391, %v1395
        %vm1397 = vweird.f32 %v1390
        %vm1398 = vweird.f32 %v1391
        %vm1399 = vmor %vm1397, %vm1398
        %v1400 = vsel %vm1399, %v1391, %v1396
        %v1401 = vmul.f32 %v1384, %v1400
        %v1402 = vperm.slane %v683, 2
        %v1403 = vmul.f32 %v1401, %v1402
        %v1404 = vperm.slane %v683, 3
        %v1405 = vadd.f32 %v1403, %v1404
        %v1406 = vadd.f32 %v1053, %v1405
        %v1407 = vpack.c.bf16 %v1406, %v1406
        %v1408 = vld [vmem:[#allocation5] sm:$0xf]
        %v1409 = vld [vmem:[#allocation5 + $0x4] sm:$0xf]
        %v1410 = vld [vmem:[#allocation5 + $0x8] sm:$0xf]
        %v1411 = vld [vmem:[#allocation5 + $0xc] sm:$0xf]
        %v1412 = vld [vmem:[#allocation5 + $0x10] sm:$0xf]
        %v1413 = vld [vmem:[#allocation5 + $0x14] sm:$0xf]
        %v1414 = vld [vmem:[#allocation5 + $0x18] sm:$0xf]
        %v1415 = vld [vmem:[#allocation5 + $0x1c] sm:$0xf]
        %v1416 = vld [vmem:[%s13] sm:$0x1]
        %v1418 = vperm.slane %v1416, 0
        %v1428 = vunpack.c.l.b16 %v1408
        %v1429 = vunpack.c.l.b16 %v1409
        %v1430 = vunpack.c.l.b16 %v1410
        %v1431 = vunpack.c.l.b16 %v1411
        %v1432 = vunpack.c.l.b16 %v1412
        %v1433 = vunpack.c.l.b16 %v1413
        %v1434 = vunpack.c.l.b16 %v1414
        %v1435 = vunpack.c.l.b16 %v1415
        %v1436 = vpack.c.b16 %v1429, %v1428
        %v1437 = vpack.c.b16 %v1431, %v1430
        %v1438 = vpack.c.b16 %v1433, %v1432
        %v1439 = vpack.c.b16 %v1435, %v1434
        %v1445 = vsel %vm742, %v1407, 0
        %1447 = vmatpush.bf16.msra.mxu0 0
        %1448 = vmatpush.bf16.msra.mxu0 0
        %1449 = vmatpush.bf16.msra.mxu0 0
        %1450 = vmatpush.bf16.msra.mxu0 0
        %1451 = vmatpush.bf16.msra.mxu0 %v1439
        %1452 = vmatpush.bf16.msra.mxu0 %v1438
        %1453 = vmatpush.bf16.msra.mxu0 %v1437
        %1454 = vmatpush.bf16.msra.mxu0 %v1436
        %1455 = vmatmul.bf16.gmra.mxu0 %v1445
        %v1456 = vpop.f32.mrf.mxu0
        %v1457 = vadd.f32 %v1418, %v1456
        %v1458 = vpop.f32.mrf.mxu0
        %1459 = vdwg.mxu0
        %v1460 = vmax.f32 %v1457, 0.0
        %v1461 = vpack.c.bf16 %v1460, %v1460
        %v1462 = vld [vmem:[%s11] sm:$0xf]
        %v1463 = vld [vmem:[%s11 + $0x4] sm:$0xf]
        %v1464 = vld [vmem:[%s11 + $0x8] sm:$0xf]
        %v1465 = vld [vmem:[%s11 + $0xc] sm:$0xf]
        %v1466 = vld [vmem:[%s11 + $0x10] sm:$0xf]
        %v1467 = vld [vmem:[%s11 + $0x14] sm:$0xf]
        %v1468 = vld [vmem:[%s11 + $0x18] sm:$0xf]
        %v1469 = vld [vmem:[%s11 + $0x1c] sm:$0xf]
        %v1470 = vld [vmem:[%s11 + $0x20] sm:$0xf]
        %v1471 = vld [vmem:[%s11 + $0x24] sm:$0xf]
        %v1472 = vld [vmem:[%s11 + $0x28] sm:$0xf]
        %v1473 = vld [vmem:[%s11 + $0x2c] sm:$0xf]
        %v1474 = vld [vmem:[%s11 + $0x30] sm:$0xf]
        %v1475 = vld [vmem:[%s11 + $0x34] sm:$0xf]
        %v1476 = vld [vmem:[%s11 + $0x38] sm:$0xf]
        %v1477 = vld [vmem:[%s11 + $0x3c] sm:$0xf]
        %v1478 = vperm.slane %v683, 4
        %v1495 = vunpack.c.l.b16 %v1462
        %v1496 = vunpack.c.l.b16 %v1463
        %v1497 = vunpack.c.l.b16 %v1464
        %v1498 = vunpack.c.l.b16 %v1465
        %v1499 = vunpack.c.l.b16 %v1466
        %v1500 = vunpack.c.l.b16 %v1467
        %v1501 = vunpack.c.l.b16 %v1468
        %v1502 = vunpack.c.l.b16 %v1469
        %v1503 = vunpack.c.l.b16 %v1470
        %v1504 = vunpack.c.l.b16 %v1471
        %v1505 = vunpack.c.l.b16 %v1472
        %v1506 = vunpack.c.l.b16 %v1473
        %v1507 = vunpack.c.l.b16 %v1474
        %v1508 = vunpack.c.l.b16 %v1475
        %v1509 = vunpack.c.l.b16 %v1476
        %v1510 = vunpack.c.l.b16 %v1477
        %v1511 = vpack.c.b16 %v1496, %v1495
        %v1512 = vpack.c.b16 %v1498, %v1497
        %v1513 = vpack.c.b16 %v1500, %v1499
        %v1514 = vpack.c.b16 %v1502, %v1501
        %v1515 = vpack.c.b16 %v1504, %v1503
        %v1516 = vpack.c.b16 %v1506, %v1505
        %v1517 = vpack.c.b16 %v1508, %v1507
        %v1518 = vpack.c.b16 %v1510, %v1509
        %1527 = vmatpush.bf16.msra.mxu0 %v1518
        %1528 = vmatpush.bf16.msra.mxu0 %v1517
        %1529 = vmatpush.bf16.msra.mxu0 %v1516
        %1530 = vmatpush.bf16.msra.mxu0 %v1515
        %1531 = vmatpush.bf16.msra.mxu0 %v1514
        %1532 = vmatpush.bf16.msra.mxu0 %v1513
        %1533 = vmatpush.bf16.msra.mxu0 %v1512
        %1534 = vmatpush.bf16.msra.mxu0 %v1511
        %1535 = vmatmul.bf16.gmra.mxu0 %v1461
        %v1536 = vpop.f32.mrf.mxu0
        %v1537 = vadd.f32 %v1478, %v1536
        %v1538 = vpop.f32.mrf.mxu0
        %1539 = vdwg.mxu0
        %v1540 = vsel %vm742, %v1537, 0.0
        %1541 = vadd.xlane.f32.xlu0 %v1540
        %v1542 = vpop.xlane.xlu0 %1541
        %v1543 = vmul.f32 %v1542, %v1029
        %v1544 = vsub.f32 %v1537, %v1543
        %v1545 = vmul.f32 %v1544, %v1544
        %v1546 = vsel %vm742, %v1545, 0.0
        %1547 = vadd.xlane.f32.xlu0 %v1546
        %v1548 = vpop.xlane.xlu0 %1547
        %v1549 = vmul.f32 %v1548, %v1029
        %v1550 = vadd.f32 %v1549, 1e-05
        %v1551 = vrsqrt.pop %v1550
        %v1552 = vmul.f32 %v1551, %v1550
        %v1553 = vmul.f32 %v1552, %v1551
        %v1554 = vmul.f32 0.5, %v1553
        %v1555 = vsub.f32 1.5, %v1554
        %v1556 = vmul.f32 %v1551, %v1555
        %vm1557 = vweird.f32 %v1550
        %vm1558 = vweird.f32 %v1551
        %vm1559 = vmor %vm1557, %vm1558
        %v1560 = vsel %vm1559, %v1551, %v1556
        %v1561 = vmul.f32 %v1544, %v1560
        %v1562 = vperm.slane %v683, 5
        %v1563 = vmul.f32 %v1561, %v1562
        %v1564 = vperm.slane %v683, 6
        %v1565 = vadd.f32 %v1563, %v1564
        %v1566 = vadd.f32 %v1406, %v1565
        %1567 = vst.msk [vmem:[%s662] sm:$0xff] %vm742, %v1566
        %p1568 = scmp.lt.s32.totalorder %s32, 1
        %s1569 = scalar_select %p1568, %s32, 1
        %s1570 = smul.addr %s1569, 8
        %s1571 = scalar_lea.vmem %s14, %s1570
        %p1572 = scmp.lt.s32.totalorder %s32, 1
        %s1573 = scalar_select %p1572, %s32, 1
        %s1574 = smul.addr %s1573, 4
        %s1575 = scalar_lea.vmem %s15, %s1574
        %p1576 = scmp.lt.s32.totalorder %s32, 1
        %s1577 = scalar_select %p1576, %s32, 1
        %s1578 = smul.addr %s1577, 4
        %s1579 = scalar_lea.vmem %s16, %s1578
        %p1580 = scmp.lt.s32.totalorder %s32, 1
        %s1581 = scalar_select %p1580, %s32, 1
        %s1582 = smul.addr %s1581, 4
        %s1583 = scalar_lea.vmem %s17, %s1582
        %p1584 = scmp.lt.s32.totalorder %s32, 1
        %s1585 = scalar_select %p1584, %s32, 1
        %s1586 = smul.addr %s1585, 4
        %s1587 = scalar_lea.vmem %s18, %s1586
        // Predicated region
        $region89: #{transformer_decoder.4} parent=75 // pred_check
          %p1588 = pneg %p354
        $region90: #{transformer_decoder.4} parent=75 // pred_check_branch
          %1590 = sbr.rel (%p1588) target = $region92
        $region91: #{transformer_decoder.4} parent=75 // pred_region
          _
        $region92: #{transformer_decoder.4} parent=75 // pred_fallthru
          _
        // Predicated region
        $region93: #{transformer_decoder.4} parent=75 // pred_check
          %p1591 = pneg %p380
        $region94: #{transformer_decoder.4} parent=75 // pred_check_branch
          %1593 = sbr.rel (%p1591) target = $region96
        $region95: #{transformer_decoder.4} parent=75 // pred_region
          _
        $region96: #{transformer_decoder.4} parent=75 // pred_fallthru
          _
        // Predicated region
        $region97: #{transformer_decoder.4} parent=75 // pred_check
          %p1594 = pneg %p406
        $region98: #{transformer_decoder.4} parent=75 // pred_check_branch
          %1596 = sbr.rel (%p1594) target = $region100
        $region99: #{transformer_decoder.4} parent=75 // pred_region
          _
        $region100: #{transformer_decoder.4} parent=75 // pred_fallthru
          _
        // Predicated region
        $region101: #{transformer_decoder.4} parent=75 // pred_check
          %p1597 = pneg %p432
        $region102: #{transformer_decoder.4} parent=75 // pred_check_branch
          %1599 = sbr.rel (%p1597) target = $region104
        $region103: #{transformer_decoder.4} parent=75 // pred_region
          _
        $region104: #{transformer_decoder.4} parent=75 // pred_fallthru
          _
        // Predicated region
        $region105: #{transformer_decoder.4} parent=75 // pred_check
          %p1600 = pneg %p458
        $region106: #{transformer_decoder.4} parent=75 // pred_check_branch
          %1602 = sbr.rel (%p1600) target = $region108
        $region107: #{transformer_decoder.4} parent=75 // pred_region
          _
        $region108: #{transformer_decoder.4} parent=75 // pred_fallthru
          _
      $region76: #{transformer_decoder.4} parent=5 // pred_fallthru
        _
      %p1603 = scmp.le.s32.totalorder 2, %s27
      // Predicated region
      $region109: #{transformer_decoder.4} parent=5 // pred_check
        %p1604 = pneg %p1603
      $region110: #{transformer_decoder.4} parent=5 // pred_check_branch
        %1606 = sbr.rel (%p1604) target = $region112
      $region111: #{transformer_decoder.4} parent=5 // pred_region
        %s1607 = ssub.s32 %s27, 2
        // Predicated region
        $region113: #{transformer_decoder.4} parent=111 // pred_check
          %p1608 = pneg %p360
        $region114: #{transformer_decoder.4} parent=111 // pred_check_branch
          %1610 = sbr.rel (%p1608) target = $region116
        $region115: #{transformer_decoder.4} parent=111 // pred_region
          %p1611 = scmp.lt.s32.totalorder %s33, 1
          %s1612 = scalar_select %p1611, %s33, 1
          %s1613 = smul.addr %s1612, 8
          %s1614 = scalar_lea.vmem %s14, %s1613
        $region116: #{transformer_decoder.4} parent=111 // pred_fallthru
          _
        // Predicated region
        $region117: #{transformer_decoder.4} parent=111 // pred_check
          %p1615 = pneg %p386
        $region118: #{transformer_decoder.4} parent=111 // pred_check_branch
          %1617 = sbr.rel (%p1615) target = $region120
        $region119: #{transformer_decoder.4} parent=111 // pred_region
          %p1618 = scmp.lt.s32.totalorder %s33, 1
          %s1619 = scalar_select %p1618, %s33, 1
          %s1620 = smul.addr %s1619, 4
          %s1621 = scalar_lea.vmem %s15, %s1620
        $region120: #{transformer_decoder.4} parent=111 // pred_fallthru
          _
        // Predicated region
        $region121: #{transformer_decoder.4} parent=111 // pred_check
          %p1622 = pneg %p412
        $region122: #{transformer_decoder.4} parent=111 // pred_check_branch
          %1624 = sbr.rel (%p1622) target = $region124
        $region123: #{transformer_decoder.4} parent=111 // pred_region
          %p1625 = scmp.lt.s32.totalorder %s33, 1
          %s1626 = scalar_select %p1625, %s33, 1
          %s1627 = smul.addr %s1626, 4
          %s1628 = scalar_lea.vmem %s16, %s1627
        $region124: #{transformer_decoder.4} parent=111 // pred_fallthru
          _
        // Predicated region
        $region125: #{transformer_decoder.4} parent=111 // pred_check
          %p1629 = pneg %p438
        $region126: #{transformer_decoder.4} parent=111 // pred_check_branch
          %1631 = sbr.rel (%p1629) target = $region128
        $region127: #{transformer_decoder.4} parent=111 // pred_region
          %p1632 = scmp.lt.s32.totalorder %s33, 1
          %s1633 = scalar_select %p1632, %s33, 1
          %s1634 = smul.addr %s1633, 4
          %s1635 = scalar_lea.vmem %s17, %s1634
        $region128: #{transformer_decoder.4} parent=111 // pred_fallthru
          _
        // Predicated region
        $region129: #{transformer_decoder.4} parent=111 // pred_check
          %p1636 = pneg %p464
        $region130: #{transformer_decoder.4} parent=111 // pred_check_branch
          %1638 = sbr.rel (%p1636) target = $region132
        $region131: #{transformer_decoder.4} parent=111 // pred_region
          %p1639 = scmp.lt.s32.totalorder %s33, 1
          %s1640 = scalar_select %p1639, %s33, 1
          %s1641 = smul.addr %s1640, 4
          %s1642 = scalar_lea.vmem %s18, %s1641
        $region132: #{transformer_decoder.4} parent=111 // pred_fallthru
          _
      $region112: #{transformer_decoder.4} parent=5 // pred_fallthru
        _
    $region6: #{transformer_decoder.4} parent=1 // loop_footer
      %s31 = sadd.s32 1, %s27
    $region7: #{transformer_decoder.4} parent=1 // loop_footer_branch
      %26 = sbr.rel target = $region3
    $region8: #{transformer_decoder.4} parent=1 // loop_exit
      _
    %1643 = vsyncpa [#allocation4], 1
    %s1644 = scalar_lea.sflag [#allocation4], 1
    %1645 = vsyncpa %s1644, 1
    %1646 = vsyncpa [#allocation6], 1

// kernel: transformer_decoder.3
$region0: #{transformer_decoder.3}
  #allocation0 [shape = 'u32[]', space=smem, size = 0x4, offset = 0x4, fixed_abs, tag = 'smem constant byte address 0x4 - core index']
  #allocation1 [shape = 'u32[72,128]{1,0:T(1,128)}', space=vmem, size = 0x9000, scoped, tag = 'internal scratch']
  #allocation2 [shape = 'bf16[8,64]{1,0:T(8,128)(2,1)}', space=vmem, size = 0x800, scoped, tag = 'scratch operand']
  %s0 = inlined_call_operand.vmem [shape: f32[2,8,64], index: 0, kind: input, shape index: {}]
  %s1 = inlined_call_operand.vmem [shape: f32[2,8,64], index: 1, kind: input, shape index: {}]
  %s2 = inlined_call_operand.vmem [shape: bf16[64,64], index: 2, kind: input, shape index: {}]
  %s3 = inlined_call_operand.vmem [shape: bf16[64,64], index: 3, kind: input, shape index: {}]
  %s4 = inlined_call_operand.vmem [shape: bf16[64,64], index: 4, kind: input, shape index: {}]
  %s5 = inlined_call_operand.vmem [shape: bf16[64,64], index: 5, kind: input, shape index: {}]
  %s6 = inlined_call_operand.vmem [shape: bf16[64,64], index: 6, kind: input, shape index: {}]
  %s7 = inlined_call_operand.vmem [shape: bf16[64,64], index: 7, kind: input, shape index: {}]
  %s8 = inlined_call_operand.vmem [shape: bf16[64,64], index: 8, kind: input, shape index: {}]
  %s9 = inlined_call_operand.vmem [shape: bf16[64,64], index: 9, kind: input, shape index: {}]
  %s10 = inlined_call_operand.vmem [shape: bf16[64,128], index: 10, kind: input, shape index: {}]
  %s11 = inlined_call_operand.vmem [shape: bf16[128,64], index: 11, kind: input, shape index: {}]
  %s12 = inlined_call_operand.vmem [shape: f32[16,64], index: 12, kind: input, shape index: {}]
  %s13 = inlined_call_operand.vmem [shape: f32[1,128], index: 13, kind: input, shape index: {}]
  %s14 = inlined_call_operand.vmem [shape: f32[2,8,64], index: 14, kind: output, shape index: {0}]
  %s15 = inlined_call_operand.vmem [shape: bf16[2,8,64], index: 15, kind: output, shape index: {1}]
  %s16 = inlined_call_operand.vmem [shape: bf16[2,8,64], index: 16, kind: output, shape index: {2}]
  %s17 = inlined_call_operand.vmem [shape: bf16[2,8,64], index: 17, kind: output, shape index: {3}]
  %s18 = inlined_call_operand.vmem [shape: bf16[2,8,64], index: 18, kind: output, shape index: {4}]
  %19 = xla_tuple %s14, %s15, %s16, %s17, %s18
  %s20 = sld [smem:[#allocation0]]
  $region121: #{transformer_decoder.3} parent=0
    _
  %s22 = ssub.s32 1, %s20
  %s23 = scalar_select 0, %s22, %s20
  loop: start=0, step=1, limit=4
  $region2: #{transformer_decoder.3} parent=0 // loop_pre_header
    _
  $region3: #{transformer_decoder.3} parent=0 // loop_header
    %s25 = sphi 0, %s29
    %p26 = scmp.ge.s32.totalorder %s25, 4
    %s35 = sphi 0, %s37
    %s38 = sphi 0, %s35
    %s39 = sphi 0, %s38
    %s55 = sphi 0, %s39
    %s61 = sphi 0, %s63
    %s64 = sphi 0, %s61
    %s65 = sphi 0, %s64
    %s81 = sphi 0, %s65
    %s85 = sphi 0, %s85
    %s87 = sphi 0, %s85
    %s88 = sphi 0, %s87
    %s102 = sphi 0, %s88
    %s106 = sphi 0, %s106
    %s108 = sphi 0, %s106
    %s109 = sphi 0, %s108
    %s123 = sphi 0, %s109
    %s127 = sphi 0, %s127
    %s129 = sphi 0, %s127
    %s130 = sphi 0, %s129
    %s144 = sphi 0, %s130
    %s148 = sphi 0, %s148
    %s150 = sphi 0, %s148
    %s151 = sphi 0, %s150
    %s165 = sphi 0, %s151
    %s169 = sphi 0, %s169
    %s171 = sphi 0, %s169
    %s172 = sphi 0, %s171
    %s186 = sphi 0, %s172
    %s190 = sphi 0, %s190
    %s192 = sphi 0, %s190
    %s193 = sphi 0, %s192
    %s207 = sphi 0, %s193
    %s211 = sphi 0, %s211
    %s213 = sphi 0, %s211
    %s214 = sphi 0, %s213
    %s228 = sphi 0, %s214
    %s232 = sphi 0, %s232
    %s234 = sphi 0, %s232
    %s235 = sphi 0, %s234
    %s249 = sphi 0, %s235
    %s253 = sphi 0, %s253
    %s255 = sphi 0, %s253
    %s256 = sphi 0, %s255
    %s270 = sphi 0, %s256
    %s274 = sphi 0, %s274
    %s276 = sphi 0, %s274
    %s277 = sphi 0, %s276
    %s291 = sphi 0, %s277
    %s295 = sphi 0, %s295
    %s297 = sphi 0, %s295
    %s298 = sphi 0, %s297
    %s312 = sphi 0, %s298
    %s316 = sphi 0, %s316
    %s318 = sphi 0, %s316
    %s319 = sphi 0, %s318
    %s333 = sphi 0, %s319
    %s339 = sphi 0, %s341
    %s342 = sphi 0, %s339
    %s343 = sphi 0, %s342
    %s359 = sphi 0, %s343
    %s365 = sphi 0, %s367
    %s368 = sphi 0, %s365
    %s369 = sphi 0, %s368
    %s385 = sphi 0, %s369
    %s391 = sphi 0, %s393
    %s394 = sphi 0, %s391
    %s395 = sphi 0, %s394
    %s411 = sphi 0, %s395
    %s417 = sphi 0, %s419
    %s420 = sphi 0, %s417
    %s421 = sphi 0, %s420
    %s437 = sphi 0, %s421
    %s443 = sphi 0, %s445
    %s446 = sphi 0, %s443
    %s447 = sphi 0, %s446
    %s463 = sphi 0, %s447
  $region4: #{transformer_decoder.3} parent=0 // loop_header_branch
    %28 = sbr.rel (%p26) target = $region8
  $region5: #{transformer_decoder.3} parent=0 // loop_body
    %s30 = ssub.s32 %s25, 1
    %s31 = ssub.s32 %s25, 2
    %s32 = sadd.s32 %s25, 1
    %s33 = ssub.s32 %s25, %s32
    %p34 = scmp.eq.s32.totalorder %s33, 0
    %s36 = sadd.s32 %s35, 1
    %s37 = scalar_select %p34, %s35, %s36
    %p40 = pneg %p34
    %p41 = scmp.eq.s32.totalorder %s25, 1
    %p42 = por %p40, %p41
    %p43 = scmp.ne.s32.totalorder %s35, %s38
    %p44 = scmp.eq.s32.totalorder %s25, 0
    %p45 = por %p43, %p44
    %p46 = scmp.ne.s32.totalorder %s35, %s38
    %p47 = scmp.eq.s32.totalorder %s30, 1
    %p48 = por %p46, %p47
    %p49 = scmp.ne.s32.totalorder %s38, %s39
    %p50 = scmp.eq.s32.totalorder %s30, 0
    %p51 = por %p49, %p50
    %p52 = scmp.ne.s32.totalorder %s38, %s39
    %p53 = scmp.eq.s32.totalorder %s31, 1
    %p54 = por %p52, %p53
    %p56 = scmp.ne.s32.totalorder %s39, %s55
    %p57 = scmp.eq.s32.totalorder %s31, 0
    %p58 = por %p56, %p57
    %s59 = ssub.s32 %s25, %s32
    %p60 = scmp.eq.s32.totalorder %s59, 0
    %s62 = sadd.s32 %s61, 1
    %s63 = scalar_select %p60, %s61, %s62
    %p66 = pneg %p60
    %p67 = scmp.eq.s32.totalorder %s25, 1
    %p68 = por %p66, %p67
    %p69 = scmp.ne.s32.totalorder %s61, %s64
    %p70 = scmp.eq.s32.totalorder %s25, 0
    %p71 = por %p69, %p70
    %p72 = scmp.ne.s32.totalorder %s61, %s64
    %p73 = scmp.eq.s32.totalorder %s30, 1
    %p74 = por %p72, %p73
    %p75 = scmp.ne.s32.totalorder %s64, %s65
    %p76 = scmp.eq.s32.totalorder %s30, 0
    %p77 = por %p75, %p76
    %p78 = scmp.ne.s32.totalorder %s64, %s65
    %p79 = scmp.eq.s32.totalorder %s31, 1
    %p80 = por %p78, %p79
    %p82 = scmp.ne.s32.totalorder %s65, %s81
    %p83 = scmp.eq.s32.totalorder %s31, 0
    %p84 = por %p82, %p83
    %s86 = sadd.s32 %s85, 1
    %p89 = scmp.eq.s32.totalorder %s25, 1
    %p90 = scmp.ne.s32.totalorder %s85, %s87
    %p91 = scmp.eq.s32.totalorder %s25, 0
    %p92 = por %p90, %p91
    %p93 = scmp.ne.s32.totalorder %s85, %s87
    %p94 = scmp.eq.s32.totalorder %s30, 1
    %p95 = por %p93, %p94
    %p96 = scmp.ne.s32.totalorder %s87, %s88
    %p97 = scmp.eq.s32.totalorder %s30, 0
    %p98 = por %p96, %p97
    %p99 = scmp.ne.s32.totalorder %s87, %s88
    %p100 = scmp.eq.s32.totalorder %s31, 1
    %p101 = por %p99, %p100
    %p103 = scmp.ne.s32.totalorder %s88, %s102
    %p104 = scmp.eq.s32.totalorder %s31, 0
    %p105 = por %p103, %p104
    %s107 = sadd.s32 %s106, 1
    %p110 = scmp.eq.s32.totalorder %s25, 1
    %p111 = scmp.ne.s32.totalorder %s106, %s108
    %p112 = scmp.eq.s32.totalorder %s25, 0
    %p113 = por %p111, %p112
    %p114 = scmp.ne.s32.totalorder %s106, %s108
    %p115 = scmp.eq.s32.totalorder %s30, 1
    %p116 = por %p114, %p115
    %p117 = scmp.ne.s32.totalorder %s108, %s109
    %p118 = scmp.eq.s32.totalorder %s30, 0
    %p119 = por %p117, %p118
    %p120 = scmp.ne.s32.totalorder %s108, %s109
    %p121 = scmp.eq.s32.totalorder %s31, 1
    %p122 = por %p120, %p121
    %p124 = scmp.ne.s32.totalorder %s109, %s123
    %p125 = scmp.eq.s32.totalorder %s31, 0
    %p126 = por %p124, %p125
    %s128 = sadd.s32 %s127, 1
    %p131 = scmp.eq.s32.totalorder %s25, 1
    %p132 = scmp.ne.s32.totalorder %s127, %s129
    %p133 = scmp.eq.s32.totalorder %s25, 0
    %p134 = por %p132, %p133
    %p135 = scmp.ne.s32.totalorder %s127, %s129
    %p136 = scmp.eq.s32.totalorder %s30, 1
    %p137 = por %p135, %p136
    %p138 = scmp.ne.s32.totalorder %s129, %s130
    %p139 = scmp.eq.s32.totalorder %s30, 0
    %p140 = por %p138, %p139
    %p141 = scmp.ne.s32.totalorder %s129, %s130
    %p142 = scmp.eq.s32.totalorder %s31, 1
    %p143 = por %p141, %p142
    %p145 = scmp.ne.s32.totalorder %s130, %s144
    %p146 = scmp.eq.s32.totalorder %s31, 0
    %p147 = por %p145, %p146
    %s149 = sadd.s32 %s148, 1
    %p152 = scmp.eq.s32.totalorder %s25, 1
    %p153 = scmp.ne.s32.totalorder %s148, %s150
    %p154 = scmp.eq.s32.totalorder %s25, 0
    %p155 = por %p153, %p154
    %p156 = scmp.ne.s32.totalorder %s148, %s150
    %p157 = scmp.eq.s32.totalorder %s30, 1
    %p158 = por %p156, %p157
    %p159 = scmp.ne.s32.totalorder %s150, %s151
    %p160 = scmp.eq.s32.totalorder %s30, 0
    %p161 = por %p159, %p160
    %p162 = scmp.ne.s32.totalorder %s150, %s151
    %p163 = scmp.eq.s32.totalorder %s31, 1
    %p164 = por %p162, %p163
    %p166 = scmp.ne.s32.totalorder %s151, %s165
    %p167 = scmp.eq.s32.totalorder %s31, 0
    %p168 = por %p166, %p167
    %s170 = sadd.s32 %s169, 1
    %p173 = scmp.eq.s32.totalorder %s25, 1
    %p174 = scmp.ne.s32.totalorder %s169, %s171
    %p175 = scmp.eq.s32.totalorder %s25, 0
    %p176 = por %p174, %p175
    %p177 = scmp.ne.s32.totalorder %s169, %s171
    %p178 = scmp.eq.s32.totalorder %s30, 1
    %p179 = por %p177, %p178
    %p180 = scmp.ne.s32.totalorder %s171, %s172
    %p181 = scmp.eq.s32.totalorder %s30, 0
    %p182 = por %p180, %p181
    %p183 = scmp.ne.s32.totalorder %s171, %s172
    %p184 = scmp.eq.s32.totalorder %s31, 1
    %p185 = por %p183, %p184
    %p187 = scmp.ne.s32.totalorder %s172, %s186
    %p188 = scmp.eq.s32.totalorder %s31, 0
    %p189 = por %p187, %p188
    %s191 = sadd.s32 %s190, 1
    %p194 = scmp.eq.s32.totalorder %s25, 1
    %p195 = scmp.ne.s32.totalorder %s190, %s192
    %p196 = scmp.eq.s32.totalorder %s25, 0
    %p197 = por %p195, %p196
    %p198 = scmp.ne.s32.totalorder %s190, %s192
    %p199 = scmp.eq.s32.totalorder %s30, 1
    %p200 = por %p198, %p199
    %p201 = scmp.ne.s32.totalorder %s192, %s193
    %p202 = scmp.eq.s32.totalorder %s30, 0
    %p203 = por %p201, %p202
    %p204 = scmp.ne.s32.totalorder %s192, %s193
    %p205 = scmp.eq.s32.totalorder %s31, 1
    %p206 = por %p204, %p205
    %p208 = scmp.ne.s32.totalorder %s193, %s207
    %p209 = scmp.eq.s32.totalorder %s31, 0
    %p210 = por %p208, %p209
    %s212 = sadd.s32 %s211, 1
    %p215 = scmp.eq.s32.totalorder %s25, 1
    %p216 = scmp.ne.s32.totalorder %s211, %s213
    %p217 = scmp.eq.s32.totalorder %s25, 0
    %p218 = por %p216, %p217
    %p219 = scmp.ne.s32.totalorder %s211, %s213
    %p220 = scmp.eq.s32.totalorder %s30, 1
    %p221 = por %p219, %p220
    %p222 = scmp.ne.s32.totalorder %s213, %s214
    %p223 = scmp.eq.s32.totalorder %s30, 0
    %p224 = por %p222, %p223
    %p225 = scmp.ne.s32.totalorder %s213, %s214
    %p226 = scmp.eq.s32.totalorder %s31, 1
    %p227 = por %p225, %p226
    %p229 = scmp.ne.s32.totalorder %s214, %s228
    %p230 = scmp.eq.s32.totalorder %s31, 0
    %p231 = por %p229, %p230
    %s233 = sadd.s32 %s232, 1
    %p236 = scmp.eq.s32.totalorder %s25, 1
    %p237 = scmp.ne.s32.totalorder %s232, %s234
    %p238 = scmp.eq.s32.totalorder %s25, 0
    %p239 = por %p237, %p238
    %p240 = scmp.ne.s32.totalorder %s232, %s234
    %p241 = scmp.eq.s32.totalorder %s30, 1
    %p242 = por %p240, %p241
    %p243 = scmp.ne.s32.totalorder %s234, %s235
    %p244 = scmp.eq.s32.totalorder %s30, 0
    %p245 = por %p243, %p244
    %p246 = scmp.ne.s32.totalorder %s234, %s235
    %p247 = scmp.eq.s32.totalorder %s31, 1
    %p248 = por %p246, %p247
    %p250 = scmp.ne.s32.totalorder %s235, %s249
    %p251 = scmp.eq.s32.totalorder %s31, 0
    %p252 = por %p250, %p251
    %s254 = sadd.s32 %s253, 1
    %p257 = scmp.eq.s32.totalorder %s25, 1
    %p258 = scmp.ne.s32.totalorder %s253, %s255
    %p259 = scmp.eq.s32.totalorder %s25, 0
    %p260 = por %p258, %p259
    %p261 = scmp.ne.s32.totalorder %s253, %s255
    %p262 = scmp.eq.s32.totalorder %s30, 1
    %p263 = por %p261, %p262
    %p264 = scmp.ne.s32.totalorder %s255, %s256
    %p265 = scmp.eq.s32.totalorder %s30, 0
    %p266 = por %p264, %p265
    %p267 = scmp.ne.s32.totalorder %s255, %s256
    %p268 = scmp.eq.s32.totalorder %s31, 1
    %p269 = por %p267, %p268
    %p271 = scmp.ne.s32.totalorder %s256, %s270
    %p272 = scmp.eq.s32.totalorder %s31, 0
    %p273 = por %p271, %p272
    %s275 = sadd.s32 %s274, 1
    %p278 = scmp.eq.s32.totalorder %s25, 1
    %p279 = scmp.ne.s32.totalorder %s274, %s276
    %p280 = scmp.eq.s32.totalorder %s25, 0
    %p281 = por %p279, %p280
    %p282 = scmp.ne.s32.totalorder %s274, %s276
    %p283 = scmp.eq.s32.totalorder %s30, 1
    %p284 = por %p282, %p283
    %p285 = scmp.ne.s32.totalorder %s276, %s277
    %p286 = scmp.eq.s32.totalorder %s30, 0
    %p287 = por %p285, %p286
    %p288 = scmp.ne.s32.totalorder %s276, %s277
    %p289 = scmp.eq.s32.totalorder %s31, 1
    %p290 = por %p288, %p289
    %p292 = scmp.ne.s32.totalorder %s277, %s291
    %p293 = scmp.eq.s32.totalorder %s31, 0
    %p294 = por %p292, %p293
    %s296 = sadd.s32 %s295, 1
    %p299 = scmp.eq.s32.totalorder %s25, 1
    %p300 = scmp.ne.s32.totalorder %s295, %s297
    %p301 = scmp.eq.s32.totalorder %s25, 0
    %p302 = por %p300, %p301
    %p303 = scmp.ne.s32.totalorder %s295, %s297
    %p304 = scmp.eq.s32.totalorder %s30, 1
    %p305 = por %p303, %p304
    %p306 = scmp.ne.s32.totalorder %s297, %s298
    %p307 = scmp.eq.s32.totalorder %s30, 0
    %p308 = por %p306, %p307
    %p309 = scmp.ne.s32.totalorder %s297, %s298
    %p310 = scmp.eq.s32.totalorder %s31, 1
    %p311 = por %p309, %p310
    %p313 = scmp.ne.s32.totalorder %s298, %s312
    %p314 = scmp.eq.s32.totalorder %s31, 0
    %p315 = por %p313, %p314
    %s317 = sadd.s32 %s316, 1
    %p320 = scmp.eq.s32.totalorder %s25, 1
    %p321 = scmp.ne.s32.totalorder %s316, %s318
    %p322 = scmp.eq.s32.totalorder %s25, 0
    %p323 = por %p321, %p322
    %p324 = scmp.ne.s32.totalorder %s316, %s318
    %p325 = scmp.eq.s32.totalorder %s30, 1
    %p326 = por %p324, %p325
    %p327 = scmp.ne.s32.totalorder %s318, %s319
    %p328 = scmp.eq.s32.totalorder %s30, 0
    %p329 = por %p327, %p328
    %p330 = scmp.ne.s32.totalorder %s318, %s319
    %p331 = scmp.eq.s32.totalorder %s31, 1
    %p332 = por %p330, %p331
    %p334 = scmp.ne.s32.totalorder %s319, %s333
    %p335 = scmp.eq.s32.totalorder %s31, 0
    %p336 = por %p334, %p335
    %s337 = ssub.s32 %s25, %s32
    %p338 = scmp.eq.s32.totalorder %s337, 0
    %s340 = sadd.s32 %s339, 1
    %s341 = scalar_select %p338, %s339, %s340
    %p344 = pneg %p338
    %p345 = scmp.eq.s32.totalorder %s25, 1
    %p346 = por %p344, %p345
    %p347 = scmp.ne.s32.totalorder %s339, %s342
    %p348 = scmp.eq.s32.totalorder %s25, 0
    %p349 = por %p347, %p348
    %p350 = scmp.ne.s32.totalorder %s339, %s342
    %p351 = scmp.eq.s32.totalorder %s30, 1
    %p352 = por %p350, %p351
    %p353 = scmp.ne.s32.totalorder %s342, %s343
    %p354 = scmp.eq.s32.totalorder %s30, 0
    %p355 = por %p353, %p354
    %p356 = scmp.ne.s32.totalorder %s342, %s343
    %p357 = scmp.eq.s32.totalorder %s31, 1
    %p358 = por %p356, %p357
    %p360 = scmp.ne.s32.totalorder %s343, %s359
    %p361 = scmp.eq.s32.totalorder %s31, 0
    %p362 = por %p360, %p361
    %s363 = ssub.s32 %s25, %s32
    %p364 = scmp.eq.s32.totalorder %s363, 0
    %s366 = sadd.s32 %s365, 1
    %s367 = scalar_select %p364, %s365, %s366
    %p370 = pneg %p364
    %p371 = scmp.eq.s32.totalorder %s25, 1
    %p372 = por %p370, %p371
    %p373 = scmp.ne.s32.totalorder %s365, %s368
    %p374 = scmp.eq.s32.totalorder %s25, 0
    %p375 = por %p373, %p374
    %p376 = scmp.ne.s32.totalorder %s365, %s368
    %p377 = scmp.eq.s32.totalorder %s30, 1
    %p378 = por %p376, %p377
    %p379 = scmp.ne.s32.totalorder %s368, %s369
    %p380 = scmp.eq.s32.totalorder %s30, 0
    %p381 = por %p379, %p380
    %p382 = scmp.ne.s32.totalorder %s368, %s369
    %p383 = scmp.eq.s32.totalorder %s31, 1
    %p384 = por %p382, %p383
    %p386 = scmp.ne.s32.totalorder %s369, %s385
    %p387 = scmp.eq.s32.totalorder %s31, 0
    %p388 = por %p386, %p387
    %s389 = ssub.s32 %s25, %s32
    %p390 = scmp.eq.s32.totalorder %s389, 0
    %s392 = sadd.s32 %s391, 1
    %s393 = scalar_select %p390, %s391, %s392
    %p396 = pneg %p390
    %p397 = scmp.eq.s32.totalorder %s25, 1
    %p398 = por %p396, %p397
    %p399 = scmp.ne.s32.totalorder %s391, %s394
    %p400 = scmp.eq.s32.totalorder %s25, 0
    %p401 = por %p399, %p400
    %p402 = scmp.ne.s32.totalorder %s391, %s394
    %p403 = scmp.eq.s32.totalorder %s30, 1
    %p404 = por %p402, %p403
    %p405 = scmp.ne.s32.totalorder %s394, %s395
    %p406 = scmp.eq.s32.totalorder %s30, 0
    %p407 = por %p405, %p406
    %p408 = scmp.ne.s32.totalorder %s394, %s395
    %p409 = scmp.eq.s32.totalorder %s31, 1
    %p410 = por %p408, %p409
    %p412 = scmp.ne.s32.totalorder %s395, %s411
    %p413 = scmp.eq.s32.totalorder %s31, 0
    %p414 = por %p412, %p413
    %s415 = ssub.s32 %s25, %s32
    %p416 = scmp.eq.s32.totalorder %s415, 0
    %s418 = sadd.s32 %s417, 1
    %s419 = scalar_select %p416, %s417, %s418
    %p422 = pneg %p416
    %p423 = scmp.eq.s32.totalorder %s25, 1
    %p424 = por %p422, %p423
    %p425 = scmp.ne.s32.totalorder %s417, %s420
    %p426 = scmp.eq.s32.totalorder %s25, 0
    %p427 = por %p425, %p426
    %p428 = scmp.ne.s32.totalorder %s417, %s420
    %p429 = scmp.eq.s32.totalorder %s30, 1
    %p430 = por %p428, %p429
    %p431 = scmp.ne.s32.totalorder %s420, %s421
    %p432 = scmp.eq.s32.totalorder %s30, 0
    %p433 = por %p431, %p432
    %p434 = scmp.ne.s32.totalorder %s420, %s421
    %p435 = scmp.eq.s32.totalorder %s31, 1
    %p436 = por %p434, %p435
    %p438 = scmp.ne.s32.totalorder %s421, %s437
    %p439 = scmp.eq.s32.totalorder %s31, 0
    %p440 = por %p438, %p439
    %s441 = ssub.s32 %s25, %s32
    %p442 = scmp.eq.s32.totalorder %s441, 0
    %s444 = sadd.s32 %s443, 1
    %s445 = scalar_select %p442, %s443, %s444
    %p448 = pneg %p442
    %p449 = scmp.eq.s32.totalorder %s25, 1
    %p450 = por %p448, %p449
    %p451 = scmp.ne.s32.totalorder %s443, %s446
    %p452 = scmp.eq.s32.totalorder %s25, 0
    %p453 = por %p451, %p452
    %p454 = scmp.ne.s32.totalorder %s443, %s446
    %p455 = scmp.eq.s32.totalorder %s30, 1
    %p456 = por %p454, %p455
    %p457 = scmp.ne.s32.totalorder %s446, %s447
    %p458 = scmp.eq.s32.totalorder %s30, 0
    %p459 = por %p457, %p458
    %p460 = scmp.ne.s32.totalorder %s446, %s447
    %p461 = scmp.eq.s32.totalorder %s31, 1
    %p462 = por %p460, %p461
    %p464 = scmp.ne.s32.totalorder %s447, %s463
    %p465 = scmp.eq.s32.totalorder %s31, 0
    %p466 = por %p464, %p465
    %p467 = scmp.le.s32.totalorder 1, %s25
    %p468 = scmp.lt.s32.totalorder %s25, 3
    %p469 = pnand %p467, %p468
    %p470 = pneg %p469
    // Predicated region
    $region9: #{transformer_decoder.3} parent=5 // pred_check
      _
    $region10: #{transformer_decoder.3} parent=5 // pred_check_branch
      %472 = sbr.rel (%p469) target = $region12
    $region11: #{transformer_decoder.3} parent=5 // pred_region
      %s473 = ssub.s32 %s25, 1
      // Predicated region
      $region13: #{transformer_decoder.3} parent=11 // pred_check
        %p474 = pneg %p98
      $region14: #{transformer_decoder.3} parent=11 // pred_check_branch
        %476 = sbr.rel (%p474) target = $region16
      $region15: #{transformer_decoder.3} parent=11 // pred_region
        _
      $region16: #{transformer_decoder.3} parent=11 // pred_fallthru
        _
      // Predicated region
      $region17: #{transformer_decoder.3} parent=11 // pred_check
        %p477 = pneg %p119
      $region18: #{transformer_decoder.3} parent=11 // pred_check_branch
        %479 = sbr.rel (%p477) target = $region20
      $region19: #{transformer_decoder.3} parent=11 // pred_region
        _
      $region20: #{transformer_decoder.3} parent=11 // pred_fallthru
        _
      // Predicated region
      $region21: #{transformer_decoder.3} parent=11 // pred_check
        %p480 = pneg %p140
      $region22: #{transformer_decoder.3} parent=11 // pred_check_branch
        %482 = sbr.rel (%p480) target = $region24
      $region23: #{transformer_decoder.3} parent=11 // pred_region
        _
      $region24: #{transformer_decoder.3} parent=11 // pred_fallthru
        _
      // Predicated region
      $region25: #{transformer_decoder.3} parent=11 // pred_check
        %p483 = pneg %p161
      $region26: #{transformer_decoder.3} parent=11 // pred_check_branch
        %485 = sbr.rel (%p483) target = $region28
      $region27: #{transformer_decoder.3} parent=11 // pred_region
        _
      $region28: #{transformer_decoder.3} parent=11 // pred_fallthru
        _
      // Predicated region
      $region29: #{transformer_decoder.3} parent=11 // pred_check
        %p486 = pneg %p182
      $region30: #{transformer_decoder.3} parent=11 // pred_check_branch
        %488 = sbr.rel (%p486) target = $region32
      $region31: #{transformer_decoder.3} parent=11 // pred_region
        _
      $region32: #{transformer_decoder.3} parent=11 // pred_fallthru
        _
      // Predicated region
      $region33: #{transformer_decoder.3} parent=11 // pred_check
        %p489 = pneg %p203
      $region34: #{transformer_decoder.3} parent=11 // pred_check_branch
        %491 = sbr.rel (%p489) target = $region36
      $region35: #{transformer_decoder.3} parent=11 // pred_region
        _
      $region36: #{transformer_decoder.3} parent=11 // pred_fallthru
        _
      // Predicated region
      $region37: #{transformer_decoder.3} parent=11 // pred_check
        %p492 = pneg %p224
      $region38: #{transformer_decoder.3} parent=11 // pred_check_branch
        %494 = sbr.rel (%p492) target = $region40
      $region39: #{transformer_decoder.3} parent=11 // pred_region
        _
      $region40: #{transformer_decoder.3} parent=11 // pred_fallthru
        _
      // Predicated region
      $region41: #{transformer_decoder.3} parent=11 // pred_check
        %p495 = pneg %p245
      $region42: #{transformer_decoder.3} parent=11 // pred_check_branch
        %497 = sbr.rel (%p495) target = $region44
      $region43: #{transformer_decoder.3} parent=11 // pred_region
        _
      $region44: #{transformer_decoder.3} parent=11 // pred_fallthru
        _
      // Predicated region
      $region45: #{transformer_decoder.3} parent=11 // pred_check
        %p498 = pneg %p266
      $region46: #{transformer_decoder.3} parent=11 // pred_check_branch
        %500 = sbr.rel (%p498) target = $region48
      $region47: #{transformer_decoder.3} parent=11 // pred_region
        _
      $region48: #{transformer_decoder.3} parent=11 // pred_fallthru
        _
      // Predicated region
      $region49: #{transformer_decoder.3} parent=11 // pred_check
        %p501 = pneg %p287
      $region50: #{transformer_decoder.3} parent=11 // pred_check_branch
        %503 = sbr.rel (%p501) target = $region52
      $region51: #{transformer_decoder.3} parent=11 // pred_region
        _
      $region52: #{transformer_decoder.3} parent=11 // pred_fallthru
        _
      // Predicated region
      $region53: #{transformer_decoder.3} parent=11 // pred_check
        %p504 = pneg %p308
      $region54: #{transformer_decoder.3} parent=11 // pred_check_branch
        %506 = sbr.rel (%p504) target = $region56
      $region55: #{transformer_decoder.3} parent=11 // pred_region
        _
      $region56: #{transformer_decoder.3} parent=11 // pred_fallthru
        _
      // Predicated region
      $region57: #{transformer_decoder.3} parent=11 // pred_check
        %p507 = pneg %p329
      $region58: #{transformer_decoder.3} parent=11 // pred_check_branch
        %509 = sbr.rel (%p507) target = $region60
      $region59: #{transformer_decoder.3} parent=11 // pred_region
        _
      $region60: #{transformer_decoder.3} parent=11 // pred_fallthru
        _
    $region12: #{transformer_decoder.3} parent=5 // pred_fallthru
      _
    %p510 = scmp.lt.s32.totalorder %s25, 2
    // Predicated region
    $region61: #{transformer_decoder.3} parent=5 // pred_check
      %p511 = pneg %p510
    $region62: #{transformer_decoder.3} parent=5 // pred_check_branch
      %513 = sbr.rel (%p511) target = $region64
    $region63: #{transformer_decoder.3} parent=5 // pred_region
      // Predicated region
      $region65: #{transformer_decoder.3} parent=63 // pred_check
        %p514 = pneg %p45
      $region66: #{transformer_decoder.3} parent=63 // pred_check_branch
        %516 = sbr.rel (%p514) target = $region68
      $region67: #{transformer_decoder.3} parent=63 // pred_region
        %p517 = scmp.lt.s32.totalorder %s25, 1
        %s518 = scalar_select %p517, %s25, 1
        %s519 = smul.addr %s518, 8
        %s520 = scalar_lea.vmem %s0, %s519
      $region68: #{transformer_decoder.3} parent=63 // pred_fallthru
        _
      // Predicated region
      $region69: #{transformer_decoder.3} parent=63 // pred_check
        %p521 = pneg %p71
      $region70: #{transformer_decoder.3} parent=63 // pred_check_branch
        %523 = sbr.rel (%p521) target = $region72
      $region71: #{transformer_decoder.3} parent=63 // pred_region
        %p524 = scmp.lt.s32.totalorder %s25, 1
        %s525 = scalar_select %p524, %s25, 1
        %s526 = smul.addr %s525, 8
        %s527 = scalar_lea.vmem %s1, %s526
      $region72: #{transformer_decoder.3} parent=63 // pred_fallthru
        _
    $region64: #{transformer_decoder.3} parent=5 // pred_fallthru
      _
    %p528 = scmp.le.s32.totalorder 1, %s25
    %p529 = scmp.lt.s32.totalorder %s25, 3
    %p530 = pnand %p528, %p529
    %p531 = pneg %p530
    // Predicated region
    $region73: #{transformer_decoder.3} parent=5 // pred_check
      _
    $region74: #{transformer_decoder.3} parent=5 // pred_check_branch
      %533 = sbr.rel (%p530) target = $region76
    $region75: #{transformer_decoder.3} parent=5 // pred_region
      %s534 = ssub.s32 %s25, 1
      %p535 = scmp.lt.s32.totalorder %s30, 1
      %s536 = scalar_select %p535, %s30, 1
      %s537 = smul.addr %s536, 8
      %s538 = scalar_lea.vmem %s0, %s537
      %p539 = pneg %p51
      %p540 = pneg %p48
      %p541 = scmp.lt.s32.totalorder %s30, 1
      %s542 = scalar_select %p541, %s30, 1
      %s543 = smul.addr %s542, 8
      %s544 = scalar_lea.vmem %s1, %s543
      %p545 = pneg %p77
      %p546 = pneg %p74
      %p547 = pneg %p98
      %p548 = pneg %p95
      %p549 = pneg %p119
      %p550 = pneg %p116
      %p551 = pneg %p140
      %p552 = pneg %p137
      %p553 = pneg %p161
      %p554 = pneg %p158
      %p555 = pneg %p182
      %p556 = pneg %p179
      %p557 = pneg %p203
      %p558 = pneg %p200
      %p559 = pneg %p224
      %p560 = pneg %p221
      %p561 = pneg %p245
      %p562 = pneg %p242
      %p563 = pneg %p266
      %p564 = pneg %p263
      %p565 = pneg %p287
      %p566 = pneg %p284
      %p567 = pneg %p308
      %p568 = pneg %p305
      %p569 = pneg %p329
      %p570 = pneg %p326
      %p571 = pneg %p355
      %p572 = pneg %p352
      %p573 = scmp.lt.s32.totalorder %s30, 1
      %s574 = scalar_select %p573, %s30, 1
      %s575 = smul.addr %s574, 8
      %s576 = scalar_lea.vmem %s14, %s575
      %p577 = pneg %p381
      %p578 = pneg %p378
      %p579 = scmp.lt.s32.totalorder %s30, 1
      %s580 = scalar_select %p579, %s30, 1
      %s581 = smul.addr %s580, 4
      %s582 = scalar_lea.vmem %s15, %s581
      %p583 = pneg %p407
      %p584 = pneg %p404
      %p585 = scmp.lt.s32.totalorder %s30, 1
      %s586 = scalar_select %p585, %s30, 1
      %s587 = smul.addr %s586, 4
      %s588 = scalar_lea.vmem %s16, %s587
      %p589 = pneg %p433
      %p590 = pneg %p430
      %p591 = scmp.lt.s32.totalorder %s30, 1
      %s592 = scalar_select %p591, %s30, 1
      %s593 = smul.addr %s592, 4
      %s594 = scalar_lea.vmem %s17, %s593
      %p595 = pneg %p459
      %p596 = pneg %p456
      %p597 = scmp.lt.s32.totalorder %s30, 1
      %s598 = scalar_select %p597, %s30, 1
      %s599 = smul.addr %s598, 4
      %s600 = scalar_lea.vmem %s18, %s599
      %p601 = scmp.lt.s32.totalorder %s30, 1
      %s602 = scalar_select %p601, %s30, 1
      %s603 = smul.addr %s602, 8
      %s604 = scalar_lea.vmem %s0, %s603
      %p605 = scmp.lt.s32.totalorder %s30, 1
      %s606 = scalar_select %p605, %s30, 1
      %s607 = smul.addr %s606, 8
      %s608 = scalar_lea.vmem %s1, %s607
      %p609 = scmp.lt.s32.totalorder %s30, 1
      %s610 = scalar_select %p609, %s30, 1
      %s611 = smul.addr %s610, 8
      %s612 = scalar_lea.vmem %s14, %s611
      %p613 = scmp.lt.s32.totalorder %s30, 1
      %s614 = scalar_select %p613, %s30, 1
      %s615 = smul.addr %s614, 4
      %s616 = scalar_lea.vmem %s15, %s615
      %p617 = scmp.lt.s32.totalorder %s30, 1
      %s618 = scalar_select %p617, %s30, 1
      %s619 = smul.addr %s618, 4
      %s620 = scalar_lea.vmem %s16, %s619
      %p621 = scmp.lt.s32.totalorder %s30, 1
      %s622 = scalar_select %p621, %s30, 1
      %s623 = smul.addr %s622, 4
      %s624 = scalar_lea.vmem %s17, %s623
      %p625 = scmp.lt.s32.totalorder %s30, 1
      %s626 = scalar_select %p625, %s30, 1
      %s627 = smul.addr %s626, 4
      %s628 = scalar_lea.vmem %s18, %s627
      %v630 = vld [vmem:[%s604] sm:$0xff]
      %v631 = vld [vmem:[%s608] sm:$0xff]
      %v632 = vld [vmem:[%s12] sm:$0xff]
      %v633 = vld [vmem:[%s12 + $0x8] sm:$0xff]
      %v634 = vld [vmem:[%s2] sm:$0xf]
      %v635 = vld [vmem:[%s2 + $0x4] sm:$0xf]
      %v636 = vld [vmem:[%s2 + $0x8] sm:$0xf]
      %v637 = vld [vmem:[%s2 + $0xc] sm:$0xf]
      %v638 = vld [vmem:[%s2 + $0x10] sm:$0xf]
      %v639 = vld [vmem:[%s2 + $0x14] sm:$0xf]
      %v640 = vld [vmem:[%s2 + $0x18] sm:$0xf]
      %v641 = vld [vmem:[%s2 + $0x1c] sm:$0xf]
      %v642 = vld [vmem:[%s3] sm:$0xf]
      %v643 = vld [vmem:[%s3 + $0x4] sm:$0xf]
      %v644 = vld [vmem:[%s3 + $0x8] sm:$0xf]
      %v645 = vld [vmem:[%s3 + $0xc] sm:$0xf]
      %v646 = vld [vmem:[%s3 + $0x10] sm:$0xf]
      %v647 = vld [vmem:[%s3 + $0x14] sm:$0xf]
      %v648 = vld [vmem:[%s3 + $0x18] sm:$0xf]
      %v649 = vld [vmem:[%s3 + $0x1c] sm:$0xf]
      %v650 = vld [vmem:[%s4] sm:$0xf]
      %v651 = vld [vmem:[%s4 + $0x4] sm:$0xf]
      %v652 = vld [vmem:[%s4 + $0x8] sm:$0xf]
      %v653 = vld [vmem:[%s4 + $0xc] sm:$0xf]
      %v654 = vld [vmem:[%s4 + $0x10] sm:$0xf]
      %v655 = vld [vmem:[%s4 + $0x14] sm:$0xf]
      %v656 = vld [vmem:[%s4 + $0x18] sm:$0xf]
      %v657 = vld [vmem:[%s4 + $0x1c] sm:$0xf]
      %v658 = vld [vmem:[%s5] sm:$0xf]
      %v659 = vld [vmem:[%s5 + $0x4] sm:$0xf]
      %v660 = vld [vmem:[%s5 + $0x8] sm:$0xf]
      %v661 = vld [vmem:[%s5 + $0xc] sm:$0xf]
      %v662 = vld [vmem:[%s5 + $0x10] sm:$0xf]
      %v663 = vld [vmem:[%s5 + $0x14] sm:$0xf]
      %v664 = vld [vmem:[%s5 + $0x18] sm:$0xf]
      %v665 = vld [vmem:[%s5 + $0x1c] sm:$0xf]
      %v666 = vpack.c.bf16 %v630, %v630
      %v667 = vperm.slane %v632, 0
      %v676 = vunpack.c.l.b16 %v634
      %v677 = vunpack.c.l.b16 %v635
      %v678 = vunpack.c.l.b16 %v636
      %v679 = vunpack.c.l.b16 %v637
      %v680 = vunpack.c.l.b16 %v638
      %v681 = vunpack.c.l.b16 %v639
      %v682 = vunpack.c.l.b16 %v640
      %v683 = vunpack.c.l.b16 %v641
      %v684 = vpack.c.b16 %v677, %v676
      %v685 = vpack.c.b16 %v679, %v678
      %v686 = vpack.c.b16 %v681, %v680
      %v687 = vpack.c.b16 %v683, %v682
      %vm692 = vcmask 523264
      %v694 = vsel %vm692, %v666, 0
      %696 = vmatpush.bf16.msra.mxu0 0
      %697 = vmatpush.bf16.msra.mxu0 0
      %698 = vmatpush.bf16.msra.mxu0 0
      %699 = vmatpush.bf16.msra.mxu0 0
      %700 = vmatpush.bf16.msra.mxu0 %v687
      %701 = vmatpush.bf16.msra.mxu0 %v686
      %702 = vmatpush.bf16.msra.mxu0 %v685
      %703 = vmatpush.bf16.msra.mxu0 %v684
      %704 = vmatmul.bf16.gmra.mxu0 %v694
      %v705 = vpop.f32.mrf.mxu0
      %v706 = vadd.f32 %v667, %v705
      %v707 = vpop.f32.mrf.mxu0
      %708 = vdwg.mxu0
      %v709 = vperm.slane %v632, 1
      %v718 = vunpack.c.l.b16 %v642
      %v719 = vunpack.c.l.b16 %v643
      %v720 = vunpack.c.l.b16 %v644
      %v721 = vunpack.c.l.b16 %v645
      %v722 = vunpack.c.l.b16 %v646
      %v723 = vunpack.c.l.b16 %v647
      %v724 = vunpack.c.l.b16 %v648
      %v725 = vunpack.c.l.b16 %v649
      %v726 = vpack.c.b16 %v719, %v718
      %v727 = vpack.c.b16 %v721, %v720
      %v728 = vpack.c.b16 %v723, %v722
      %v729 = vpack.c.b16 %v725, %v724
      %734 = vmatpush.bf16.msra.mxu0 0
      %735 = vmatpush.bf16.msra.mxu0 0
      %736 = vmatpush.bf16.msra.mxu0 0
      %737 = vmatpush.bf16.msra.mxu0 0
      %738 = vmatpush.bf16.msra.mxu0 %v729
      %739 = vmatpush.bf16.msra.mxu0 %v728
      %740 = vmatpush.bf16.msra.mxu0 %v727
      %741 = vmatpush.bf16.msra.mxu0 %v726
      %742 = vmatmul.bf16.gmra.mxu0 %v694
      %v743 = vpop.f32.mrf.mxu0
      %v744 = vadd.f32 %v709, %v743
      %v745 = vpop.f32.mrf.mxu0
      %746 = vdwg.mxu0
      %v747 = vperm.slane %v632, 2
      %v756 = vunpack.c.l.b16 %v650
      %v757 = vunpack.c.l.b16 %v651
      %v758 = vunpack.c.l.b16 %v652
      %v759 = vunpack.c.l.b16 %v653
      %v760 = vunpack.c.l.b16 %v654
      %v761 = vunpack.c.l.b16 %v655
      %v762 = vunpack.c.l.b16 %v656
      %v763 = vunpack.c.l.b16 %v657
      %v764 = vpack.c.b16 %v757, %v756
      %v765 = vpack.c.b16 %v759, %v758
      %v766 = vpack.c.b16 %v761, %v760
      %v767 = vpack.c.b16 %v763, %v762
      %772 = vmatpush.bf16.msra.mxu0 0
      %773 = vmatpush.bf16.msra.mxu0 0
      %774 = vmatpush.bf16.msra.mxu0 0
      %775 = vmatpush.bf16.msra.mxu0 0
      %776 = vmatpush.bf16.msra.mxu0 %v767
      %777 = vmatpush.bf16.msra.mxu0 %v766
      %778 = vmatpush.bf16.msra.mxu0 %v765
      %779 = vmatpush.bf16.msra.mxu0 %v764
      %780 = vmatmul.bf16.gmra.mxu0 %v694
      %v781 = vpop.f32.mrf.mxu0
      %v782 = vadd.f32 %v747, %v781
      %v783 = vpop.f32.mrf.mxu0
      %784 = vdwg.mxu0
      %v785 = vpack.c.bf16 %v706, %v706
      %v786 = vpack.c.bf16 %v744, %v744
      %v787 = vpack.c.bf16 %v782, %v782
      %v788 = vlaneseq
      %v789 = vshrl.u32 %v788, 7
      %v790 = vlaneseq
      %v791 = vand.u32 %v790, 127
      %vm792 = vcmp.gt.s32.totalorder %v791, %v789
      %vm793 = vcmask 261120
      %v795 = vsel %vm793, %v785, 0
      %v798 = vsel %vm793, %v786, 0
      %800 = vmatpush.bf16.xpose.msra.mxu0 0
      %801 = vmatpush.bf16.xpose.msra.mxu0 0
      %802 = vmatpush.bf16.xpose.msra.mxu0 0
      %803 = vmatpush.bf16.xpose.msra.mxu0 0
      %804 = vmatpush.bf16.xpose.msra.mxu0 0
      %805 = vmatpush.bf16.xpose.msra.mxu0 0
      %806 = vmatpush.bf16.xpose.msra.mxu0 0
      %807 = vmatpush.bf16.xpose.msra.mxu0 %v798
      %808 = vmatmul.bf16.gmra.mxu0 %v795
      %v809 = vpop.f32.mrf.mxu0
      %v810 = vadd.f32 0.0, %v809
      %v811 = vpop.f32.mrf.mxu0
      %812 = vdwg.mxu0
      %v813 = vmul.f32 %v810, 0.17677669
      %v814 = vsel %vm792, -inf, %v813
      %vm815 = vcmask 64512
      %v816 = vsel %vm815, %v814, -inf
      %817 = vmax.xlane.f32.xlu0 %v816
      %v818 = vpop.xlane.xlu0 %817
      %v819 = vsub.f32 %v814, %v818
      %v820 = vmul.f32 %v819, 1.442695
      %v821 = vpow.pop %v820
      %v822 = vsel %vm815, %v821, 0.0
      %823 = vadd.xlane.f32.xlu0 %v822
      %v824 = vpop.xlane.xlu0 %823
      %v825 = vrcp.pop %v824
      %v826 = vmul.f32 %v821, %v825
      %v827 = vpack.c.bf16 %v826, %v826
      %v829 = vsel %vm815, %v827, 0
      %vm831 = vcmask 1043456
      %v833 = vsel %vm831, %v787, 0
      %835 = vmatpush.bf16.msra.mxu0 0
      %836 = vmatpush.bf16.msra.mxu0 0
      %837 = vmatpush.bf16.msra.mxu0 0
      %838 = vmatpush.bf16.msra.mxu0 0
      %839 = vmatpush.bf16.msra.mxu0 0
      %840 = vmatpush.bf16.msra.mxu0 0
      %841 = vmatpush.bf16.msra.mxu0 0
      %842 = vmatpush.bf16.msra.mxu0 %v833
      %843 = vmatmul.bf16.gmra.mxu0 %v829
      %v844 = vpop.f32.mrf.mxu0
      %v845 = vadd.f32 0.0, %v844
      %v846 = vpop.f32.mrf.mxu0
      %847 = vdwg.mxu0
      %v848 = vpack.c.bf16 %v845, %v845
      %vm849 = vcmask 257024
      %850 = vst.msk [vmem:[#allocation2] sm:$0xf] %vm849, %v848
      %v852 = vunpack.c.l.b16 %v785
      %v853 = vpack.c.b16 %v852, %v852
      %854 = vrot.lane.b32.xlu0 %v853, 96
      %v855 = vpop.permute.xlu0 %854
      %v857 = vunpack.c.l.b16 %v786
      %v858 = vpack.c.b16 %v857, %v857
      %859 = vrot.lane.b32.xlu0 %v858, 96
      %v860 = vpop.permute.xlu0 %859
      %v862 = vsel %vm793, %v855, 0
      %v865 = vsel %vm793, %v860, 0
      %867 = vmatpush.bf16.xpose.msra.mxu0 0
      %868 = vmatpush.bf16.xpose.msra.mxu0 0
      %869 = vmatpush.bf16.xpose.msra.mxu0 0
      %870 = vmatpush.bf16.xpose.msra.mxu0 0
      %871 = vmatpush.bf16.xpose.msra.mxu0 0
      %872 = vmatpush.bf16.xpose.msra.mxu0 0
      %873 = vmatpush.bf16.xpose.msra.mxu0 0
      %874 = vmatpush.bf16.xpose.msra.mxu0 %v865
      %875 = vmatmul.bf16.gmra.mxu0 %v862
      %v876 = vpop.f32.mrf.mxu0
      %v877 = vadd.f32 0.0, %v876
      %v878 = vpop.f32.mrf.mxu0
      %879 = vdwg.mxu0
      %v880 = vmul.f32 %v877, 0.17677669
      %v881 = vsel %vm792, -inf, %v880
      %v882 = vsel %vm815, %v881, -inf
      %883 = vmax.xlane.f32.xlu0 %v882
      %v884 = vpop.xlane.xlu0 %883
      %v885 = vsub.f32 %v881, %v884
      %v886 = vmul.f32 %v885, 1.442695
      %v887 = vpow.pop %v886
      %v888 = vsel %vm815, %v887, 0.0
      %889 = vadd.xlane.f32.xlu0 %v888
      %v890 = vpop.xlane.xlu0 %889
      %v891 = vrcp.pop %v890
      %v892 = vmul.f32 %v887, %v891
      %v893 = vpack.c.bf16 %v892, %v892
      %v895 = vunpack.c.l.b16 %v787
      %v896 = vpack.c.b16 %v895, %v895
      %897 = vrot.lane.b32.xlu0 %v896, 96
      %v898 = vpop.permute.xlu0 %897
      %v900 = vsel %vm815, %v893, 0
      %v903 = vsel %vm831, %v898, 0
      %905 = vmatpush.bf16.msra.mxu0 0
      %906 = vmatpush.bf16.msra.mxu0 0
      %907 = vmatpush.bf16.msra.mxu0 0
      %908 = vmatpush.bf16.msra.mxu0 0
      %909 = vmatpush.bf16.msra.mxu0 0
      %910 = vmatpush.bf16.msra.mxu0 0
      %911 = vmatpush.bf16.msra.mxu0 0
      %912 = vmatpush.bf16.msra.mxu0 %v903
      %913 = vmatmul.bf16.gmra.mxu0 %v900
      %v914 = vpop.f32.mrf.mxu0
      %v915 = vadd.f32 0.0, %v914
      %v916 = vpop.f32.mrf.mxu0
      %917 = vdwg.mxu0
      %v918 = vpack.c.bf16 %v915, %v915
      %920 = vrot.lane.b32.xlu0 %v918, 32
      %v921 = vpop.permute.xlu0 %920
      %vm923 = vcmask 519424
      %924 = vst.msk [vmem:[#allocation2] sm:$0xf] %vm923, %v921
      %v925 = vld [vmem:[#allocation2] sm:$0xf]
      %v926 = vperm.slane %v632, 3
      %v935 = vunpack.c.l.b16 %v658
      %v936 = vunpack.c.l.b16 %v659
      %v937 = vunpack.c.l.b16 %v660
      %v938 = vunpack.c.l.b16 %v661
      %v939 = vunpack.c.l.b16 %v662
      %v940 = vunpack.c.l.b16 %v663
      %v941 = vunpack.c.l.b16 %v664
      %v942 = vunpack.c.l.b16 %v665
      %v943 = vpack.c.b16 %v936, %v935
      %v944 = vpack.c.b16 %v938, %v937
      %v945 = vpack.c.b16 %v940, %v939
      %v946 = vpack.c.b16 %v942, %v941
      %v952 = vsel %vm692, %v925, 0
      %954 = vmatpush.bf16.msra.mxu0 0
      %955 = vmatpush.bf16.msra.mxu0 0
      %956 = vmatpush.bf16.msra.mxu0 0
      %957 = vmatpush.bf16.msra.mxu0 0
      %958 = vmatpush.bf16.msra.mxu0 %v946
      %959 = vmatpush.bf16.msra.mxu0 %v945
      %960 = vmatpush.bf16.msra.mxu0 %v944
      %961 = vmatpush.bf16.msra.mxu0 %v943
      %962 = vmatmul.bf16.gmra.mxu0 %v952
      %v963 = vpop.f32.mrf.mxu0
      %v964 = vadd.f32 %v926, %v963
      %v965 = vpop.f32.mrf.mxu0
      %966 = vdwg.mxu0
      %vm967 = vcmask 519168
      %968 = vst.msk [vmem:[%s616] sm:$0xf] %vm967, %v786
      %969 = vst.msk [vmem:[%s620] sm:$0xf] %vm967, %v787
      %v970 = vsel %vm692, %v964, 0.0
      %971 = vadd.xlane.f32.xlu0 %v970
      %v972 = vpop.xlane.xlu0 %971
      %v973 = vrcp.pop 64.0
      %v974 = vmul.f32 64.0, %v973
      %v975 = vsub.f32 1.0, %v974
      %v976 = vmul.f32 %v973, %v975
      %v977 = vadd.f32 %v973, %v976
      %vm978 = vweird.f32 %v973
      %v979 = vsel %vm978, %v973, %v977
      %v980 = vmul.f32 %v972, %v979
      %v981 = vsub.f32 %v964, %v980
      %v982 = vmul.f32 %v981, %v981
      %v983 = vsel %vm692, %v982, 0.0
      %984 = vadd.xlane.f32.xlu0 %v983
      %v985 = vpop.xlane.xlu0 %984
      %v986 = vmul.f32 %v985, %v979
      %v987 = vadd.f32 %v986, 1e-05
      %v988 = vrsqrt.pop %v987
      %v989 = vmul.f32 %v988, %v987
      %v990 = vmul.f32 %v989, %v988
      %v991 = vmul.f32 0.5, %v990
      %v992 = vsub.f32 1.5, %v991
      %v993 = vmul.f32 %v988, %v992
      %vm994 = vweird.f32 %v987
      %vm995 = vweird.f32 %v988
      %vm996 = vmor %vm994, %vm995
      %v997 = vsel %vm996, %v988, %v993
      %v998 = vmul.f32 %v981, %v997
      %v999 = vperm.slane %v632, 4
      %v1000 = vmul.f32 %v998, %v999
      %v1001 = vperm.slane %v632, 5
      %v1002 = vadd.f32 %v1000, %v1001
      %v1003 = vadd.f32 %v630, %v1002
      %v1004 = vld [vmem:[%s6] sm:$0xf]
      %v1005 = vld [vmem:[%s6 + $0x4] sm:$0xf]
      %v1006 = vld [vmem:[%s6 + $0x8] sm:$0xf]
      %v1007 = vld [vmem:[%s6 + $0xc] sm:$0xf]
      %v1008 = vld [vmem:[%s6 + $0x10] sm:$0xf]
      %v1009 = vld [vmem:[%s6 + $0x14] sm:$0xf]
      %v1010 = vld [vmem:[%s6 + $0x18] sm:$0xf]
      %v1011 = vld [vmem:[%s6 + $0x1c] sm:$0xf]
      %v1012 = vld [vmem:[%s7] sm:$0xf]
      %v1013 = vld [vmem:[%s7 + $0x4] sm:$0xf]
      %v1014 = vld [vmem:[%s7 + $0x8] sm:$0xf]
      %v1015 = vld [vmem:[%s7 + $0xc] sm:$0xf]
      %v1016 = vld [vmem:[%s7 + $0x10] sm:$0xf]
      %v1017 = vld [vmem:[%s7 + $0x14] sm:$0xf]
      %v1018 = vld [vmem:[%s7 + $0x18] sm:$0xf]
      %v1019 = vld [vmem:[%s7 + $0x1c] sm:$0xf]
      %v1020 = vld [vmem:[%s8] sm:$0xf]
      %v1021 = vld [vmem:[%s8 + $0x4] sm:$0xf]
      %v1022 = vld [vmem:[%s8 + $0x8] sm:$0xf]
      %v1023 = vld [vmem:[%s8 + $0xc] sm:$0xf]
      %v1024 = vld [vmem:[%s8 + $0x10] sm:$0xf]
      %v1025 = vld [vmem:[%s8 + $0x14] sm:$0xf]
      %v1026 = vld [vmem:[%s8 + $0x18] sm:$0xf]
      %v1027 = vld [vmem:[%s8 + $0x1c] sm:$0xf]
      %v1028 = vld [vmem:[%s9] sm:$0xf]
      %v1029 = vld [vmem:[%s9 + $0x4] sm:$0xf]
      %v1030 = vld [vmem:[%s9 + $0x8] sm:$0xf]
      %v1031 = vld [vmem:[%s9 + $0xc] sm:$0xf]
      %v1032 = vld [vmem:[%s9 + $0x10] sm:$0xf]
      %v1033 = vld [vmem:[%s9 + $0x14] sm:$0xf]
      %v1034 = vld [vmem:[%s9 + $0x18] sm:$0xf]
      %v1035 = vld [vmem:[%s9 + $0x1c] sm:$0xf]
      %v1036 = vpack.c.bf16 %v1003, %v1003
      %v1037 = vpack.c.bf16 %v631, %v631
      %v1038 = vperm.slane %v632, 6
      %v1047 = vunpack.c.l.b16 %v1004
      %v1048 = vunpack.c.l.b16 %v1005
      %v1049 = vunpack.c.l.b16 %v1006
      %v1050 = vunpack.c.l.b16 %v1007
      %v1051 = vunpack.c.l.b16 %v1008
      %v1052 = vunpack.c.l.b16 %v1009
      %v1053 = vunpack.c.l.b16 %v1010
      %v1054 = vunpack.c.l.b16 %v1011
      %v1055 = vpack.c.b16 %v1048, %v1047
      %v1056 = vpack.c.b16 %v1050, %v1049
      %v1057 = vpack.c.b16 %v1052, %v1051
      %v1058 = vpack.c.b16 %v1054, %v1053
      %v1064 = vsel %vm692, %v1036, 0
      %1066 = vmatpush.bf16.msra.mxu0 0
      %1067 = vmatpush.bf16.msra.mxu0 0
      %1068 = vmatpush.bf16.msra.mxu0 0
      %1069 = vmatpush.bf16.msra.mxu0 0
      %1070 = vmatpush.bf16.msra.mxu0 %v1058
      %1071 = vmatpush.bf16.msra.mxu0 %v1057
      %1072 = vmatpush.bf16.msra.mxu0 %v1056
      %1073 = vmatpush.bf16.msra.mxu0 %v1055
      %1074 = vmatmul.bf16.gmra.mxu0 %v1064
      %v1075 = vpop.f32.mrf.mxu0
      %v1076 = vadd.f32 %v1038, %v1075
      %v1077 = vpop.f32.mrf.mxu0
      %1078 = vdwg.mxu0
      %v1079 = vperm.slane %v632, 7
      %v1088 = vunpack.c.l.b16 %v1012
      %v1089 = vunpack.c.l.b16 %v1013
      %v1090 = vunpack.c.l.b16 %v1014
      %v1091 = vunpack.c.l.b16 %v1015
      %v1092 = vunpack.c.l.b16 %v1016
      %v1093 = vunpack.c.l.b16 %v1017
      %v1094 = vunpack.c.l.b16 %v1018
      %v1095 = vunpack.c.l.b16 %v1019
      %v1096 = vpack.c.b16 %v1089, %v1088
      %v1097 = vpack.c.b16 %v1091, %v1090
      %v1098 = vpack.c.b16 %v1093, %v1092
      %v1099 = vpack.c.b16 %v1095, %v1094
      %v1105 = vsel %vm692, %v1037, 0
      %1107 = vmatpush.bf16.msra.mxu0 0
      %1108 = vmatpush.bf16.msra.mxu0 0
      %1109 = vmatpush.bf16.msra.mxu0 0
      %1110 = vmatpush.bf16.msra.mxu0 0
      %1111 = vmatpush.bf16.msra.mxu0 %v1099
      %1112 = vmatpush.bf16.msra.mxu0 %v1098
      %1113 = vmatpush.bf16.msra.mxu0 %v1097
      %1114 = vmatpush.bf16.msra.mxu0 %v1096
      %1115 = vmatmul.bf16.gmra.mxu0 %v1105
      %v1116 = vpop.f32.mrf.mxu0
      %v1117 = vadd.f32 %v1079, %v1116
      %v1118 = vpop.f32.mrf.mxu0
      %1119 = vdwg.mxu0
      %v1120 = vperm.slane %v633, 0
      %v1129 = vunpack.c.l.b16 %v1020
      %v1130 = vunpack.c.l.b16 %v1021
      %v1131 = vunpack.c.l.b16 %v1022
      %v1132 = vunpack.c.l.b16 %v1023
      %v1133 = vunpack.c.l.b16 %v1024
      %v1134 = vunpack.c.l.b16 %v1025
      %v1135 = vunpack.c.l.b16 %v1026
      %v1136 = vunpack.c.l.b16 %v1027
      %v1137 = vpack.c.b16 %v1130, %v1129
      %v1138 = vpack.c.b16 %v1132, %v1131
      %v1139 = vpack.c.b16 %v1134, %v1133
      %v1140 = vpack.c.b16 %v1136, %v1135
      %1145 = vmatpush.bf16.msra.mxu0 0
      %1146 = vmatpush.bf16.msra.mxu0 0
      %1147 = vmatpush.bf16.msra.mxu0 0
      %1148 = vmatpush.bf16.msra.mxu0 0
      %1149 = vmatpush.bf16.msra.mxu0 %v1140
      %1150 = vmatpush.bf16.msra.mxu0 %v1139
      %1151 = vmatpush.bf16.msra.mxu0 %v1138
      %1152 = vmatpush.bf16.msra.mxu0 %v1137
      %1153 = vmatmul.bf16.gmra.mxu0 %v1105
      %v1154 = vpop.f32.mrf.mxu0
      %v1155 = vadd.f32 %v1120, %v1154
      %v1156 = vpop.f32.mrf.mxu0
      %1157 = vdwg.mxu0
      %v1158 = vpack.c.bf16 %v1076, %v1076
      %v1159 = vpack.c.bf16 %v1117, %v1117
      %v1160 = vpack.c.bf16 %v1155, %v1155
      %v1162 = vsel %vm793, %v1158, 0
      %v1165 = vsel %vm793, %v1159, 0
      %1167 = vmatpush.bf16.xpose.msra.mxu0 0
      %1168 = vmatpush.bf16.xpose.msra.mxu0 0
      %1169 = vmatpush.bf16.xpose.msra.mxu0 0
      %1170 = vmatpush.bf16.xpose.msra.mxu0 0
      %1171 = vmatpush.bf16.xpose.msra.mxu0 0
      %1172 = vmatpush.bf16.xpose.msra.mxu0 0
      %1173 = vmatpush.bf16.xpose.msra.mxu0 0
      %1174 = vmatpush.bf16.xpose.msra.mxu0 %v1165
      %1175 = vmatmul.bf16.gmra.mxu0 %v1162
      %v1176 = vpop.f32.mrf.mxu0
      %v1177 = vadd.f32 0.0, %v1176
      %v1178 = vpop.f32.mrf.mxu0
      %1179 = vdwg.mxu0
      %v1180 = vmul.f32 %v1177, 0.17677669
      %v1181 = vsel %vm815, %v1180, -inf
      %1182 = vmax.xlane.f32.xlu0 %v1181
      %v1183 = vpop.xlane.xlu0 %1182
      %v1184 = vsub.f32 %v1180, %v1183
      %v1185 = vmul.f32 %v1184, 1.442695
      %v1186 = vpow.pop %v1185
      %v1187 = vsel %vm815, %v1186, 0.0
      %1188 = vadd.xlane.f32.xlu0 %v1187
      %v1189 = vpop.xlane.xlu0 %1188
      %v1190 = vrcp.pop %v1189
      %v1191 = vmul.f32 %v1186, %v1190
      %v1192 = vpack.c.bf16 %v1191, %v1191
      %v1194 = vsel %vm815, %v1192, 0
      %v1197 = vsel %vm831, %v1160, 0
      %1199 = vmatpush.bf16.msra.mxu0 0
      %1200 = vmatpush.bf16.msra.mxu0 0
      %1201 = vmatpush.bf16.msra.mxu0 0
      %1202 = vmatpush.bf16.msra.mxu0 0
      %1203 = vmatpush.bf16.msra.mxu0 0
      %1204 = vmatpush.bf16.msra.mxu0 0
      %1205 = vmatpush.bf16.msra.mxu0 0
      %1206 = vmatpush.bf16.msra.mxu0 %v1197
      %1207 = vmatmul.bf16.gmra.mxu0 %v1194
      %v1208 = vpop.f32.mrf.mxu0
      %v1209 = vadd.f32 0.0, %v1208
      %v1210 = vpop.f32.mrf.mxu0
      %1211 = vdwg.mxu0
      %v1212 = vpack.c.bf16 %v1209, %v1209
      %1213 = vst.msk [vmem:[#allocation2] sm:$0xf] %vm849, %v1212
      %v1215 = vunpack.c.l.b16 %v1158
      %v1216 = vpack.c.b16 %v1215, %v1215
      %1217 = vrot.lane.b32.xlu0 %v1216, 96
      %v1218 = vpop.permute.xlu0 %1217
      %v1220 = vunpack.c.l.b16 %v1159
      %v1221 = vpack.c.b16 %v1220, %v1220
      %1222 = vrot.lane.b32.xlu0 %v1221, 96
      %v1223 = vpop.permute.xlu0 %1222
      %v1225 = vsel %vm793, %v1218, 0
      %v1228 = vsel %vm793, %v1223, 0
      %1230 = vmatpush.bf16.xpose.msra.mxu0 0
      %1231 = vmatpush.bf16.xpose.msra.mxu0 0
      %1232 = vmatpush.bf16.xpose.msra.mxu0 0
      %1233 = vmatpush.bf16.xpose.msra.mxu0 0
      %1234 = vmatpush.bf16.xpose.msra.mxu0 0
      %1235 = vmatpush.bf16.xpose.msra.mxu0 0
      %1236 = vmatpush.bf16.xpose.msra.mxu0 0
      %1237 = vmatpush.bf16.xpose.msra.mxu0 %v1228
      %1238 = vmatmul.bf16.gmra.mxu0 %v1225
      %v1239 = vpop.f32.mrf.mxu0
      %v1240 = vadd.f32 0.0, %v1239
      %v1241 = vpop.f32.mrf.mxu0
      %1242 = vdwg.mxu0
      %v1243 = vmul.f32 %v1240, 0.17677669
      %v1244 = vsel %vm815, %v1243, -inf
      %1245 = vmax.xlane.f32.xlu0 %v1244
      %v1246 = vpop.xlane.xlu0 %1245
      %v1247 = vsub.f32 %v1243, %v1246
      %v1248 = vmul.f32 %v1247, 1.442695
      %v1249 = vpow.pop %v1248
      %v1250 = vsel %vm815, %v1249, 0.0
      %1251 = vadd.xlane.f32.xlu0 %v1250
      %v1252 = vpop.xlane.xlu0 %1251
      %v1253 = vrcp.pop %v1252
      %v1254 = vmul.f32 %v1249, %v1253
      %v1255 = vpack.c.bf16 %v1254, %v1254
      %v1257 = vunpack.c.l.b16 %v1160
      %v1258 = vpack.c.b16 %v1257, %v1257
      %1259 = vrot.lane.b32.xlu0 %v1258, 96
      %v1260 = vpop.permute.xlu0 %1259
      %v1262 = vsel %vm815, %v1255, 0
      %v1265 = vsel %vm831, %v1260, 0
      %1267 = vmatpush.bf16.msra.mxu0 0
      %1268 = vmatpush.bf16.msra.mxu0 0
      %1269 = vmatpush.bf16.msra.mxu0 0
      %1270 = vmatpush.bf16.msra.mxu0 0
      %1271 = vmatpush.bf16.msra.mxu0 0
      %1272 = vmatpush.bf16.msra.mxu0 0
      %1273 = vmatpush.bf16.msra.mxu0 0
      %1274 = vmatpush.bf16.msra.mxu0 %v1265
      %1275 = vmatmul.bf16.gmra.mxu0 %v1262
      %v1276 = vpop.f32.mrf.mxu0
      %v1277 = vadd.f32 0.0, %v1276
      %v1278 = vpop.f32.mrf.mxu0
      %1279 = vdwg.mxu0
      %v1280 = vpack.c.bf16 %v1277, %v1277
      %1282 = vrot.lane.b32.xlu0 %v1280, 32
      %v1283 = vpop.permute.xlu0 %1282
      %1285 = vst.msk [vmem:[#allocation2] sm:$0xf] %vm923, %v1283
      %v1286 = vld [vmem:[#allocation2] sm:$0xf]
      %v1287 = vperm.slane %v633, 1
      %v1296 = vunpack.c.l.b16 %v1028
      %v1297 = vunpack.c.l.b16 %v1029
      %v1298 = vunpack.c.l.b16 %v1030
      %v1299 = vunpack.c.l.b16 %v1031
      %v1300 = vunpack.c.l.b16 %v1032
      %v1301 = vunpack.c.l.b16 %v1033
      %v1302 = vunpack.c.l.b16 %v1034
      %v1303 = vunpack.c.l.b16 %v1035
      %v1304 = vpack.c.b16 %v1297, %v1296
      %v1305 = vpack.c.b16 %v1299, %v1298
      %v1306 = vpack.c.b16 %v1301, %v1300
      %v1307 = vpack.c.b16 %v1303, %v1302
      %v1313 = vsel %vm692, %v1286, 0
      %1315 = vmatpush.bf16.msra.mxu0 0
      %1316 = vmatpush.bf16.msra.mxu0 0
      %1317 = vmatpush.bf16.msra.mxu0 0
      %1318 = vmatpush.bf16.msra.mxu0 0
      %1319 = vmatpush.bf16.msra.mxu0 %v1307
      %1320 = vmatpush.bf16.msra.mxu0 %v1306
      %1321 = vmatpush.bf16.msra.mxu0 %v1305
      %1322 = vmatpush.bf16.msra.mxu0 %v1304
      %1323 = vmatmul.bf16.gmra.mxu0 %v1313
      %v1324 = vpop.f32.mrf.mxu0
      %v1325 = vadd.f32 %v1287, %v1324
      %v1326 = vpop.f32.mrf.mxu0
      %1327 = vdwg.mxu0
      %1328 = vst.msk [vmem:[%s624] sm:$0xf] %vm967, %v1159
      %1329 = vst.msk [vmem:[%s628] sm:$0xf] %vm967, %v1160
      %v1330 = vsel %vm692, %v1325, 0.0
      %1331 = vadd.xlane.f32.xlu0 %v1330
      %v1332 = vpop.xlane.xlu0 %1331
      %v1333 = vmul.f32 %v1332, %v979
      %v1334 = vsub.f32 %v1325, %v1333
      %v1335 = vmul.f32 %v1334, %v1334
      %v1336 = vsel %vm692, %v1335, 0.0
      %1337 = vadd.xlane.f32.xlu0 %v1336
      %v1338 = vpop.xlane.xlu0 %1337
      %v1339 = vmul.f32 %v1338, %v979
      %v1340 = vadd.f32 %v1339, 1e-05
      %v1341 = vrsqrt.pop %v1340
      %v1342 = vmul.f32 %v1341, %v1340
      %v1343 = vmul.f32 %v1342, %v1341
      %v1344 = vmul.f32 0.5, %v1343
      %v1345 = vsub.f32 1.5, %v1344
      %v1346 = vmul.f32 %v1341, %v1345
      %vm1347 = vweird.f32 %v1340
      %vm1348 = vweird.f32 %v1341
      %vm1349 = vmor %vm1347, %vm1348
      %v1350 = vsel %vm1349, %v1341, %v1346
      %v1351 = vmul.f32 %v1334, %v1350
      %v1352 = vperm.slane %v633, 2
      %v1353 = vmul.f32 %v1351, %v1352
      %v1354 = vperm.slane %v633, 3
      %v1355 = vadd.f32 %v1353, %v1354
      %v1356 = vadd.f32 %v1003, %v1355
      %v1357 = vpack.c.bf16 %v1356, %v1356
      %v1358 = vld [vmem:[%s10] sm:$0xf]
      %v1359 = vld [vmem:[%s10 + $0x4] sm:$0xf]
      %v1360 = vld [vmem:[%s10 + $0x8] sm:$0xf]
      %v1361 = vld [vmem:[%s10 + $0xc] sm:$0xf]
      %v1362 = vld [vmem:[%s10 + $0x10] sm:$0xf]
      %v1363 = vld [vmem:[%s10 + $0x14] sm:$0xf]
      %v1364 = vld [vmem:[%s10 + $0x18] sm:$0xf]
      %v1365 = vld [vmem:[%s10 + $0x1c] sm:$0xf]
      %v1366 = vld [vmem:[%s13] sm:$0x1]
      %v1368 = vperm.slane %v1366, 0
      %v1378 = vunpack.c.l.b16 %v1358
      %v1379 = vunpack.c.l.b16 %v1359
      %v1380 = vunpack.c.l.b16 %v1360
      %v1381 = vunpack.c.l.b16 %v1361
      %v1382 = vunpack.c.l.b16 %v1362
      %v1383 = vunpack.c.l.b16 %v1363
      %v1384 = vunpack.c.l.b16 %v1364
      %v1385 = vunpack.c.l.b16 %v1365
      %v1386 = vpack.c.b16 %v1379, %v1378
      %v1387 = vpack.c.b16 %v1381, %v1380
      %v1388 = vpack.c.b16 %v1383, %v1382
      %v1389 = vpack.c.b16 %v1385, %v1384
      %v1395 = vsel %vm692, %v1357, 0
      %1397 = vmatpush.bf16.msra.mxu0 0
      %1398 = vmatpush.bf16.msra.mxu0 0
      %1399 = vmatpush.bf16.msra.mxu0 0
      %1400 = vmatpush.bf16.msra.mxu0 0
      %1401 = vmatpush.bf16.msra.mxu0 %v1389
      %1402 = vmatpush.bf16.msra.mxu0 %v1388
      %1403 = vmatpush.bf16.msra.mxu0 %v1387
      %1404 = vmatpush.bf16.msra.mxu0 %v1386
      %1405 = vmatmul.bf16.gmra.mxu0 %v1395
      %v1406 = vpop.f32.mrf.mxu0
      %v1407 = vadd.f32 %v1368, %v1406
      %v1408 = vpop.f32.mrf.mxu0
      %1409 = vdwg.mxu0
      %v1410 = vmax.f32 %v1407, 0.0
      %v1411 = vpack.c.bf16 %v1410, %v1410
      %v1412 = vld [vmem:[%s11] sm:$0xf]
      %v1413 = vld [vmem:[%s11 + $0x4] sm:$0xf]
      %v1414 = vld [vmem:[%s11 + $0x8] sm:$0xf]
      %v1415 = vld [vmem:[%s11 + $0xc] sm:$0xf]
      %v1416 = vld [vmem:[%s11 + $0x10] sm:$0xf]
      %v1417 = vld [vmem:[%s11 + $0x14] sm:$0xf]
      %v1418 = vld [vmem:[%s11 + $0x18] sm:$0xf]
      %v1419 = vld [vmem:[%s11 + $0x1c] sm:$0xf]
      %v1420 = vld [vmem:[%s11 + $0x20] sm:$0xf]
      %v1421 = vld [vmem:[%s11 + $0x24] sm:$0xf]
      %v1422 = vld [vmem:[%s11 + $0x28] sm:$0xf]
      %v1423 = vld [vmem:[%s11 + $0x2c] sm:$0xf]
      %v1424 = vld [vmem:[%s11 + $0x30] sm:$0xf]
      %v1425 = vld [vmem:[%s11 + $0x34] sm:$0xf]
      %v1426 = vld [vmem:[%s11 + $0x38] sm:$0xf]
      %v1427 = vld [vmem:[%s11 + $0x3c] sm:$0xf]
      %v1428 = vperm.slane %v633, 4
      %v1445 = vunpack.c.l.b16 %v1412
      %v1446 = vunpack.c.l.b16 %v1413
      %v1447 = vunpack.c.l.b16 %v1414
      %v1448 = vunpack.c.l.b16 %v1415
      %v1449 = vunpack.c.l.b16 %v1416
      %v1450 = vunpack.c.l.b16 %v1417
      %v1451 = vunpack.c.l.b16 %v1418
      %v1452 = vunpack.c.l.b16 %v1419
      %v1453 = vunpack.c.l.b16 %v1420
      %v1454 = vunpack.c.l.b16 %v1421
      %v1455 = vunpack.c.l.b16 %v1422
      %v1456 = vunpack.c.l.b16 %v1423
      %v1457 = vunpack.c.l.b16 %v1424
      %v1458 = vunpack.c.l.b16 %v1425
      %v1459 = vunpack.c.l.b16 %v1426
      %v1460 = vunpack.c.l.b16 %v1427
      %v1461 = vpack.c.b16 %v1446, %v1445
      %v1462 = vpack.c.b16 %v1448, %v1447
      %v1463 = vpack.c.b16 %v1450, %v1449
      %v1464 = vpack.c.b16 %v1452, %v1451
      %v1465 = vpack.c.b16 %v1454, %v1453
      %v1466 = vpack.c.b16 %v1456, %v1455
      %v1467 = vpack.c.b16 %v1458, %v1457
      %v1468 = vpack.c.b16 %v1460, %v1459
      %1477 = vmatpush.bf16.msra.mxu0 %v1468
      %1478 = vmatpush.bf16.msra.mxu0 %v1467
      %1479 = vmatpush.bf16.msra.mxu0 %v1466
      %1480 = vmatpush.bf16.msra.mxu0 %v1465
      %1481 = vmatpush.bf16.msra.mxu0 %v1464
      %1482 = vmatpush.bf16.msra.mxu0 %v1463
      %1483 = vmatpush.bf16.msra.mxu0 %v1462
      %1484 = vmatpush.bf16.msra.mxu0 %v1461
      %1485 = vmatmul.bf16.gmra.mxu0 %v1411
      %v1486 = vpop.f32.mrf.mxu0
      %v1487 = vadd.f32 %v1428, %v1486
      %v1488 = vpop.f32.mrf.mxu0
      %1489 = vdwg.mxu0
      %v1490 = vsel %vm692, %v1487, 0.0
      %1491 = vadd.xlane.f32.xlu0 %v1490
      %v1492 = vpop.xlane.xlu0 %1491
      %v1493 = vmul.f32 %v1492, %v979
      %v1494 = vsub.f32 %v1487, %v1493
      %v1495 = vmul.f32 %v1494, %v1494
      %v1496 = vsel %vm692, %v1495, 0.0
      %1497 = vadd.xlane.f32.xlu0 %v1496
      %v1498 = vpop.xlane.xlu0 %1497
      %v1499 = vmul.f32 %v1498, %v979
      %v1500 = vadd.f32 %v1499, 1e-05
      %v1501 = vrsqrt.pop %v1500
      %v1502 = vmul.f32 %v1501, %v1500
      %v1503 = vmul.f32 %v1502, %v1501
      %v1504 = vmul.f32 0.5, %v1503
      %v1505 = vsub.f32 1.5, %v1504
      %v1506 = vmul.f32 %v1501, %v1505
      %vm1507 = vweird.f32 %v1500
      %vm1508 = vweird.f32 %v1501
      %vm1509 = vmor %vm1507, %vm1508
      %v1510 = vsel %vm1509, %v1501, %v1506
      %v1511 = vmul.f32 %v1494, %v1510
      %v1512 = vperm.slane %v633, 5
      %v1513 = vmul.f32 %v1511, %v1512
      %v1514 = vperm.slane %v633, 6
      %v1515 = vadd.f32 %v1513, %v1514
      %v1516 = vadd.f32 %v1356, %v1515
      %1517 = vst.msk [vmem:[%s612] sm:$0xff] %vm692, %v1516
      %p1518 = scmp.lt.s32.totalorder %s30, 1
      %s1519 = scalar_select %p1518, %s30, 1
      %s1520 = smul.addr %s1519, 8
      %s1521 = scalar_lea.vmem %s14, %s1520
      %p1522 = scmp.lt.s32.totalorder %s30, 1
      %s1523 = scalar_select %p1522, %s30, 1
      %s1524 = smul.addr %s1523, 4
      %s1525 = scalar_lea.vmem %s15, %s1524
      %p1526 = scmp.lt.s32.totalorder %s30, 1
      %s1527 = scalar_select %p1526, %s30, 1
      %s1528 = smul.addr %s1527, 4
      %s1529 = scalar_lea.vmem %s16, %s1528
      %p1530 = scmp.lt.s32.totalorder %s30, 1
      %s1531 = scalar_select %p1530, %s30, 1
      %s1532 = smul.addr %s1531, 4
      %s1533 = scalar_lea.vmem %s17, %s1532
      %p1534 = scmp.lt.s32.totalorder %s30, 1
      %s1535 = scalar_select %p1534, %s30, 1
      %s1536 = smul.addr %s1535, 4
      %s1537 = scalar_lea.vmem %s18, %s1536
      // Predicated region
      $region77: #{transformer_decoder.3} parent=75 // pred_check
        %p1538 = pneg %p352
      $region78: #{transformer_decoder.3} parent=75 // pred_check_branch
        %1540 = sbr.rel (%p1538) target = $region80
      $region79: #{transformer_decoder.3} parent=75 // pred_region
        _
      $region80: #{transformer_decoder.3} parent=75 // pred_fallthru
        _
      // Predicated region
      $region81: #{transformer_decoder.3} parent=75 // pred_check
        %p1541 = pneg %p378
      $region82: #{transformer_decoder.3} parent=75 // pred_check_branch
        %1543 = sbr.rel (%p1541) target = $region84
      $region83: #{transformer_decoder.3} parent=75 // pred_region
        _
      $region84: #{transformer_decoder.3} parent=75 // pred_fallthru
        _
      // Predicated region
      $region85: #{transformer_decoder.3} parent=75 // pred_check
        %p1544 = pneg %p404
      $region86: #{transformer_decoder.3} parent=75 // pred_check_branch
        %1546 = sbr.rel (%p1544) target = $region88
      $region87: #{transformer_decoder.3} parent=75 // pred_region
        _
      $region88: #{transformer_decoder.3} parent=75 // pred_fallthru
        _
      // Predicated region
      $region89: #{transformer_decoder.3} parent=75 // pred_check
        %p1547 = pneg %p430
      $region90: #{transformer_decoder.3} parent=75 // pred_check_branch
        %1549 = sbr.rel (%p1547) target = $region92
      $region91: #{transformer_decoder.3} parent=75 // pred_region
        _
      $region92: #{transformer_decoder.3} parent=75 // pred_fallthru
        _
      // Predicated region
      $region93: #{transformer_decoder.3} parent=75 // pred_check
        %p1550 = pneg %p456
      $region94: #{transformer_decoder.3} parent=75 // pred_check_branch
        %1552 = sbr.rel (%p1550) target = $region96
      $region95: #{transformer_decoder.3} parent=75 // pred_region
        _
      $region96: #{transformer_decoder.3} parent=75 // pred_fallthru
        _
    $region76: #{transformer_decoder.3} parent=5 // pred_fallthru
      _
    %p1553 = scmp.le.s32.totalorder 2, %s25
    // Predicated region
    $region97: #{transformer_decoder.3} parent=5 // pred_check
      %p1554 = pneg %p1553
    $region98: #{transformer_decoder.3} parent=5 // pred_check_branch
      %1556 = sbr.rel (%p1554) target = $region100
    $region99: #{transformer_decoder.3} parent=5 // pred_region
      %s1557 = ssub.s32 %s25, 2
      // Predicated region
      $region101: #{transformer_decoder.3} parent=99 // pred_check
        %p1558 = pneg %p358
      $region102: #{transformer_decoder.3} parent=99 // pred_check_branch
        %1560 = sbr.rel (%p1558) target = $region104
      $region103: #{transformer_decoder.3} parent=99 // pred_region
        %p1561 = scmp.lt.s32.totalorder %s31, 1
        %s1562 = scalar_select %p1561, %s31, 1
        %s1563 = smul.addr %s1562, 8
        %s1564 = scalar_lea.vmem %s14, %s1563
      $region104: #{transformer_decoder.3} parent=99 // pred_fallthru
        _
      // Predicated region
      $region105: #{transformer_decoder.3} parent=99 // pred_check
        %p1565 = pneg %p384
      $region106: #{transformer_decoder.3} parent=99 // pred_check_branch
        %1567 = sbr.rel (%p1565) target = $region108
      $region107: #{transformer_decoder.3} parent=99 // pred_region
        %p1568 = scmp.lt.s32.totalorder %s31, 1
        %s1569 = scalar_select %p1568, %s31, 1
        %s1570 = smul.addr %s1569, 4
        %s1571 = scalar_lea.vmem %s15, %s1570
      $region108: #{transformer_decoder.3} parent=99 // pred_fallthru
        _
      // Predicated region
      $region109: #{transformer_decoder.3} parent=99 // pred_check
        %p1572 = pneg %p410
      $region110: #{transformer_decoder.3} parent=99 // pred_check_branch
        %1574 = sbr.rel (%p1572) target = $region112
      $region111: #{transformer_decoder.3} parent=99 // pred_region
        %p1575 = scmp.lt.s32.totalorder %s31, 1
        %s1576 = scalar_select %p1575, %s31, 1
        %s1577 = smul.addr %s1576, 4
        %s1578 = scalar_lea.vmem %s16, %s1577
      $region112: #{transformer_decoder.3} parent=99 // pred_fallthru
        _
      // Predicated region
      $region113: #{transformer_decoder.3} parent=99 // pred_check
        %p1579 = pneg %p436
      $region114: #{transformer_decoder.3} parent=99 // pred_check_branch
        %1581 = sbr.rel (%p1579) target = $region116
      $region115: #{transformer_decoder.3} parent=99 // pred_region
        %p1582 = scmp.lt.s32.totalorder %s31, 1
        %s1583 = scalar_select %p1582, %s31, 1
        %s1584 = smul.addr %s1583, 4
        %s1585 = scalar_lea.vmem %s17, %s1584
      $region116: #{transformer_decoder.3} parent=99 // pred_fallthru
        _
      // Predicated region
      $region117: #{transformer_decoder.3} parent=99 // pred_check
        %p1586 = pneg %p462
      $region118: #{transformer_decoder.3} parent=99 // pred_check_branch
        %1588 = sbr.rel (%p1586) target = $region120
      $region119: #{transformer_decoder.3} parent=99 // pred_region
        %p1589 = scmp.lt.s32.totalorder %s31, 1
        %s1590 = scalar_select %p1589, %s31, 1
        %s1591 = smul.addr %s1590, 4
        %s1592 = scalar_lea.vmem %s18, %s1591
      $region120: #{transformer_decoder.3} parent=99 // pred_fallthru
        _
    $region100: #{transformer_decoder.3} parent=5 // pred_fallthru
      _
  $region6: #{transformer_decoder.3} parent=0 // loop_footer
    %s29 = sadd.s32 1, %s25
  $region7: #{transformer_decoder.3} parent=0 // loop_footer_branch
    %24 = sbr.rel target = $region3
  $region8: #{transformer_decoder.3} parent=0 // loop_exit
    _

</llo_original>
